<compile_context>
chip_gen: v7x
topology: tpu7x:2x2x1
jax: 0.10.0
libtpu: 0.0.40
codegen_flags: <defaults>
</compile_context>

<pallas_src>
import functools

import jax
import jax.numpy as jnp
import numpy as np
from jax.experimental import pallas as pl
from jax.experimental.pallas import tpu as pltpu


def _round_up(x, m):
    return (x + m - 1) // m * m


# ----------------------------------------------------------------------------
# Fused Pallas kernel: Tier1 (per-bag gated-attention MIL) + Tier2 in one step
# ----------------------------------------------------------------------------
def _make_dtfd_kernel(B, BP, bag, D, out_rows):
    """B pseudo-bags of `bag` valid rows, padded to BP rows each (R = B*BP)."""

    def kernel(h_ref, wvu_ref, wct_ref, b_ref, ba_ref, out_ref):
        # h_ref   : (R, LP)        bf16  padded/stacked pseudo-bag instances
        # wvu_ref : (2, LP, PACK)  bf16  [tier] packed [Wv^T | Wu^T] (lanes 0:D / D:2D)
        # wct_ref : (2, LP, PACK)  bf16  [tier] classifier W^T (lanes 0:2 valid)
        # b_ref   : (2, 8, PACK)   f32   [tier] row0: bv|bu, row1: Wa, row2: bc
        # ba_ref  : (2,)           f32   SMEM: attention_weights bias per tier
        # out_ref : (out_rows, PACK) f32 rows 0..B-1: tier1 logits, row B: tier2 logits
        f32 = jnp.float32
        bf16 = jnp.bfloat16

        h_bf = h_ref[...]                                   # (R, LP) bf16
        h32 = h_bf.astype(f32)
        R, LP = h_bf.shape

        def gated_attention_logits(x_bf, tier):
            """x_bf: (rows, LP) bf16 -> per-row attention logit (rows, 1) f32."""
            b = b_ref[tier]                                 # (8, PACK) f32
            z = jnp.dot(x_bf, wvu_ref[tier],
                        preferred_element_type=f32) + b[0:1]   # (rows, PACK)
            zv = z[:, :D]                                   # Lin_V output
            zu = z[:, D:2 * D]                              # Lin_U output
            gate = jnp.tanh(zv) * pl.reciprocal(1.0 + jnp.exp(-zu), approx=True)
            att = jnp.sum(gate * b[1:2, :D], axis=-1, keepdims=True)
            return att + ba_ref[tier]                       # (rows, 1)

        # ---- Tier 1: one batched matmul across ALL pseudo-bags -----------------
        att1 = gated_attention_logits(h_bf, 0)              # (R, 1)
        att1 = att1.reshape(B, BP, 1)                       # layout-free sublane split
        r = jax.lax.broadcasted_iota(jnp.int32, (B, BP, 1), 1)
        att1 = jnp.where(r < bag, att1, f32(-1e30))         # mask padded rows
        att1 = att1 - jnp.max(att1, axis=1, keepdims=True)
        p1 = jnp.exp(att1)
        a1 = p1 * pl.reciprocal(jnp.sum(p1, axis=1, keepdims=True), approx=True)
        M = jnp.sum(a1 * h32.reshape(B, BP, LP), axis=1)     # (B, LP) f32 pooled fts
        Mb = M.astype(bf16)

        preds1 = jnp.dot(Mb, wct_ref[0],
                         preferred_element_type=f32) + b_ref[0][2:3]     # (B, PACK)

        # ---- Tier 2: gated attention over the B pooled features (stays in VMEM) ----
        att2 = gated_attention_logits(Mb, 1)                 # (B, 1)
        att2 = att2 - jnp.max(att2, axis=0, keepdims=True)
        p2 = jnp.exp(att2)
        a2 = p2 * pl.reciprocal(jnp.sum(p2, axis=0, keepdims=True), approx=True)
        M2 = jnp.sum(a2 * M, axis=0, keepdims=True)           # (1, LP) f32
        pred2 = jnp.dot(M2.astype(bf16), wct_ref[1],
                        preferred_element_type=f32) + b_ref[1][2:3]      # (1, PACK)

        parts = [preds1, pred2]
        if out_rows > B + 1:
            parts.append(jnp.zeros((out_rows - B - 1, preds1.shape[1]), f32))
        out_ref[...] = jnp.concatenate(parts, axis=0)         # lane-dense store

    return kernel


def _dtfd_fused(h_all, kp, B, BP, bag):
    """Single fused pallas_call. Returns the (out_rows, PACK) logit slab."""
    out_rows = _round_up(B + 1, 8)
    kernel = _make_dtfd_kernel(B, BP, bag, kp["D"], out_rows)
    vmem = pl.BlockSpec(memory_space=pltpu.MemorySpace.VMEM)
    return pl.pallas_call(
        kernel,
        out_shape=jax.ShapeDtypeStruct((out_rows, kp["PACK"]), jnp.float32),
        in_specs=[vmem,                                           # h_all
                  vmem,                                           # packed Wv|Wu (both tiers)
                  vmem,                                           # classifier W^T (both tiers)
                  vmem,                                           # bias/Wa slab (f32)
                  pl.BlockSpec(memory_space=pltpu.MemorySpace.SMEM)],  # ba scalars
        out_specs=vmem,
        compiler_params=pltpu.CompilerParams(vmem_limit_bytes=16 << 20),
    )(h_all, kp["w_vu"], kp["w_ct"], kp["b_all"], kp["ba"])


# ----------------------------------------------------------------------------
# Parameters (raw for the reference, pre-packed/padded bf16 for the kernel)
# ----------------------------------------------------------------------------
def make_h3():
    """Positional-encoding table H3 of shape (24, 1000) as in DTFD.__init__."""
    d = 1000
    i = np.arange(24, dtype=np.float64)[:, None]
    j = np.arange(d // 2, dtype=np.float64)[None, :]
    weight = (1.0 / 1000.0) ** (2.0 * j / d)
    angles = weight * i
    h3 = np.zeros((24, d), dtype=np.float32)
    h3[:, 0::2] = np.sin(angles)
    h3[:, 1::2] = np.cos(angles)
    return jnp.asarray(h3)


def _init_linear(key, fan_in, fan_out):
    kw, kb = jax.random.split(key)
    bound = 1.0 / np.sqrt(fan_in)
    w = jax.random.uniform(kw, (fan_out, fan_in), jnp.float32, -bound, bound)
    b = jax.random.uniform(kb, (fan_out,), jnp.float32, -bound, bound)
    return w, b


def _init_tier(key, L, D):
    k1, k2, k3, k4 = jax.random.split(key, 4)
    Wv, bv = _init_linear(k1, L, D)     # attention_V
    Wu, bu = _init_linear(k2, L, D)     # attention_U
    Wa, ba = _init_linear(k3, D, 1)     # attention_weights
    Wc, bc = _init_linear(k4, L, 2)     # classifier
    return {"Wv": Wv, "bv": bv, "Wu": Wu, "bu": bu,
            "Wa": Wa, "ba": ba, "Wc": Wc, "bc": bc}


def _prepare_fused_kernel_params(tier1, tier2, L, D):
    """Hoisted out of the forward path: pack / transpose / pad the weights ONCE."""
    LP = _round_up(L, 128)
    PACK = _round_up(2 * D, 128)
    f32 = jnp.float32

    def pack_tier(t):
        wvu = jnp.zeros((LP, PACK), f32)
        wvu = wvu.at[:L, :D].set(t["Wv"].T.astype(f32))          # Lin_V in lanes 0:D
        wvu = wvu.at[:L, D:2 * D].set(t["Wu"].T.astype(f32))     # Lin_U in lanes D:2D
        wct = jnp.zeros((LP, PACK), f32).at[:L, :2].set(t["Wc"].T.astype(f32))
        b = jnp.zeros((8, PACK), f32)
        b = b.at[0, :D].set(t["bv"].astype(f32))
        b = b.at[0, D:2 * D].set(t["bu"].astype(f32))
        b = b.at[1, :D].set(t["Wa"][0].astype(f32))
        b = b.at[2, :2].set(t["bc"].astype(f32))
        return wvu, wct, b

    w1, c1, b1 = pack_tier(tier1)
    w2, c2, b2 = pack_tier(tier2)
    return {
        "w_vu": jnp.stack([w1, w2]).astype(jnp.bfloat16),   # (2, LP, PACK) bf16
        "w_ct": jnp.stack([c1, c2]).astype(jnp.bfloat16),   # (2, LP, PACK) bf16
        "b_all": jnp.stack([b1, b2]),                       # (2, 8, PACK)  f32
        "ba": jnp.stack([tier1["ba"][0], tier2["ba"][0]]).astype(f32),   # (2,) f32
        "LP": LP, "PACK": PACK, "D": D,
    }


def init_dtfd_params(key, cD, num_pseudo_bags, PE=False):
    L = 1000
    if PE:
        L = L * 2
    k1, k2 = jax.random.split(key)
    tier1 = _init_tier(k1, L, cD)
    tier2 = _init_tier(k2, L, cD)
    return {
        "PE": PE, "L": L, "num_pseudo_bags": num_pseudo_bags,
        "H3": make_h3(),
        "tier1": tier1, "tier2": tier2,
        "kernel": _prepare_fused_kernel_params(tier1, tier2, L, cD),
    }


# ----------------------------------------------------------------------------
# Forward pass (Pallas) and pure-JAX reference
# ----------------------------------------------------------------------------
def cross_entropy(logits, y):
    """nn.CrossEntropyLoss for one example: logits (1, C), y scalar int label."""
    logp = jax.nn.log_softmax(logits, axis=-1)
    return -jnp.take(logp[0], y)


def dtfd_forward(params, H, y_i, criterion=cross_entropy, loss=True, perm=None):
    """DTFD forward with the fused Pallas kernel. Returns (tier2 logits (1,2), loss)."""
    # TODO(synk): np.random.permutation and the user-supplied torch `criterion` are
    # host-side constructs; they are mirrored with an explicit `perm` argument
    # (jax.random.permutation) and a JAX cross-entropy in this wrapper.
    H = H.astype(jnp.float32)
    if params["PE"]:
        H = jnp.concatenate([H, params["H3"]], axis=1)   # requires N == 24
    N, Lf = H.shape
    B = params["num_pseudo_bags"]
    assert N % B == 0, "N must be divisible by num_pseudo_bags (equal-size bags)"
    bag = N // B
    if perm is None:
        perm = jnp.arange(N)

    kp = params["kernel"]
    BP = _round_up(bag, 8)
    # slot -> source-row map: padded slots duplicate the bag's last valid row; their
    # attention weight is masked to exactly 0 inside the kernel, so no zeroing pass.
    slot_b = np.repeat(np.arange(B), BP)
    slot_r = np.tile(np.arange(BP), B)
    src = jnp.asarray(slot_b * bag + np.minimum(slot_r, bag - 1))
    rows = H[jnp.asarray(perm)[src]].astype(jnp.bfloat16)          # (B*BP, Lf)
    h_all = jnp.zeros((B * BP, kp["LP"]), jnp.bfloat16).at[:, :Lf].set(rows)

    logits = _dtfd_fused(h_all, kp, B, BP, bag)                    # (out_rows, PACK)
    preds1 = logits[:B, :2]                                        # tier1 per-bag logits
    pred2 = logits[B:B + 1, :2]                                    # tier2 logits

    loss_bag = jnp.float32(0.0)
    if loss:
        for b in range(B):
            loss_bag = loss_bag + criterion(preds1[b:b + 1], y_i)
    loss_bag = loss_bag / B
    loss_bag = loss_bag + criterion(pred2, y_i)
    return pred2, loss_bag


def _tier_ref(tp, Hsub):
    av = jnp.tanh(Hsub @ tp["Wv"].T + tp["bv"])
    au = jax.nn.sigmoid(Hsub @ tp["Wu"].T + tp["bu"])
    a = (av * au) @ tp["Wa"].T + tp["ba"]          # (n, 1)
    a = jax.nn.softmax(a.T, axis=1)                # (1, n)
    M = a @ Hsub                                   # (1, L)
    Y = M @ tp["Wc"].T + tp["bc"]                  # (1, 2)
    return M, Y


def dtfd_forward_ref(params, H, y_i, criterion=cross_entropy, loss=True, perm=None):
    """Pure-JAX f32 reference mirroring the PyTorch DTFD forward."""
    H = H.astype(jnp.float32)
    if params["PE"]:
        H = jnp.concatenate([H, params["H3"]], axis=1)
    N = H.shape[0]
    B = params["num_pseudo_bags"]
    bag = N // B
    if perm is None:
        perm = jnp.arange(N)
    Hs = H[perm]
    fts, preds1 = [], []
    for b in range(B):
        M, Y = _tier_ref(params["tier1"], Hs[b * bag:(b + 1) * bag])
        fts.append(M[0])
        preds1.append(Y)
    fts = jnp.stack(fts)
    _, Y2 = _tier_ref(params["tier2"], fts)
    loss_bag = jnp.float32(0.0)
    if loss:
        for Y in preds1:
            loss_bag = loss_bag + criterion(Y, y_i)
    loss_bag = loss_bag / B
    loss_bag = loss_bag + criterion(Y2, y_i)
    return Y2, loss_bag


# ----------------------------------------------------------------------------
if __name__ == "__main__":
    key = jax.random.PRNGKey(0)
    k_param, k_in, k_perm = jax.random.split(key, 3)

    PE = True                  # exercise the positional-encoding concat path
    cD = 32                    # attention hidden dim D
    num_pseudo_bags = 4        # 24 instances -> 4 pseudo-bags of 6

    params = init_dtfd_params(k_param, cD, num_pseudo_bags, PE=PE)

    # H: (24, 1000) — 24 rows so the PE concat with H3 (24, 1000) is valid.
    H = jax.random.normal(k_in, (24, 1000), jnp.float32)
    y_i = jnp.int32(1)
    perm = jax.random.permutation(k_perm, 24)   # stands in for np.random.permutation

    pred2, loss_bag = dtfd_forward(params, H, y_i, perm=perm)
    pred2 = jax.block_until_ready(pred2)
    loss_bag = jax.block_until_ready(loss_bag)

    pred2_ref, loss_ref = dtfd_forward_ref(params, H, y_i, perm=perm)
    pred2_ref = jax.block_until_ready(pred2_ref)

    assert pred2.shape == (1, 2), pred2.shape
    # bf16 storage of H / big weights -> slightly looser tolerance vs the f32 reference.
    np.testing.assert_allclose(np.asarray(pred2), np.asarray(pred2_ref),
                               rtol=2e-2, atol=2e-2)
    np.testing.assert_allclose(float(loss_bag), float(loss_ref),
                               rtol=2e-2, atol=2e-2)

    print("KERNEL_OK")
</pallas_src>

<mosaic_0001>
module attributes {stable_mosaic.version = 11 : i64} {
  func.func @kernel(%arg0: memref<32x2048xbf16, #tpu.memory_space<vmem>>, %arg1: memref<2x2048x128xbf16, #tpu.memory_space<vmem>>, %arg2: memref<2x2048x128xbf16, #tpu.memory_space<vmem>>, %arg3: memref<2x8x128xf32, #tpu.memory_space<vmem>>, %arg4: memref<2xf32, #tpu.memory_space<smem>>, %arg5: memref<8x128xf32, #tpu.memory_space<vmem>>) attributes {dimension_semantics = [], scalar_prefetch = 0 : i64, scratch_operands = 0 : i64, tpu.core_type = #tpu.core_type<tc>} {
    %c0 = arith.constant 0 : index
    %c0_0 = arith.constant 0 : index
    %0 = vector.load %arg0[%c0, %c0_0] : memref<32x2048xbf16, #tpu.memory_space<vmem>>, vector<32x2048xbf16>
    %1 = arith.extf %0 : vector<32x2048xbf16> to vector<32x2048xf32>
    %c0_1 = arith.constant 0 : index
    %c0_2 = arith.constant 0 : index
    %c0_3 = arith.constant 0 : index
    %2 = vector.load %arg3[%c0_1, %c0_2, %c0_3] : memref<2x8x128xf32, #tpu.memory_space<vmem>>, vector<1x8x128xf32>
    %3 = vector.shape_cast %2 : vector<1x8x128xf32> to vector<8x128xf32>
    %c0_4 = arith.constant 0 : index
    %c0_5 = arith.constant 0 : index
    %c0_6 = arith.constant 0 : index
    %4 = vector.load %arg1[%c0_4, %c0_5, %c0_6] : memref<2x2048x128xbf16, #tpu.memory_space<vmem>>, vector<1x2048x128xbf16>
    %5 = vector.shape_cast %4 : vector<1x2048x128xbf16> to vector<2048x128xbf16>
    %cst = arith.constant dense<0.000000e+00> : vector<32x128xf32>
    %6 = tpu.matmul %0, %5, %cst {dimension_numbers = #tpu.dot_dimension_numbers<[1], [0], [0], [1], [0, 0, 1, 1], [], []>} : vector<32x2048xbf16>, vector<2048x128xbf16>, vector<32x128xf32> -> vector<32x128xf32>
    %7 = vector.extract_strided_slice %3 {offsets = [0, 0], sizes = [1, 128], strides = [1, 1]} : vector<8x128xf32> to vector<1x128xf32>
    %8 = vector.broadcast %7 : vector<1x128xf32> to vector<32x128xf32>
    %9 = arith.addf %6, %8 : vector<32x128xf32>
    %10 = vector.extract_strided_slice %9 {offsets = [0, 0], sizes = [32, 32], strides = [1, 1]} : vector<32x128xf32> to vector<32x32xf32>
    %11 = vector.extract_strided_slice %9 {offsets = [0, 32], sizes = [32, 32], strides = [1, 1]} : vector<32x128xf32> to vector<32x32xf32>
    %12 = math.tanh %10 : vector<32x32xf32>
    %cst_7 = arith.constant 0.000000e+00 : f32
    %13 = vector.broadcast %cst_7 : f32 to vector<32x32xf32>
    %14 = arith.subf %13, %11 : vector<32x32xf32>
    %15 = math.exp %14 : vector<32x32xf32>
    %cst_8 = arith.constant 1.000000e+00 : f32
    %16 = vector.broadcast %cst_8 : f32 to vector<32x32xf32>
    %17 = arith.addf %16, %15 : vector<32x32xf32>
    %18 = tpu.reciprocal %17 {approx = true} : vector<32x32xf32> -> vector<32x32xf32>
    %19 = arith.mulf %12, %18 : vector<32x32xf32>
    %20 = vector.extract_strided_slice %3 {offsets = [1, 0], sizes = [1, 32], strides = [1, 1]} : vector<8x128xf32> to vector<1x32xf32>
    %21 = vector.broadcast %20 : vector<1x32xf32> to vector<32x32xf32>
    %22 = arith.mulf %19, %21 : vector<32x32xf32>
    %cst_9 = arith.constant dense<0.000000e+00> : vector<32xf32>
    %23 = vector.multi_reduction <add>, %22, %cst_9 [1] : vector<32x32xf32> to vector<32xf32>
    %24 = vector.shape_cast %23 : vector<32xf32> to vector<32x1xf32>
    %c0_10 = arith.constant 0 : index
    %25 = memref.load %arg4[%c0_10] : memref<2xf32, #tpu.memory_space<smem>>
    %26 = vector.broadcast %25 : f32 to vector<32x1xf32>
    %27 = arith.addf %24, %26 : vector<32x1xf32>
    %28 = vector.shape_cast %27 : vector<32x1xf32> to vector<4x8x1xf32>
    %29 = tpu.iota {dimensions = array<i32: 1>} : vector<4x8x1xi32>
    %c6_i32 = arith.constant 6 : i32
    %30 = vector.broadcast %c6_i32 : i32 to vector<4x8x1xi32>
    %31 = arith.cmpi slt, %29, %30 : vector<4x8x1xi32>
    %cst_11 = arith.constant -1.000000e+30 : f32
    %32 = vector.broadcast %cst_11 : f32 to vector<4x8x1xf32>
    %33 = arith.select %31, %28, %32 : vector<4x8x1xi1>, vector<4x8x1xf32>
    %cst_12 = arith.constant dense<0xFF800000> : vector<4x1xf32>
    %34 = vector.multi_reduction <maximumf>, %33, %cst_12 [1] : vector<4x8x1xf32> to vector<4x1xf32>
    %35 = vector.shape_cast %34 : vector<4x1xf32> to vector<4x1x1xf32>
    %36 = vector.broadcast %35 : vector<4x1x1xf32> to vector<4x8x1xf32>
    %37 = arith.subf %33, %36 : vector<4x8x1xf32>
    %38 = math.exp %37 : vector<4x8x1xf32>
    %cst_13 = arith.constant dense<0.000000e+00> : vector<4x1xf32>
    %39 = vector.multi_reduction <add>, %38, %cst_13 [1] : vector<4x8x1xf32> to vector<4x1xf32>
    %40 = vector.shape_cast %39 : vector<4x1xf32> to vector<4x1x1xf32>
    %41 = tpu.reciprocal %40 {approx = true} : vector<4x1x1xf32> -> vector<4x1x1xf32>
    %42 = vector.broadcast %41 : vector<4x1x1xf32> to vector<4x8x1xf32>
    %43 = arith.mulf %38, %42 : vector<4x8x1xf32>
    %44 = vector.shape_cast %1 : vector<32x2048xf32> to vector<4x8x2048xf32>
    %45 = vector.broadcast %43 : vector<4x8x1xf32> to vector<4x8x2048xf32>
    %46 = arith.mulf %45, %44 : vector<4x8x2048xf32>
    %cst_14 = arith.constant dense<0.000000e+00> : vector<4x2048xf32>
    %47 = vector.multi_reduction <add>, %46, %cst_14 [1] : vector<4x8x2048xf32> to vector<4x2048xf32>
    %48 = arith.truncf %47 : vector<4x2048xf32> to vector<4x2048xbf16>
    %c0_15 = arith.constant 0 : index
    %c0_16 = arith.constant 0 : index
    %c0_17 = arith.constant 0 : index
    %49 = vector.load %arg2[%c0_15, %c0_16, %c0_17] : memref<2x2048x128xbf16, #tpu.memory_space<vmem>>, vector<1x2048x128xbf16>
    %50 = vector.shape_cast %49 : vector<1x2048x128xbf16> to vector<2048x128xbf16>
    %cst_18 = arith.constant dense<0.000000e+00> : vector<4x128xf32>
    %51 = tpu.matmul %48, %50, %cst_18 {dimension_numbers = #tpu.dot_dimension_numbers<[1], [0], [0], [1], [0, 0, 1, 1], [], []>} : vector<4x2048xbf16>, vector<2048x128xbf16>, vector<4x128xf32> -> vector<4x128xf32>
    %c0_19 = arith.constant 0 : index
    %c0_20 = arith.constant 0 : index
    %c0_21 = arith.constant 0 : index
    %52 = vector.load %arg3[%c0_19, %c0_20, %c0_21] : memref<2x8x128xf32, #tpu.memory_space<vmem>>, vector<1x8x128xf32>
    %53 = vector.shape_cast %52 : vector<1x8x128xf32> to vector<8x128xf32>
    %54 = vector.extract_strided_slice %53 {offsets = [2, 0], sizes = [1, 128], strides = [1, 1]} : vector<8x128xf32> to vector<1x128xf32>
    %55 = vector.broadcast %54 : vector<1x128xf32> to vector<4x128xf32>
    %56 = arith.addf %51, %55 : vector<4x128xf32>
    %c1 = arith.constant 1 : index
    %c0_22 = arith.constant 0 : index
    %c0_23 = arith.constant 0 : index
    %57 = vector.load %arg3[%c1, %c0_22, %c0_23] : memref<2x8x128xf32, #tpu.memory_space<vmem>>, vector<1x8x128xf32>
    %58 = vector.shape_cast %57 : vector<1x8x128xf32> to vector<8x128xf32>
    %c1_24 = arith.constant 1 : index
    %c0_25 = arith.constant 0 : index
    %c0_26 = arith.constant 0 : index
    %59 = vector.load %arg1[%c1_24, %c0_25, %c0_26] : memref<2x2048x128xbf16, #tpu.memory_space<vmem>>, vector<1x2048x128xbf16>
    %60 = vector.shape_cast %59 : vector<1x2048x128xbf16> to vector<2048x128xbf16>
    %cst_27 = arith.constant dense<0.000000e+00> : vector<4x128xf32>
    %61 = tpu.matmul %48, %60, %cst_27 {dimension_numbers = #tpu.dot_dimension_numbers<[1], [0], [0], [1], [0, 0, 1, 1], [], []>} : vector<4x2048xbf16>, vector<2048x128xbf16>, vector<4x128xf32> -> vector<4x128xf32>
    %62 = vector.extract_strided_slice %58 {offsets = [0, 0], sizes = [1, 128], strides = [1, 1]} : vector<8x128xf32> to vector<1x128xf32>
    %63 = vector.broadcast %62 : vector<1x128xf32> to vector<4x128xf32>
    %64 = arith.addf %61, %63 : vector<4x128xf32>
    %65 = vector.extract_strided_slice %64 {offsets = [0, 0], sizes = [4, 32], strides = [1, 1]} : vector<4x128xf32> to vector<4x32xf32>
    %66 = vector.extract_strided_slice %64 {offsets = [0, 32], sizes = [4, 32], strides = [1, 1]} : vector<4x128xf32> to vector<4x32xf32>
    %67 = math.tanh %65 : vector<4x32xf32>
    %cst_28 = arith.constant 0.000000e+00 : f32
    %68 = vector.broadcast %cst_28 : f32 to vector<4x32xf32>
    %69 = arith.subf %68, %66 : vector<4x32xf32>
    %70 = math.exp %69 : vector<4x32xf32>
    %cst_29 = arith.constant 1.000000e+00 : f32
    %71 = vector.broadcast %cst_29 : f32 to vector<4x32xf32>
    %72 = arith.addf %71, %70 : vector<4x32xf32>
    %73 = tpu.reciprocal %72 {approx = true} : vector<4x32xf32> -> vector<4x32xf32>
    %74 = arith.mulf %67, %73 : vector<4x32xf32>
    %75 = vector.extract_strided_slice %58 {offsets = [1, 0], sizes = [1, 32], strides = [1, 1]} : vector<8x128xf32> to vector<1x32xf32>
    %76 = vector.broadcast %75 : vector<1x32xf32> to vector<4x32xf32>
    %77 = arith.mulf %74, %76 : vector<4x32xf32>
    %cst_30 = arith.constant dense<0.000000e+00> : vector<4xf32>
    %78 = vector.multi_reduction <add>, %77, %cst_30 [1] : vector<4x32xf32> to vector<4xf32>
    %79 = vector.shape_cast %78 : vector<4xf32> to vector<4x1xf32>
    %c1_31 = arith.constant 1 : index
    %80 = memref.load %arg4[%c1_31] : memref<2xf32, #tpu.memory_space<smem>>
    %81 = vector.broadcast %80 : f32 to vector<4x1xf32>
    %82 = arith.addf %79, %81 : vector<4x1xf32>
    %cst_32 = arith.constant dense<0xFF800000> : vector<1xf32>
    %83 = vector.multi_reduction <maximumf>, %82, %cst_32 [0] : vector<4x1xf32> to vector<1xf32>
    %84 = vector.shape_cast %83 : vector<1xf32> to vector<1x1xf32>
    %85 = vector.broadcast %84 : vector<1x1xf32> to vector<4x1xf32>
    %86 = arith.subf %82, %85 : vector<4x1xf32>
    %87 = math.exp %86 : vector<4x1xf32>
    %cst_33 = arith.constant dense<0.000000e+00> : vector<1xf32>
    %88 = vector.multi_reduction <add>, %87, %cst_33 [0] : vector<4x1xf32> to vector<1xf32>
    %89 = vector.shape_cast %88 : vector<1xf32> to vector<1x1xf32>
    %90 = tpu.reciprocal %89 {approx = true} : vector<1x1xf32> -> vector<1x1xf32>
    %91 = vector.broadcast %90 : vector<1x1xf32> to vector<4x1xf32>
    %92 = arith.mulf %87, %91 : vector<4x1xf32>
    %93 = vector.broadcast %92 : vector<4x1xf32> to vector<4x2048xf32>
    %94 = arith.mulf %93, %47 : vector<4x2048xf32>
    %cst_34 = arith.constant dense<0.000000e+00> : vector<2048xf32>
    %95 = vector.multi_reduction <add>, %94, %cst_34 [0] : vector<4x2048xf32> to vector<2048xf32>
    %96 = vector.shape_cast %95 : vector<2048xf32> to vector<1x2048xf32>
    %97 = arith.truncf %96 : vector<1x2048xf32> to vector<1x2048xbf16>
    %c1_35 = arith.constant 1 : index
    %c0_36 = arith.constant 0 : index
    %c0_37 = arith.constant 0 : index
    %98 = vector.load %arg2[%c1_35, %c0_36, %c0_37] : memref<2x2048x128xbf16, #tpu.memory_space<vmem>>, vector<1x2048x128xbf16>
    %99 = vector.shape_cast %98 : vector<1x2048x128xbf16> to vector<2048x128xbf16>
    %cst_38 = arith.constant dense<0.000000e+00> : vector<1x128xf32>
    %100 = tpu.matmul %97, %99, %cst_38 {dimension_numbers = #tpu.dot_dimension_numbers<[1], [0], [0], [1], [0, 0, 1, 1], [], []>} : vector<1x2048xbf16>, vector<2048x128xbf16>, vector<1x128xf32> -> vector<1x128xf32>
    %c1_39 = arith.constant 1 : index
    %c0_40 = arith.constant 0 : index
    %c0_41 = arith.constant 0 : index
    %101 = vector.load %arg3[%c1_39, %c0_40, %c0_41] : memref<2x8x128xf32, #tpu.memory_space<vmem>>, vector<1x8x128xf32>
    %102 = vector.shape_cast %101 : vector<1x8x128xf32> to vector<8x128xf32>
    %103 = vector.extract_strided_slice %102 {offsets = [2, 0], sizes = [1, 128], strides = [1, 1]} : vector<8x128xf32> to vector<1x128xf32>
    %104 = arith.addf %100, %103 : vector<1x128xf32>
    %cst_42 = arith.constant 0.000000e+00 : f32
    %105 = vector.broadcast %cst_42 : f32 to vector<3x128xf32>
    %106 = tpu.concatenate %56, %104, %105 in 0 : vector<4x128xf32>, vector<1x128xf32>, vector<3x128xf32> -> vector<8x128xf32>
    %c0_43 = arith.constant 0 : index
    %c0_44 = arith.constant 0 : index
    %107 = vector.load %arg5[%c0_43, %c0_44] : memref<8x128xf32, #tpu.memory_space<vmem>>, vector<8x128xf32>
    tpu.vector_store %arg5[%c0_43, %c0_44], %106 {strides = array<i32>} : memref<8x128xf32, #tpu.memory_space<vmem>>, vector<8x128xf32>,
    return
  }
}

</mosaic_0001>

<llo_original>
// kernel: tpu_custom_call.1
$region0: #{tpu_custom_call.1}
  #allocation0 [shape = 'u32[]', space=smem, size = 0x4, offset = 0x4, fixed_abs, tag = 'smem constant byte address 0x4 - core index']
  #allocation1 [shape = 'u32[144,128]{1,0:T(1,128)}', space=vmem, size = 0x12000, scoped, tag = 'internal scratch']
  %s0 = inlined_call_operand.hbm [shape: bf16[32,2048], index: 0, kind: input, shape index: {}]
  %s1 = inlined_call_operand.hbm [shape: bf16[2,2048,128], index: 1, kind: input, shape index: {}]
  %s2 = inlined_call_operand.hbm [shape: bf16[2,2048,128], index: 2, kind: input, shape index: {}]
  %s3 = inlined_call_operand.hbm [shape: f32[2,8,128], index: 3, kind: input, shape index: {}]
  %s4 = inlined_call_operand.vmem [shape: f32[2], index: 4, kind: input, shape index: {}]
  %s5 = inlined_call_operand.hbm [shape: f32[8,128], index: 5, kind: output, shape index: {}]
  %s6 = sld [smem:[#allocation0]]
  $region50: #{tpu_custom_call.1} parent=0
    _
  %s8 = ssub.s32 1, %s6
  %s9 = scalar_select 0, %s8, %s6
  $region1: #{tpu_custom_call.1} parent=0
    #allocation2 [shape = 'u8[131072]{0}', space=vmem, size = 0x20000, scoped, tag = 'input window, operand 0, single buffered']
    #allocation3 [shape = 's32[1]{0}', space=sflag, size = 0x4, scoped, tag = 'scoped memory for tpu_custom_call.1']
    #allocation4 [shape = 's32[1]{0}', space=sflag, size = 0x4, scoped, tag = 'scoped memory for tpu_custom_call.1']
    #allocation5 [shape = 's32[1]{0}', space=sflag, size = 0x4, scoped, tag = 'scoped memory for tpu_custom_call.1']
    #allocation6 [shape = 'u8[1048576]{0}', space=vmem, size = 0x100000, scoped, tag = 'input window, operand 1, single buffered']
    #allocation7 [shape = 's32[1]{0}', space=sflag, size = 0x4, scoped, tag = 'scoped memory for tpu_custom_call.1']
    #allocation8 [shape = 'u8[1048576]{0}', space=vmem, size = 0x100000, scoped, tag = 'input window, operand 2, single buffered']
    #allocation9 [shape = 'u8[8192]{0}', space=vmem, size = 0x2000, scoped, tag = 'input window, operand 3, single buffered']
    #allocation10 [shape = 's32[1]{0}', space=sflag, size = 0x4, scoped, tag = 'scoped memory for tpu_custom_call.1']
    #allocation11 [shape = 'u8[512]{0}', space=smem, size = 0x200, scoped, tag = 'input window, operand 4, single buffered']
    #allocation12 [shape = 'u8[4096]{0}', space=vmem, size = 0x1000, scoped, tag = 'output window, operand 0, single buffered']
    %10 = vsyncpa [#allocation3], 0
    %11 = vsyncpa [#allocation7], 0
    %12 = vsyncpa [#allocation10], 0
    %13 = vsyncpa [#allocation5], 0
    %14 = vsyncpa [#allocation4], 0
    // Predicated region
    $region2: #{tpu_custom_call.1} parent=1 // pred_check
      _
    $region3: #{tpu_custom_call.1} parent=1 // pred_check_branch
      %16 = sbr.rel (0) target = $region5
    $region4: #{tpu_custom_call.1} parent=1 // pred_region
      %s18 = ssub.s32 4096, 4096
      %19 = vsyncadd [#allocation3], %s18
      %s20 = sshll.u32 [#allocation2], 4
      %s21 = int_to_ptr.vmem [resolvable:$true] %s20
      %26 = dma.hbm_to_vmem [thread:$0]  %s0, 4096, %s21, [#allocation3], 1024, 1024, 64
    $region5: #{tpu_custom_call.1} parent=1 // pred_fallthru
      _
    // Predicated region
    $region6: #{tpu_custom_call.1} parent=1 // pred_check
      _
    $region7: #{tpu_custom_call.1} parent=1 // pred_check_branch
      %28 = sbr.rel (0) target = $region9
    $region8: #{tpu_custom_call.1} parent=1 // pred_region
      %s30 = ssub.s32 32768, 32768
      %31 = vsyncadd [#allocation7], %s30
      %s32 = sshll.u32 [#allocation6], 4
      %s33 = int_to_ptr.vmem [resolvable:$true] %s32
      %38 = dma.hbm_to_vmem [thread:$0]  %s1, 32768, %s33, [#allocation7], 64, 64, 4
    $region9: #{tpu_custom_call.1} parent=1 // pred_fallthru
      _
    // Predicated region
    $region10: #{tpu_custom_call.1} parent=1 // pred_check
      _
    $region11: #{tpu_custom_call.1} parent=1 // pred_check_branch
      %40 = sbr.rel (0) target = $region13
    $region12: #{tpu_custom_call.1} parent=1 // pred_region
      %s42 = ssub.s32 32768, 32768
      %43 = vsyncadd [#allocation7], %s42
      %s44 = sshll.u32 [#allocation8], 4
      %s45 = int_to_ptr.vmem [resolvable:$true] %s44
      %50 = dma.hbm_to_vmem [thread:$0]  %s2, 32768, %s45, [#allocation7], 64, 64, 4
    $region13: #{tpu_custom_call.1} parent=1 // pred_fallthru
      _
    // Predicated region
    $region14: #{tpu_custom_call.1} parent=1 // pred_check
      _
    $region15: #{tpu_custom_call.1} parent=1 // pred_check_branch
      %52 = sbr.rel (0) target = $region17
    $region16: #{tpu_custom_call.1} parent=1 // pred_region
      %s54 = ssub.s32 256, 256
      %55 = vsyncadd [#allocation10], %s54
      %s56 = sshll.u32 [#allocation9], 4
      %s57 = int_to_ptr.vmem [resolvable:$true] %s56
      %62 = dma.hbm_to_vmem [thread:$0]  %s3, 256, %s57, [#allocation10], 128, 128, 8
    $region17: #{tpu_custom_call.1} parent=1 // pred_fallthru
      _
    // Predicated region
    $region18: #{tpu_custom_call.1} parent=1 // pred_check
      _
    $region19: #{tpu_custom_call.1} parent=1 // pred_check_branch
      %64 = sbr.rel (0) target = $region21
    $region20: #{tpu_custom_call.1} parent=1 // pred_region
      %s66 = ssub.s32 16, 16
      %67 = vsyncadd [#allocation5], %s66
      %s69 = sshll.u32 %s4, 4
      %s70 = int_to_ptr.vmem [resolvable:$true] %s69
      %72 = dma.vmem_to_smem %s70, 16, [#allocation11], [#allocation5]
    $region21: #{tpu_custom_call.1} parent=1 // pred_fallthru
      _
    // Predicated region
    $region22: #{tpu_custom_call.1} parent=1 // pred_check
      _
    $region23: #{tpu_custom_call.1} parent=1 // pred_check_branch
      %74 = sbr.rel (0) target = $region25
    $region24: #{tpu_custom_call.1} parent=1 // pred_region
      %75 = dma.done [#allocation3], 4096
    $region25: #{tpu_custom_call.1} parent=1 // pred_fallthru
      _
    // Predicated region
    $region26: #{tpu_custom_call.1} parent=1 // pred_check
      _
    $region27: #{tpu_custom_call.1} parent=1 // pred_check_branch
      %77 = sbr.rel (0) target = $region29
    $region28: #{tpu_custom_call.1} parent=1 // pred_region
      %78 = dma.done [#allocation7], 32768
    $region29: #{tpu_custom_call.1} parent=1 // pred_fallthru
      _
    // Predicated region
    $region30: #{tpu_custom_call.1} parent=1 // pred_check
      _
    $region31: #{tpu_custom_call.1} parent=1 // pred_check_branch
      %80 = sbr.rel (0) target = $region33
    $region32: #{tpu_custom_call.1} parent=1 // pred_region
      %81 = dma.done [#allocation7], 32768
    $region33: #{tpu_custom_call.1} parent=1 // pred_fallthru
      _
    // Predicated region
    $region34: #{tpu_custom_call.1} parent=1 // pred_check
      _
    $region35: #{tpu_custom_call.1} parent=1 // pred_check_branch
      %83 = sbr.rel (0) target = $region37
    $region36: #{tpu_custom_call.1} parent=1 // pred_region
      %84 = dma.done [#allocation10], 256
    $region37: #{tpu_custom_call.1} parent=1 // pred_fallthru
      _
    // Predicated region
    $region38: #{tpu_custom_call.1} parent=1 // pred_check
      _
    $region39: #{tpu_custom_call.1} parent=1 // pred_check_branch
      %86 = sbr.rel (0) target = $region41
    $region40: #{tpu_custom_call.1} parent=1 // pred_region
      %87 = dma.done [#allocation5], 16
    $region41: #{tpu_custom_call.1} parent=1 // pred_fallthru
      _
    %88 = sfence
    %v90 = vld [vmem:[#allocation2] sm:$0xff]
    %v91 = vld [vmem:[#allocation2 + $0x8] sm:$0xff]
    %v92 = vld [vmem:[#allocation2 + $0x10] sm:$0xff]
    %v93 = vld [vmem:[#allocation2 + $0x18] sm:$0xff]
    %v94 = vld [vmem:[#allocation2 + $0x20] sm:$0xff]
    %v95 = vld [vmem:[#allocation2 + $0x28] sm:$0xff]
    %v96 = vld [vmem:[#allocation2 + $0x30] sm:$0xff]
    %v97 = vld [vmem:[#allocation2 + $0x38] sm:$0xff]
    %v98 = vld [vmem:[#allocation2 + $0x40] sm:$0xff]
    %v99 = vld [vmem:[#allocation2 + $0x48] sm:$0xff]
    %v100 = vld [vmem:[#allocation2 + $0x50] sm:$0xff]
    %v101 = vld [vmem:[#allocation2 + $0x58] sm:$0xff]
    %v102 = vld [vmem:[#allocation2 + $0x60] sm:$0xff]
    %v103 = vld [vmem:[#allocation2 + $0x68] sm:$0xff]
    %v104 = vld [vmem:[#allocation2 + $0x70] sm:$0xff]
    %v105 = vld [vmem:[#allocation2 + $0x78] sm:$0xff]
    %v106 = vld [vmem:[#allocation2 + $0x80] sm:$0xff]
    %v107 = vld [vmem:[#allocation2 + $0x88] sm:$0xff]
    %v108 = vld [vmem:[#allocation2 + $0x90] sm:$0xff]
    %v109 = vld [vmem:[#allocation2 + $0x98] sm:$0xff]
    %v110 = vld [vmem:[#allocation2 + $0xa0] sm:$0xff]
    %v111 = vld [vmem:[#allocation2 + $0xa8] sm:$0xff]
    %v112 = vld [vmem:[#allocation2 + $0xb0] sm:$0xff]
    %v113 = vld [vmem:[#allocation2 + $0xb8] sm:$0xff]
    %v114 = vld [vmem:[#allocation2 + $0xc0] sm:$0xff]
    %v115 = vld [vmem:[#allocation2 + $0xc8] sm:$0xff]
    %v116 = vld [vmem:[#allocation2 + $0xd0] sm:$0xff]
    %v117 = vld [vmem:[#allocation2 + $0xd8] sm:$0xff]
    %v118 = vld [vmem:[#allocation2 + $0xe0] sm:$0xff]
    %v119 = vld [vmem:[#allocation2 + $0xe8] sm:$0xff]
    %v120 = vld [vmem:[#allocation2 + $0xf0] sm:$0xff]
    %v121 = vld [vmem:[#allocation2 + $0xf8] sm:$0xff]
    %v122 = vunpack.c.l.bf16 %v90
    %v123 = vunpack.c.h.bf16 %v90
    %v124 = vunpack.c.l.bf16 %v91
    %v125 = vunpack.c.h.bf16 %v91
    %v126 = vunpack.c.l.bf16 %v92
    %v127 = vunpack.c.h.bf16 %v92
    %v128 = vunpack.c.l.bf16 %v93
    %v129 = vunpack.c.h.bf16 %v93
    %v130 = vunpack.c.l.bf16 %v94
    %v131 = vunpack.c.h.bf16 %v94
    %v132 = vunpack.c.l.bf16 %v95
    %v133 = vunpack.c.h.bf16 %v95
    %v134 = vunpack.c.l.bf16 %v96
    %v135 = vunpack.c.h.bf16 %v96
    %v136 = vunpack.c.l.bf16 %v97
    %v137 = vunpack.c.h.bf16 %v97
    %v138 = vunpack.c.l.bf16 %v98
    %v139 = vunpack.c.h.bf16 %v98
    %v140 = vunpack.c.l.bf16 %v99
    %v141 = vunpack.c.h.bf16 %v99
    %v142 = vunpack.c.l.bf16 %v100
    %v143 = vunpack.c.h.bf16 %v100
    %v144 = vunpack.c.l.bf16 %v101
    %v145 = vunpack.c.h.bf16 %v101
    %v146 = vunpack.c.l.bf16 %v102
    %v147 = vunpack.c.h.bf16 %v102
    %v148 = vunpack.c.l.bf16 %v103
    %v149 = vunpack.c.h.bf16 %v103
    %v150 = vunpack.c.l.bf16 %v104
    %v151 = vunpack.c.h.bf16 %v104
    %v152 = vunpack.c.l.bf16 %v105
    %v153 = vunpack.c.h.bf16 %v105
    %v154 = vunpack.c.l.bf16 %v106
    %v155 = vunpack.c.h.bf16 %v106
    %v156 = vunpack.c.l.bf16 %v107
    %v157 = vunpack.c.h.bf16 %v107
    %v158 = vunpack.c.l.bf16 %v108
    %v159 = vunpack.c.h.bf16 %v108
    %v160 = vunpack.c.l.bf16 %v109
    %v161 = vunpack.c.h.bf16 %v109
    %v162 = vunpack.c.l.bf16 %v110
    %v163 = vunpack.c.h.bf16 %v110
    %v164 = vunpack.c.l.bf16 %v111
    %v165 = vunpack.c.h.bf16 %v111
    %v166 = vunpack.c.l.bf16 %v112
    %v167 = vunpack.c.h.bf16 %v112
    %v168 = vunpack.c.l.bf16 %v113
    %v169 = vunpack.c.h.bf16 %v113
    %v170 = vunpack.c.l.bf16 %v114
    %v171 = vunpack.c.h.bf16 %v114
    %v172 = vunpack.c.l.bf16 %v115
    %v173 = vunpack.c.h.bf16 %v115
    %v174 = vunpack.c.l.bf16 %v116
    %v175 = vunpack.c.h.bf16 %v116
    %v176 = vunpack.c.l.bf16 %v117
    %v177 = vunpack.c.h.bf16 %v117
    %v178 = vunpack.c.l.bf16 %v118
    %v179 = vunpack.c.h.bf16 %v118
    %v180 = vunpack.c.l.bf16 %v119
    %v181 = vunpack.c.h.bf16 %v119
    %v182 = vunpack.c.l.bf16 %v120
    %v183 = vunpack.c.h.bf16 %v120
    %v184 = vunpack.c.l.bf16 %v121
    %v185 = vunpack.c.h.bf16 %v121
    %v186 = vld [vmem:[#allocation9] sm:$0xff]
    %v187 = vld [vmem:[#allocation6] sm:$0xf]
    %v188 = vld [vmem:[#allocation6 + $0x4] sm:$0xf]
    %v189 = vld [vmem:[#allocation6 + $0x8] sm:$0xf]
    %v190 = vld [vmem:[#allocation6 + $0xc] sm:$0xf]
    %v191 = vld [vmem:[#allocation6 + $0x10] sm:$0xf]
    %v192 = vld [vmem:[#allocation6 + $0x14] sm:$0xf]
    %v193 = vld [vmem:[#allocation6 + $0x18] sm:$0xf]
    %v194 = vld [vmem:[#allocation6 + $0x1c] sm:$0xf]
    %v195 = vld [vmem:[#allocation6 + $0x20] sm:$0xf]
    %v196 = vld [vmem:[#allocation6 + $0x24] sm:$0xf]
    %v197 = vld [vmem:[#allocation6 + $0x28] sm:$0xf]
    %v198 = vld [vmem:[#allocation6 + $0x2c] sm:$0xf]
    %v199 = vld [vmem:[#allocation6 + $0x30] sm:$0xf]
    %v200 = vld [vmem:[#allocation6 + $0x34] sm:$0xf]
    %v201 = vld [vmem:[#allocation6 + $0x38] sm:$0xf]
    %v202 = vld [vmem:[#allocation6 + $0x3c] sm:$0xf]
    %v203 = vld [vmem:[#allocation6 + $0x40] sm:$0xf]
    %v204 = vld [vmem:[#allocation6 + $0x44] sm:$0xf]
    %v205 = vld [vmem:[#allocation6 + $0x48] sm:$0xf]
    %v206 = vld [vmem:[#allocation6 + $0x4c] sm:$0xf]
    %v207 = vld [vmem:[#allocation6 + $0x50] sm:$0xf]
    %v208 = vld [vmem:[#allocation6 + $0x54] sm:$0xf]
    %v209 = vld [vmem:[#allocation6 + $0x58] sm:$0xf]
    %v210 = vld [vmem:[#allocation6 + $0x5c] sm:$0xf]
    %v211 = vld [vmem:[#allocation6 + $0x60] sm:$0xf]
    %v212 = vld [vmem:[#allocation6 + $0x64] sm:$0xf]
    %v213 = vld [vmem:[#allocation6 + $0x68] sm:$0xf]
    %v214 = vld [vmem:[#allocation6 + $0x6c] sm:$0xf]
    %v215 = vld [vmem:[#allocation6 + $0x70] sm:$0xf]
    %v216 = vld [vmem:[#allocation6 + $0x74] sm:$0xf]
    %v217 = vld [vmem:[#allocation6 + $0x78] sm:$0xf]
    %v218 = vld [vmem:[#allocation6 + $0x7c] sm:$0xf]
    %v219 = vld [vmem:[#allocation6 + $0x80] sm:$0xf]
    %v220 = vld [vmem:[#allocation6 + $0x84] sm:$0xf]
    %v221 = vld [vmem:[#allocation6 + $0x88] sm:$0xf]
    %v222 = vld [vmem:[#allocation6 + $0x8c] sm:$0xf]
    %v223 = vld [vmem:[#allocation6 + $0x90] sm:$0xf]
    %v224 = vld [vmem:[#allocation6 + $0x94] sm:$0xf]
    %v225 = vld [vmem:[#allocation6 + $0x98] sm:$0xf]
    %v226 = vld [vmem:[#allocation6 + $0x9c] sm:$0xf]
    %v227 = vld [vmem:[#allocation6 + $0xa0] sm:$0xf]
    %v228 = vld [vmem:[#allocation6 + $0xa4] sm:$0xf]
    %v229 = vld [vmem:[#allocation6 + $0xa8] sm:$0xf]
    %v230 = vld [vmem:[#allocation6 + $0xac] sm:$0xf]
    %v231 = vld [vmem:[#allocation6 + $0xb0] sm:$0xf]
    %v232 = vld [vmem:[#allocation6 + $0xb4] sm:$0xf]
    %v233 = vld [vmem:[#allocation6 + $0xb8] sm:$0xf]
    %v234 = vld [vmem:[#allocation6 + $0xbc] sm:$0xf]
    %v235 = vld [vmem:[#allocation6 + $0xc0] sm:$0xf]
    %v236 = vld [vmem:[#allocation6 + $0xc4] sm:$0xf]
    %v237 = vld [vmem:[#allocation6 + $0xc8] sm:$0xf]
    %v238 = vld [vmem:[#allocation6 + $0xcc] sm:$0xf]
    %v239 = vld [vmem:[#allocation6 + $0xd0] sm:$0xf]
    %v240 = vld [vmem:[#allocation6 + $0xd4] sm:$0xf]
    %v241 = vld [vmem:[#allocation6 + $0xd8] sm:$0xf]
    %v242 = vld [vmem:[#allocation6 + $0xdc] sm:$0xf]
    %v243 = vld [vmem:[#allocation6 + $0xe0] sm:$0xf]
    %v244 = vld [vmem:[#allocation6 + $0xe4] sm:$0xf]
    %v245 = vld [vmem:[#allocation6 + $0xe8] sm:$0xf]
    %v246 = vld [vmem:[#allocation6 + $0xec] sm:$0xf]
    %v247 = vld [vmem:[#allocation6 + $0xf0] sm:$0xf]
    %v248 = vld [vmem:[#allocation6 + $0xf4] sm:$0xf]
    %v249 = vld [vmem:[#allocation6 + $0xf8] sm:$0xf]
    %v250 = vld [vmem:[#allocation6 + $0xfc] sm:$0xf]
    %v251 = vld [vmem:[#allocation6 + $0x100] sm:$0xf]
    %v252 = vld [vmem:[#allocation6 + $0x104] sm:$0xf]
    %v253 = vld [vmem:[#allocation6 + $0x108] sm:$0xf]
    %v254 = vld [vmem:[#allocation6 + $0x10c] sm:$0xf]
    %v255 = vld [vmem:[#allocation6 + $0x110] sm:$0xf]
    %v256 = vld [vmem:[#allocation6 + $0x114] sm:$0xf]
    %v257 = vld [vmem:[#allocation6 + $0x118] sm:$0xf]
    %v258 = vld [vmem:[#allocation6 + $0x11c] sm:$0xf]
    %v259 = vld [vmem:[#allocation6 + $0x120] sm:$0xf]
    %v260 = vld [vmem:[#allocation6 + $0x124] sm:$0xf]
    %v261 = vld [vmem:[#allocation6 + $0x128] sm:$0xf]
    %v262 = vld [vmem:[#allocation6 + $0x12c] sm:$0xf]
    %v263 = vld [vmem:[#allocation6 + $0x130] sm:$0xf]
    %v264 = vld [vmem:[#allocation6 + $0x134] sm:$0xf]
    %v265 = vld [vmem:[#allocation6 + $0x138] sm:$0xf]
    %v266 = vld [vmem:[#allocation6 + $0x13c] sm:$0xf]
    %v267 = vld [vmem:[#allocation6 + $0x140] sm:$0xf]
    %v268 = vld [vmem:[#allocation6 + $0x144] sm:$0xf]
    %v269 = vld [vmem:[#allocation6 + $0x148] sm:$0xf]
    %v270 = vld [vmem:[#allocation6 + $0x14c] sm:$0xf]
    %v271 = vld [vmem:[#allocation6 + $0x150] sm:$0xf]
    %v272 = vld [vmem:[#allocation6 + $0x154] sm:$0xf]
    %v273 = vld [vmem:[#allocation6 + $0x158] sm:$0xf]
    %v274 = vld [vmem:[#allocation6 + $0x15c] sm:$0xf]
    %v275 = vld [vmem:[#allocation6 + $0x160] sm:$0xf]
    %v276 = vld [vmem:[#allocation6 + $0x164] sm:$0xf]
    %v277 = vld [vmem:[#allocation6 + $0x168] sm:$0xf]
    %v278 = vld [vmem:[#allocation6 + $0x16c] sm:$0xf]
    %v279 = vld [vmem:[#allocation6 + $0x170] sm:$0xf]
    %v280 = vld [vmem:[#allocation6 + $0x174] sm:$0xf]
    %v281 = vld [vmem:[#allocation6 + $0x178] sm:$0xf]
    %v282 = vld [vmem:[#allocation6 + $0x17c] sm:$0xf]
    %v283 = vld [vmem:[#allocation6 + $0x180] sm:$0xf]
    %v284 = vld [vmem:[#allocation6 + $0x184] sm:$0xf]
    %v285 = vld [vmem:[#allocation6 + $0x188] sm:$0xf]
    %v286 = vld [vmem:[#allocation6 + $0x18c] sm:$0xf]
    %v287 = vld [vmem:[#allocation6 + $0x190] sm:$0xf]
    %v288 = vld [vmem:[#allocation6 + $0x194] sm:$0xf]
    %v289 = vld [vmem:[#allocation6 + $0x198] sm:$0xf]
    %v290 = vld [vmem:[#allocation6 + $0x19c] sm:$0xf]
    %v291 = vld [vmem:[#allocation6 + $0x1a0] sm:$0xf]
    %v292 = vld [vmem:[#allocation6 + $0x1a4] sm:$0xf]
    %v293 = vld [vmem:[#allocation6 + $0x1a8] sm:$0xf]
    %v294 = vld [vmem:[#allocation6 + $0x1ac] sm:$0xf]
    %v295 = vld [vmem:[#allocation6 + $0x1b0] sm:$0xf]
    %v296 = vld [vmem:[#allocation6 + $0x1b4] sm:$0xf]
    %v297 = vld [vmem:[#allocation6 + $0x1b8] sm:$0xf]
    %v298 = vld [vmem:[#allocation6 + $0x1bc] sm:$0xf]
    %v299 = vld [vmem:[#allocation6 + $0x1c0] sm:$0xf]
    %v300 = vld [vmem:[#allocation6 + $0x1c4] sm:$0xf]
    %v301 = vld [vmem:[#allocation6 + $0x1c8] sm:$0xf]
    %v302 = vld [vmem:[#allocation6 + $0x1cc] sm:$0xf]
    %v303 = vld [vmem:[#allocation6 + $0x1d0] sm:$0xf]
    %v304 = vld [vmem:[#allocation6 + $0x1d4] sm:$0xf]
    %v305 = vld [vmem:[#allocation6 + $0x1d8] sm:$0xf]
    %v306 = vld [vmem:[#allocation6 + $0x1dc] sm:$0xf]
    %v307 = vld [vmem:[#allocation6 + $0x1e0] sm:$0xf]
    %v308 = vld [vmem:[#allocation6 + $0x1e4] sm:$0xf]
    %v309 = vld [vmem:[#allocation6 + $0x1e8] sm:$0xf]
    %v310 = vld [vmem:[#allocation6 + $0x1ec] sm:$0xf]
    %v311 = vld [vmem:[#allocation6 + $0x1f0] sm:$0xf]
    %v312 = vld [vmem:[#allocation6 + $0x1f4] sm:$0xf]
    %v313 = vld [vmem:[#allocation6 + $0x1f8] sm:$0xf]
    %v314 = vld [vmem:[#allocation6 + $0x1fc] sm:$0xf]
    %v315 = vld [vmem:[#allocation6 + $0x200] sm:$0xf]
    %v316 = vld [vmem:[#allocation6 + $0x204] sm:$0xf]
    %v317 = vld [vmem:[#allocation6 + $0x208] sm:$0xf]
    %v318 = vld [vmem:[#allocation6 + $0x20c] sm:$0xf]
    %v319 = vld [vmem:[#allocation6 + $0x210] sm:$0xf]
    %v320 = vld [vmem:[#allocation6 + $0x214] sm:$0xf]
    %v321 = vld [vmem:[#allocation6 + $0x218] sm:$0xf]
    %v322 = vld [vmem:[#allocation6 + $0x21c] sm:$0xf]
    %v323 = vld [vmem:[#allocation6 + $0x220] sm:$0xf]
    %v324 = vld [vmem:[#allocation6 + $0x224] sm:$0xf]
    %v325 = vld [vmem:[#allocation6 + $0x228] sm:$0xf]
    %v326 = vld [vmem:[#allocation6 + $0x22c] sm:$0xf]
    %v327 = vld [vmem:[#allocation6 + $0x230] sm:$0xf]
    %v328 = vld [vmem:[#allocation6 + $0x234] sm:$0xf]
    %v329 = vld [vmem:[#allocation6 + $0x238] sm:$0xf]
    %v330 = vld [vmem:[#allocation6 + $0x23c] sm:$0xf]
    %v331 = vld [vmem:[#allocation6 + $0x240] sm:$0xf]
    %v332 = vld [vmem:[#allocation6 + $0x244] sm:$0xf]
    %v333 = vld [vmem:[#allocation6 + $0x248] sm:$0xf]
    %v334 = vld [vmem:[#allocation6 + $0x24c] sm:$0xf]
    %v335 = vld [vmem:[#allocation6 + $0x250] sm:$0xf]
    %v336 = vld [vmem:[#allocation6 + $0x254] sm:$0xf]
    %v337 = vld [vmem:[#allocation6 + $0x258] sm:$0xf]
    %v338 = vld [vmem:[#allocation6 + $0x25c] sm:$0xf]
    %v339 = vld [vmem:[#allocation6 + $0x260] sm:$0xf]
    %v340 = vld [vmem:[#allocation6 + $0x264] sm:$0xf]
    %v341 = vld [vmem:[#allocation6 + $0x268] sm:$0xf]
    %v342 = vld [vmem:[#allocation6 + $0x26c] sm:$0xf]
    %v343 = vld [vmem:[#allocation6 + $0x270] sm:$0xf]
    %v344 = vld [vmem:[#allocation6 + $0x274] sm:$0xf]
    %v345 = vld [vmem:[#allocation6 + $0x278] sm:$0xf]
    %v346 = vld [vmem:[#allocation6 + $0x27c] sm:$0xf]
    %v347 = vld [vmem:[#allocation6 + $0x280] sm:$0xf]
    %v348 = vld [vmem:[#allocation6 + $0x284] sm:$0xf]
    %v349 = vld [vmem:[#allocation6 + $0x288] sm:$0xf]
    %v350 = vld [vmem:[#allocation6 + $0x28c] sm:$0xf]
    %v351 = vld [vmem:[#allocation6 + $0x290] sm:$0xf]
    %v352 = vld [vmem:[#allocation6 + $0x294] sm:$0xf]
    %v353 = vld [vmem:[#allocation6 + $0x298] sm:$0xf]
    %v354 = vld [vmem:[#allocation6 + $0x29c] sm:$0xf]
    %v355 = vld [vmem:[#allocation6 + $0x2a0] sm:$0xf]
    %v356 = vld [vmem:[#allocation6 + $0x2a4] sm:$0xf]
    %v357 = vld [vmem:[#allocation6 + $0x2a8] sm:$0xf]
    %v358 = vld [vmem:[#allocation6 + $0x2ac] sm:$0xf]
    %v359 = vld [vmem:[#allocation6 + $0x2b0] sm:$0xf]
    %v360 = vld [vmem:[#allocation6 + $0x2b4] sm:$0xf]
    %v361 = vld [vmem:[#allocation6 + $0x2b8] sm:$0xf]
    %v362 = vld [vmem:[#allocation6 + $0x2bc] sm:$0xf]
    %v363 = vld [vmem:[#allocation6 + $0x2c0] sm:$0xf]
    %v364 = vld [vmem:[#allocation6 + $0x2c4] sm:$0xf]
    %v365 = vld [vmem:[#allocation6 + $0x2c8] sm:$0xf]
    %v366 = vld [vmem:[#allocation6 + $0x2cc] sm:$0xf]
    %v367 = vld [vmem:[#allocation6 + $0x2d0] sm:$0xf]
    %v368 = vld [vmem:[#allocation6 + $0x2d4] sm:$0xf]
    %v369 = vld [vmem:[#allocation6 + $0x2d8] sm:$0xf]
    %v370 = vld [vmem:[#allocation6 + $0x2dc] sm:$0xf]
    %v371 = vld [vmem:[#allocation6 + $0x2e0] sm:$0xf]
    %v372 = vld [vmem:[#allocation6 + $0x2e4] sm:$0xf]
    %v373 = vld [vmem:[#allocation6 + $0x2e8] sm:$0xf]
    %v374 = vld [vmem:[#allocation6 + $0x2ec] sm:$0xf]
    %v375 = vld [vmem:[#allocation6 + $0x2f0] sm:$0xf]
    %v376 = vld [vmem:[#allocation6 + $0x2f4] sm:$0xf]
    %v377 = vld [vmem:[#allocation6 + $0x2f8] sm:$0xf]
    %v378 = vld [vmem:[#allocation6 + $0x2fc] sm:$0xf]
    %v379 = vld [vmem:[#allocation6 + $0x300] sm:$0xf]
    %v380 = vld [vmem:[#allocation6 + $0x304] sm:$0xf]
    %v381 = vld [vmem:[#allocation6 + $0x308] sm:$0xf]
    %v382 = vld [vmem:[#allocation6 + $0x30c] sm:$0xf]
    %v383 = vld [vmem:[#allocation6 + $0x310] sm:$0xf]
    %v384 = vld [vmem:[#allocation6 + $0x314] sm:$0xf]
    %v385 = vld [vmem:[#allocation6 + $0x318] sm:$0xf]
    %v386 = vld [vmem:[#allocation6 + $0x31c] sm:$0xf]
    %v387 = vld [vmem:[#allocation6 + $0x320] sm:$0xf]
    %v388 = vld [vmem:[#allocation6 + $0x324] sm:$0xf]
    %v389 = vld [vmem:[#allocation6 + $0x328] sm:$0xf]
    %v390 = vld [vmem:[#allocation6 + $0x32c] sm:$0xf]
    %v391 = vld [vmem:[#allocation6 + $0x330] sm:$0xf]
    %v392 = vld [vmem:[#allocation6 + $0x334] sm:$0xf]
    %v393 = vld [vmem:[#allocation6 + $0x338] sm:$0xf]
    %v394 = vld [vmem:[#allocation6 + $0x33c] sm:$0xf]
    %v395 = vld [vmem:[#allocation6 + $0x340] sm:$0xf]
    %v396 = vld [vmem:[#allocation6 + $0x344] sm:$0xf]
    %v397 = vld [vmem:[#allocation6 + $0x348] sm:$0xf]
    %v398 = vld [vmem:[#allocation6 + $0x34c] sm:$0xf]
    %v399 = vld [vmem:[#allocation6 + $0x350] sm:$0xf]
    %v400 = vld [vmem:[#allocation6 + $0x354] sm:$0xf]
    %v401 = vld [vmem:[#allocation6 + $0x358] sm:$0xf]
    %v402 = vld [vmem:[#allocation6 + $0x35c] sm:$0xf]
    %v403 = vld [vmem:[#allocation6 + $0x360] sm:$0xf]
    %v404 = vld [vmem:[#allocation6 + $0x364] sm:$0xf]
    %v405 = vld [vmem:[#allocation6 + $0x368] sm:$0xf]
    %v406 = vld [vmem:[#allocation6 + $0x36c] sm:$0xf]
    %v407 = vld [vmem:[#allocation6 + $0x370] sm:$0xf]
    %v408 = vld [vmem:[#allocation6 + $0x374] sm:$0xf]
    %v409 = vld [vmem:[#allocation6 + $0x378] sm:$0xf]
    %v410 = vld [vmem:[#allocation6 + $0x37c] sm:$0xf]
    %v411 = vld [vmem:[#allocation6 + $0x380] sm:$0xf]
    %v412 = vld [vmem:[#allocation6 + $0x384] sm:$0xf]
    %v413 = vld [vmem:[#allocation6 + $0x388] sm:$0xf]
    %v414 = vld [vmem:[#allocation6 + $0x38c] sm:$0xf]
    %v415 = vld [vmem:[#allocation6 + $0x390] sm:$0xf]
    %v416 = vld [vmem:[#allocation6 + $0x394] sm:$0xf]
    %v417 = vld [vmem:[#allocation6 + $0x398] sm:$0xf]
    %v418 = vld [vmem:[#allocation6 + $0x39c] sm:$0xf]
    %v419 = vld [vmem:[#allocation6 + $0x3a0] sm:$0xf]
    %v420 = vld [vmem:[#allocation6 + $0x3a4] sm:$0xf]
    %v421 = vld [vmem:[#allocation6 + $0x3a8] sm:$0xf]
    %v422 = vld [vmem:[#allocation6 + $0x3ac] sm:$0xf]
    %v423 = vld [vmem:[#allocation6 + $0x3b0] sm:$0xf]
    %v424 = vld [vmem:[#allocation6 + $0x3b4] sm:$0xf]
    %v425 = vld [vmem:[#allocation6 + $0x3b8] sm:$0xf]
    %v426 = vld [vmem:[#allocation6 + $0x3bc] sm:$0xf]
    %v427 = vld [vmem:[#allocation6 + $0x3c0] sm:$0xf]
    %v428 = vld [vmem:[#allocation6 + $0x3c4] sm:$0xf]
    %v429 = vld [vmem:[#allocation6 + $0x3c8] sm:$0xf]
    %v430 = vld [vmem:[#allocation6 + $0x3cc] sm:$0xf]
    %v431 = vld [vmem:[#allocation6 + $0x3d0] sm:$0xf]
    %v432 = vld [vmem:[#allocation6 + $0x3d4] sm:$0xf]
    %v433 = vld [vmem:[#allocation6 + $0x3d8] sm:$0xf]
    %v434 = vld [vmem:[#allocation6 + $0x3dc] sm:$0xf]
    %v435 = vld [vmem:[#allocation6 + $0x3e0] sm:$0xf]
    %v436 = vld [vmem:[#allocation6 + $0x3e4] sm:$0xf]
    %v437 = vld [vmem:[#allocation6 + $0x3e8] sm:$0xf]
    %v438 = vld [vmem:[#allocation6 + $0x3ec] sm:$0xf]
    %v439 = vld [vmem:[#allocation6 + $0x3f0] sm:$0xf]
    %v440 = vld [vmem:[#allocation6 + $0x3f4] sm:$0xf]
    %v441 = vld [vmem:[#allocation6 + $0x3f8] sm:$0xf]
    %v442 = vld [vmem:[#allocation6 + $0x3fc] sm:$0xf]
    %v443 = vlaneseq
    %v444 = vshrl.u32 %v443, 7
    %v445 = vsub.s32 0, %v444
    %v446 = vrot.slane %v186, %v445
    %v479 = vunpack.c.l.b16 %v90
    %v480 = vunpack.c.h.b16 %v90
    %v481 = vunpack.c.l.b16 %v91
    %v482 = vunpack.c.h.b16 %v91
    %v483 = vunpack.c.l.b16 %v92
    %v484 = vunpack.c.h.b16 %v92
    %v485 = vunpack.c.l.b16 %v93
    %v486 = vunpack.c.h.b16 %v93
    %v487 = vunpack.c.l.b16 %v94
    %v488 = vunpack.c.h.b16 %v94
    %v489 = vunpack.c.l.b16 %v95
    %v490 = vunpack.c.h.b16 %v95
    %v491 = vunpack.c.l.b16 %v96
    %v492 = vunpack.c.h.b16 %v96
    %v493 = vunpack.c.l.b16 %v97
    %v494 = vunpack.c.h.b16 %v97
    %v495 = vunpack.c.l.b16 %v98
    %v496 = vunpack.c.h.b16 %v98
    %v497 = vunpack.c.l.b16 %v99
    %v498 = vunpack.c.h.b16 %v99
    %v499 = vunpack.c.l.b16 %v100
    %v500 = vunpack.c.h.b16 %v100
    %v501 = vunpack.c.l.b16 %v101
    %v502 = vunpack.c.h.b16 %v101
    %v503 = vunpack.c.l.b16 %v102
    %v504 = vunpack.c.h.b16 %v102
    %v505 = vunpack.c.l.b16 %v103
    %v506 = vunpack.c.h.b16 %v103
    %v507 = vunpack.c.l.b16 %v104
    %v508 = vunpack.c.h.b16 %v104
    %v509 = vunpack.c.l.b16 %v105
    %v510 = vunpack.c.h.b16 %v105
    %v511 = vunpack.c.l.b16 %v106
    %v512 = vunpack.c.h.b16 %v106
    %v513 = vunpack.c.l.b16 %v107
    %v514 = vunpack.c.h.b16 %v107
    %v515 = vunpack.c.l.b16 %v108
    %v516 = vunpack.c.h.b16 %v108
    %v517 = vunpack.c.l.b16 %v109
    %v518 = vunpack.c.h.b16 %v109
    %v519 = vunpack.c.l.b16 %v110
    %v520 = vunpack.c.h.b16 %v110
    %v521 = vunpack.c.l.b16 %v111
    %v522 = vunpack.c.h.b16 %v111
    %v523 = vunpack.c.l.b16 %v112
    %v524 = vunpack.c.h.b16 %v112
    %v525 = vunpack.c.l.b16 %v113
    %v526 = vunpack.c.h.b16 %v113
    %v527 = vunpack.c.l.b16 %v114
    %v528 = vunpack.c.h.b16 %v114
    %v529 = vunpack.c.l.b16 %v115
    %v530 = vunpack.c.h.b16 %v115
    %v531 = vunpack.c.l.b16 %v116
    %v532 = vunpack.c.h.b16 %v116
    %v533 = vunpack.c.l.b16 %v117
    %v534 = vunpack.c.h.b16 %v117
    %v535 = vunpack.c.l.b16 %v118
    %v536 = vunpack.c.h.b16 %v118
    %v537 = vunpack.c.l.b16 %v119
    %v538 = vunpack.c.h.b16 %v119
    %v539 = vunpack.c.l.b16 %v120
    %v540 = vunpack.c.h.b16 %v120
    %v541 = vunpack.c.l.b16 %v121
    %v542 = vunpack.c.h.b16 %v121
    %v543 = vpack.c.b16 %v495, %v479
    %v544 = vpack.c.b16 %v496, %v480
    %v545 = vpack.c.b16 %v497, %v481
    %v546 = vpack.c.b16 %v498, %v482
    %v547 = vpack.c.b16 %v499, %v483
    %v548 = vpack.c.b16 %v500, %v484
    %v549 = vpack.c.b16 %v501, %v485
    %v550 = vpack.c.b16 %v502, %v486
    %v551 = vpack.c.b16 %v503, %v487
    %v552 = vpack.c.b16 %v504, %v488
    %v553 = vpack.c.b16 %v505, %v489
    %v554 = vpack.c.b16 %v506, %v490
    %v555 = vpack.c.b16 %v507, %v491
    %v556 = vpack.c.b16 %v508, %v492
    %v557 = vpack.c.b16 %v509, %v493
    %v558 = vpack.c.b16 %v510, %v494
    %v559 = vpack.c.b16 %v527, %v511
    %v560 = vpack.c.b16 %v528, %v512
    %v561 = vpack.c.b16 %v529, %v513
    %v562 = vpack.c.b16 %v530, %v514
    %v563 = vpack.c.b16 %v531, %v515
    %v564 = vpack.c.b16 %v532, %v516
    %v565 = vpack.c.b16 %v533, %v517
    %v566 = vpack.c.b16 %v534, %v518
    %v567 = vpack.c.b16 %v535, %v519
    %v568 = vpack.c.b16 %v536, %v520
    %v569 = vpack.c.b16 %v537, %v521
    %v570 = vpack.c.b16 %v538, %v522
    %v571 = vpack.c.b16 %v539, %v523
    %v572 = vpack.c.b16 %v540, %v524
    %v573 = vpack.c.b16 %v541, %v525
    %v574 = vpack.c.b16 %v542, %v526
    %v863 = vunpack.c.l.b16 %v187
    %v864 = vunpack.c.l.b16 %v188
    %v865 = vunpack.c.l.b16 %v189
    %v866 = vunpack.c.l.b16 %v190
    %v867 = vunpack.c.l.b16 %v191
    %v868 = vunpack.c.l.b16 %v192
    %v869 = vunpack.c.l.b16 %v193
    %v870 = vunpack.c.l.b16 %v194
    %v871 = vunpack.c.l.b16 %v195
    %v872 = vunpack.c.l.b16 %v196
    %v873 = vunpack.c.l.b16 %v197
    %v874 = vunpack.c.l.b16 %v198
    %v875 = vunpack.c.l.b16 %v199
    %v876 = vunpack.c.l.b16 %v200
    %v877 = vunpack.c.l.b16 %v201
    %v878 = vunpack.c.l.b16 %v202
    %v879 = vunpack.c.l.b16 %v203
    %v880 = vunpack.c.l.b16 %v204
    %v881 = vunpack.c.l.b16 %v205
    %v882 = vunpack.c.l.b16 %v206
    %v883 = vunpack.c.l.b16 %v207
    %v884 = vunpack.c.l.b16 %v208
    %v885 = vunpack.c.l.b16 %v209
    %v886 = vunpack.c.l.b16 %v210
    %v887 = vunpack.c.l.b16 %v211
    %v888 = vunpack.c.l.b16 %v212
    %v889 = vunpack.c.l.b16 %v213
    %v890 = vunpack.c.l.b16 %v214
    %v891 = vunpack.c.l.b16 %v215
    %v892 = vunpack.c.l.b16 %v216
    %v893 = vunpack.c.l.b16 %v217
    %v894 = vunpack.c.l.b16 %v218
    %v895 = vunpack.c.l.b16 %v219
    %v896 = vunpack.c.l.b16 %v220
    %v897 = vunpack.c.l.b16 %v221
    %v898 = vunpack.c.l.b16 %v222
    %v899 = vunpack.c.l.b16 %v223
    %v900 = vunpack.c.l.b16 %v224
    %v901 = vunpack.c.l.b16 %v225
    %v902 = vunpack.c.l.b16 %v226
    %v903 = vunpack.c.l.b16 %v227
    %v904 = vunpack.c.l.b16 %v228
    %v905 = vunpack.c.l.b16 %v229
    %v906 = vunpack.c.l.b16 %v230
    %v907 = vunpack.c.l.b16 %v231
    %v908 = vunpack.c.l.b16 %v232
    %v909 = vunpack.c.l.b16 %v233
    %v910 = vunpack.c.l.b16 %v234
    %v911 = vunpack.c.l.b16 %v235
    %v912 = vunpack.c.l.b16 %v236
    %v913 = vunpack.c.l.b16 %v237
    %v914 = vunpack.c.l.b16 %v238
    %v915 = vunpack.c.l.b16 %v239
    %v916 = vunpack.c.l.b16 %v240
    %v917 = vunpack.c.l.b16 %v241
    %v918 = vunpack.c.l.b16 %v242
    %v919 = vunpack.c.l.b16 %v243
    %v920 = vunpack.c.l.b16 %v244
    %v921 = vunpack.c.l.b16 %v245
    %v922 = vunpack.c.l.b16 %v246
    %v923 = vunpack.c.l.b16 %v247
    %v924 = vunpack.c.l.b16 %v248
    %v925 = vunpack.c.l.b16 %v249
    %v926 = vunpack.c.l.b16 %v250
    %v927 = vunpack.c.l.b16 %v251
    %v928 = vunpack.c.l.b16 %v252
    %v929 = vunpack.c.l.b16 %v253
    %v930 = vunpack.c.l.b16 %v254
    %v931 = vunpack.c.l.b16 %v255
    %v932 = vunpack.c.l.b16 %v256
    %v933 = vunpack.c.l.b16 %v257
    %v934 = vunpack.c.l.b16 %v258
    %v935 = vunpack.c.l.b16 %v259
    %v936 = vunpack.c.l.b16 %v260
    %v937 = vunpack.c.l.b16 %v261
    %v938 = vunpack.c.l.b16 %v262
    %v939 = vunpack.c.l.b16 %v263
    %v940 = vunpack.c.l.b16 %v264
    %v941 = vunpack.c.l.b16 %v265
    %v942 = vunpack.c.l.b16 %v266
    %v943 = vunpack.c.l.b16 %v267
    %v944 = vunpack.c.l.b16 %v268
    %v945 = vunpack.c.l.b16 %v269
    %v946 = vunpack.c.l.b16 %v270
    %v947 = vunpack.c.l.b16 %v271
    %v948 = vunpack.c.l.b16 %v272
    %v949 = vunpack.c.l.b16 %v273
    %v950 = vunpack.c.l.b16 %v274
    %v951 = vunpack.c.l.b16 %v275
    %v952 = vunpack.c.l.b16 %v276
    %v953 = vunpack.c.l.b16 %v277
    %v954 = vunpack.c.l.b16 %v278
    %v955 = vunpack.c.l.b16 %v279
    %v956 = vunpack.c.l.b16 %v280
    %v957 = vunpack.c.l.b16 %v281
    %v958 = vunpack.c.l.b16 %v282
    %v959 = vunpack.c.l.b16 %v283
    %v960 = vunpack.c.l.b16 %v284
    %v961 = vunpack.c.l.b16 %v285
    %v962 = vunpack.c.l.b16 %v286
    %v963 = vunpack.c.l.b16 %v287
    %v964 = vunpack.c.l.b16 %v288
    %v965 = vunpack.c.l.b16 %v289
    %v966 = vunpack.c.l.b16 %v290
    %v967 = vunpack.c.l.b16 %v291
    %v968 = vunpack.c.l.b16 %v292
    %v969 = vunpack.c.l.b16 %v293
    %v970 = vunpack.c.l.b16 %v294
    %v971 = vunpack.c.l.b16 %v295
    %v972 = vunpack.c.l.b16 %v296
    %v973 = vunpack.c.l.b16 %v297
    %v974 = vunpack.c.l.b16 %v298
    %v975 = vunpack.c.l.b16 %v299
    %v976 = vunpack.c.l.b16 %v300
    %v977 = vunpack.c.l.b16 %v301
    %v978 = vunpack.c.l.b16 %v302
    %v979 = vunpack.c.l.b16 %v303
    %v980 = vunpack.c.l.b16 %v304
    %v981 = vunpack.c.l.b16 %v305
    %v982 = vunpack.c.l.b16 %v306
    %v983 = vunpack.c.l.b16 %v307
    %v984 = vunpack.c.l.b16 %v308
    %v985 = vunpack.c.l.b16 %v309
    %v986 = vunpack.c.l.b16 %v310
    %v987 = vunpack.c.l.b16 %v311
    %v988 = vunpack.c.l.b16 %v312
    %v989 = vunpack.c.l.b16 %v313
    %v990 = vunpack.c.l.b16 %v314
    %v991 = vunpack.c.l.b16 %v315
    %v992 = vunpack.c.l.b16 %v316
    %v993 = vunpack.c.l.b16 %v317
    %v994 = vunpack.c.l.b16 %v318
    %v995 = vunpack.c.l.b16 %v319
    %v996 = vunpack.c.l.b16 %v320
    %v997 = vunpack.c.l.b16 %v321
    %v998 = vunpack.c.l.b16 %v322
    %v999 = vunpack.c.l.b16 %v323
    %v1000 = vunpack.c.l.b16 %v324
    %v1001 = vunpack.c.l.b16 %v325
    %v1002 = vunpack.c.l.b16 %v326
    %v1003 = vunpack.c.l.b16 %v327
    %v1004 = vunpack.c.l.b16 %v328
    %v1005 = vunpack.c.l.b16 %v329
    %v1006 = vunpack.c.l.b16 %v330
    %v1007 = vunpack.c.l.b16 %v331
    %v1008 = vunpack.c.l.b16 %v332
    %v1009 = vunpack.c.l.b16 %v333
    %v1010 = vunpack.c.l.b16 %v334
    %v1011 = vunpack.c.l.b16 %v335
    %v1012 = vunpack.c.l.b16 %v336
    %v1013 = vunpack.c.l.b16 %v337
    %v1014 = vunpack.c.l.b16 %v338
    %v1015 = vunpack.c.l.b16 %v339
    %v1016 = vunpack.c.l.b16 %v340
    %v1017 = vunpack.c.l.b16 %v341
    %v1018 = vunpack.c.l.b16 %v342
    %v1019 = vunpack.c.l.b16 %v343
    %v1020 = vunpack.c.l.b16 %v344
    %v1021 = vunpack.c.l.b16 %v345
    %v1022 = vunpack.c.l.b16 %v346
    %v1023 = vunpack.c.l.b16 %v347
    %v1024 = vunpack.c.l.b16 %v348
    %v1025 = vunpack.c.l.b16 %v349
    %v1026 = vunpack.c.l.b16 %v350
    %v1027 = vunpack.c.l.b16 %v351
    %v1028 = vunpack.c.l.b16 %v352
    %v1029 = vunpack.c.l.b16 %v353
    %v1030 = vunpack.c.l.b16 %v354
    %v1031 = vunpack.c.l.b16 %v355
    %v1032 = vunpack.c.l.b16 %v356
    %v1033 = vunpack.c.l.b16 %v357
    %v1034 = vunpack.c.l.b16 %v358
    %v1035 = vunpack.c.l.b16 %v359
    %v1036 = vunpack.c.l.b16 %v360
    %v1037 = vunpack.c.l.b16 %v361
    %v1038 = vunpack.c.l.b16 %v362
    %v1039 = vunpack.c.l.b16 %v363
    %v1040 = vunpack.c.l.b16 %v364
    %v1041 = vunpack.c.l.b16 %v365
    %v1042 = vunpack.c.l.b16 %v366
    %v1043 = vunpack.c.l.b16 %v367
    %v1044 = vunpack.c.l.b16 %v368
    %v1045 = vunpack.c.l.b16 %v369
    %v1046 = vunpack.c.l.b16 %v370
    %v1047 = vunpack.c.l.b16 %v371
    %v1048 = vunpack.c.l.b16 %v372
    %v1049 = vunpack.c.l.b16 %v373
    %v1050 = vunpack.c.l.b16 %v374
    %v1051 = vunpack.c.l.b16 %v375
    %v1052 = vunpack.c.l.b16 %v376
    %v1053 = vunpack.c.l.b16 %v377
    %v1054 = vunpack.c.l.b16 %v378
    %v1055 = vunpack.c.l.b16 %v379
    %v1056 = vunpack.c.l.b16 %v380
    %v1057 = vunpack.c.l.b16 %v381
    %v1058 = vunpack.c.l.b16 %v382
    %v1059 = vunpack.c.l.b16 %v383
    %v1060 = vunpack.c.l.b16 %v384
    %v1061 = vunpack.c.l.b16 %v385
    %v1062 = vunpack.c.l.b16 %v386
    %v1063 = vunpack.c.l.b16 %v387
    %v1064 = vunpack.c.l.b16 %v388
    %v1065 = vunpack.c.l.b16 %v389
    %v1066 = vunpack.c.l.b16 %v390
    %v1067 = vunpack.c.l.b16 %v391
    %v1068 = vunpack.c.l.b16 %v392
    %v1069 = vunpack.c.l.b16 %v393
    %v1070 = vunpack.c.l.b16 %v394
    %v1071 = vunpack.c.l.b16 %v395
    %v1072 = vunpack.c.l.b16 %v396
    %v1073 = vunpack.c.l.b16 %v397
    %v1074 = vunpack.c.l.b16 %v398
    %v1075 = vunpack.c.l.b16 %v399
    %v1076 = vunpack.c.l.b16 %v400
    %v1077 = vunpack.c.l.b16 %v401
    %v1078 = vunpack.c.l.b16 %v402
    %v1079 = vunpack.c.l.b16 %v403
    %v1080 = vunpack.c.l.b16 %v404
    %v1081 = vunpack.c.l.b16 %v405
    %v1082 = vunpack.c.l.b16 %v406
    %v1083 = vunpack.c.l.b16 %v407
    %v1084 = vunpack.c.l.b16 %v408
    %v1085 = vunpack.c.l.b16 %v409
    %v1086 = vunpack.c.l.b16 %v410
    %v1087 = vunpack.c.l.b16 %v411
    %v1088 = vunpack.c.l.b16 %v412
    %v1089 = vunpack.c.l.b16 %v413
    %v1090 = vunpack.c.l.b16 %v414
    %v1091 = vunpack.c.l.b16 %v415
    %v1092 = vunpack.c.l.b16 %v416
    %v1093 = vunpack.c.l.b16 %v417
    %v1094 = vunpack.c.l.b16 %v418
    %v1095 = vunpack.c.l.b16 %v419
    %v1096 = vunpack.c.l.b16 %v420
    %v1097 = vunpack.c.l.b16 %v421
    %v1098 = vunpack.c.l.b16 %v422
    %v1099 = vunpack.c.l.b16 %v423
    %v1100 = vunpack.c.l.b16 %v424
    %v1101 = vunpack.c.l.b16 %v425
    %v1102 = vunpack.c.l.b16 %v426
    %v1103 = vunpack.c.l.b16 %v427
    %v1104 = vunpack.c.l.b16 %v428
    %v1105 = vunpack.c.l.b16 %v429
    %v1106 = vunpack.c.l.b16 %v430
    %v1107 = vunpack.c.l.b16 %v431
    %v1108 = vunpack.c.l.b16 %v432
    %v1109 = vunpack.c.l.b16 %v433
    %v1110 = vunpack.c.l.b16 %v434
    %v1111 = vunpack.c.l.b16 %v435
    %v1112 = vunpack.c.l.b16 %v436
    %v1113 = vunpack.c.l.b16 %v437
    %v1114 = vunpack.c.l.b16 %v438
    %v1115 = vunpack.c.l.b16 %v439
    %v1116 = vunpack.c.l.b16 %v440
    %v1117 = vunpack.c.l.b16 %v441
    %v1118 = vunpack.c.l.b16 %v442
    %v1119 = vpack.c.b16 %v864, %v863
    %v1120 = vpack.c.b16 %v866, %v865
    %v1121 = vpack.c.b16 %v868, %v867
    %v1122 = vpack.c.b16 %v870, %v869
    %v1123 = vpack.c.b16 %v872, %v871
    %v1124 = vpack.c.b16 %v874, %v873
    %v1125 = vpack.c.b16 %v876, %v875
    %v1126 = vpack.c.b16 %v878, %v877
    %v1127 = vpack.c.b16 %v880, %v879
    %v1128 = vpack.c.b16 %v882, %v881
    %v1129 = vpack.c.b16 %v884, %v883
    %v1130 = vpack.c.b16 %v886, %v885
    %v1131 = vpack.c.b16 %v888, %v887
    %v1132 = vpack.c.b16 %v890, %v889
    %v1133 = vpack.c.b16 %v892, %v891
    %v1134 = vpack.c.b16 %v894, %v893
    %v1135 = vpack.c.b16 %v896, %v895
    %v1136 = vpack.c.b16 %v898, %v897
    %v1137 = vpack.c.b16 %v900, %v899
    %v1138 = vpack.c.b16 %v902, %v901
    %v1139 = vpack.c.b16 %v904, %v903
    %v1140 = vpack.c.b16 %v906, %v905
    %v1141 = vpack.c.b16 %v908, %v907
    %v1142 = vpack.c.b16 %v910, %v909
    %v1143 = vpack.c.b16 %v912, %v911
    %v1144 = vpack.c.b16 %v914, %v913
    %v1145 = vpack.c.b16 %v916, %v915
    %v1146 = vpack.c.b16 %v918, %v917
    %v1147 = vpack.c.b16 %v920, %v919
    %v1148 = vpack.c.b16 %v922, %v921
    %v1149 = vpack.c.b16 %v924, %v923
    %v1150 = vpack.c.b16 %v926, %v925
    %v1151 = vpack.c.b16 %v928, %v927
    %v1152 = vpack.c.b16 %v930, %v929
    %v1153 = vpack.c.b16 %v932, %v931
    %v1154 = vpack.c.b16 %v934, %v933
    %v1155 = vpack.c.b16 %v936, %v935
    %v1156 = vpack.c.b16 %v938, %v937
    %v1157 = vpack.c.b16 %v940, %v939
    %v1158 = vpack.c.b16 %v942, %v941
    %v1159 = vpack.c.b16 %v944, %v943
    %v1160 = vpack.c.b16 %v946, %v945
    %v1161 = vpack.c.b16 %v948, %v947
    %v1162 = vpack.c.b16 %v950, %v949
    %v1163 = vpack.c.b16 %v952, %v951
    %v1164 = vpack.c.b16 %v954, %v953
    %v1165 = vpack.c.b16 %v956, %v955
    %v1166 = vpack.c.b16 %v958, %v957
    %v1167 = vpack.c.b16 %v960, %v959
    %v1168 = vpack.c.b16 %v962, %v961
    %v1169 = vpack.c.b16 %v964, %v963
    %v1170 = vpack.c.b16 %v966, %v965
    %v1171 = vpack.c.b16 %v968, %v967
    %v1172 = vpack.c.b16 %v970, %v969
    %v1173 = vpack.c.b16 %v972, %v971
    %v1174 = vpack.c.b16 %v974, %v973
    %v1175 = vpack.c.b16 %v976, %v975
    %v1176 = vpack.c.b16 %v978, %v977
    %v1177 = vpack.c.b16 %v980, %v979
    %v1178 = vpack.c.b16 %v982, %v981
    %v1179 = vpack.c.b16 %v984, %v983
    %v1180 = vpack.c.b16 %v986, %v985
    %v1181 = vpack.c.b16 %v988, %v987
    %v1182 = vpack.c.b16 %v990, %v989
    %v1183 = vpack.c.b16 %v992, %v991
    %v1184 = vpack.c.b16 %v994, %v993
    %v1185 = vpack.c.b16 %v996, %v995
    %v1186 = vpack.c.b16 %v998, %v997
    %v1187 = vpack.c.b16 %v1000, %v999
    %v1188 = vpack.c.b16 %v1002, %v1001
    %v1189 = vpack.c.b16 %v1004, %v1003
    %v1190 = vpack.c.b16 %v1006, %v1005
    %v1191 = vpack.c.b16 %v1008, %v1007
    %v1192 = vpack.c.b16 %v1010, %v1009
    %v1193 = vpack.c.b16 %v1012, %v1011
    %v1194 = vpack.c.b16 %v1014, %v1013
    %v1195 = vpack.c.b16 %v1016, %v1015
    %v1196 = vpack.c.b16 %v1018, %v1017
    %v1197 = vpack.c.b16 %v1020, %v1019
    %v1198 = vpack.c.b16 %v1022, %v1021
    %v1199 = vpack.c.b16 %v1024, %v1023
    %v1200 = vpack.c.b16 %v1026, %v1025
    %v1201 = vpack.c.b16 %v1028, %v1027
    %v1202 = vpack.c.b16 %v1030, %v1029
    %v1203 = vpack.c.b16 %v1032, %v1031
    %v1204 = vpack.c.b16 %v1034, %v1033
    %v1205 = vpack.c.b16 %v1036, %v1035
    %v1206 = vpack.c.b16 %v1038, %v1037
    %v1207 = vpack.c.b16 %v1040, %v1039
    %v1208 = vpack.c.b16 %v1042, %v1041
    %v1209 = vpack.c.b16 %v1044, %v1043
    %v1210 = vpack.c.b16 %v1046, %v1045
    %v1211 = vpack.c.b16 %v1048, %v1047
    %v1212 = vpack.c.b16 %v1050, %v1049
    %v1213 = vpack.c.b16 %v1052, %v1051
    %v1214 = vpack.c.b16 %v1054, %v1053
    %v1215 = vpack.c.b16 %v1056, %v1055
    %v1216 = vpack.c.b16 %v1058, %v1057
    %v1217 = vpack.c.b16 %v1060, %v1059
    %v1218 = vpack.c.b16 %v1062, %v1061
    %v1219 = vpack.c.b16 %v1064, %v1063
    %v1220 = vpack.c.b16 %v1066, %v1065
    %v1221 = vpack.c.b16 %v1068, %v1067
    %v1222 = vpack.c.b16 %v1070, %v1069
    %v1223 = vpack.c.b16 %v1072, %v1071
    %v1224 = vpack.c.b16 %v1074, %v1073
    %v1225 = vpack.c.b16 %v1076, %v1075
    %v1226 = vpack.c.b16 %v1078, %v1077
    %v1227 = vpack.c.b16 %v1080, %v1079
    %v1228 = vpack.c.b16 %v1082, %v1081
    %v1229 = vpack.c.b16 %v1084, %v1083
    %v1230 = vpack.c.b16 %v1086, %v1085
    %v1231 = vpack.c.b16 %v1088, %v1087
    %v1232 = vpack.c.b16 %v1090, %v1089
    %v1233 = vpack.c.b16 %v1092, %v1091
    %v1234 = vpack.c.b16 %v1094, %v1093
    %v1235 = vpack.c.b16 %v1096, %v1095
    %v1236 = vpack.c.b16 %v1098, %v1097
    %v1237 = vpack.c.b16 %v1100, %v1099
    %v1238 = vpack.c.b16 %v1102, %v1101
    %v1239 = vpack.c.b16 %v1104, %v1103
    %v1240 = vpack.c.b16 %v1106, %v1105
    %v1241 = vpack.c.b16 %v1108, %v1107
    %v1242 = vpack.c.b16 %v1110, %v1109
    %v1243 = vpack.c.b16 %v1112, %v1111
    %v1244 = vpack.c.b16 %v1114, %v1113
    %v1245 = vpack.c.b16 %v1116, %v1115
    %v1246 = vpack.c.b16 %v1118, %v1117
    %1375 = vmatprep.subr.bf16.mxu0 0
    %1376 = vmatpush1.bf16.msra.mxu0 %v1119
    %1377 = vmatprep.subr.bf16.mxu0 0
    %1378 = vmatpush1.bf16.msra.mxu0 %v1120
    %1379 = vmatprep.subr.bf16.mxu0 0
    %1380 = vmatpush1.bf16.msra.mxu0 %v1121
    %1381 = vmatprep.subr.bf16.mxu0 0
    %1382 = vmatpush1.bf16.msra.mxu0 %v1122
    %1383 = vmatprep.subr.bf16.mxu0 0
    %1384 = vmatpush1.bf16.msra.mxu0 %v1123
    %1385 = vmatprep.subr.bf16.mxu0 0
    %1386 = vmatpush1.bf16.msra.mxu0 %v1124
    %1387 = vmatprep.subr.bf16.mxu0 0
    %1388 = vmatpush1.bf16.msra.mxu0 %v1125
    %1389 = vmatprep.subr.bf16.mxu0 0
    %1390 = vmatpush1.bf16.msra.mxu0 %v1126
    %1391 = vmatprep.subr.bf16.mxu0 0
    %1392 = vmatpush1.bf16.msra.mxu0 %v1127
    %1393 = vmatprep.subr.bf16.mxu0 0
    %1394 = vmatpush1.bf16.msra.mxu0 %v1128
    %1395 = vmatprep.subr.bf16.mxu0 0
    %1396 = vmatpush1.bf16.msra.mxu0 %v1129
    %1397 = vmatprep.subr.bf16.mxu0 0
    %1398 = vmatpush1.bf16.msra.mxu0 %v1130
    %1399 = vmatprep.subr.bf16.mxu0 0
    %1400 = vmatpush1.bf16.msra.mxu0 %v1131
    %1401 = vmatprep.subr.bf16.mxu0 0
    %1402 = vmatpush1.bf16.msra.mxu0 %v1132
    %1403 = vmatprep.subr.bf16.mxu0 0
    %1404 = vmatpush1.bf16.msra.mxu0 %v1133
    %1405 = vmatprep.subr.bf16.mxu0 0
    %1406 = vmatpush1.bf16.msra.mxu0 %v1134
    %1407 = vmatprep.mubr.bf16.mxu0 %v544
    %1408 = vmatmul.mubr.bf16.gmra.mrb[0].mxu0 %v543
    %v1409 = vpop.f32.mrb[0].mxu0
    %v1410 = vadd.f32 %v446, %v1409
    %v1411 = vpop.f32.mrb[0].mxu0
    %v1412 = vpop.f32.mrb[0].mxu0
    %v1413 = vadd.f32 %v446, %v1412
    %v1414 = vpop.f32.mrb[0].mxu0
    %1415 = vmatprep.mubr.bf16.mxu0 %v560
    %1416 = vmatmul.mubr.bf16.gmra.mrb[0].mxu0 %v559
    %v1417 = vpop.f32.mrb[0].mxu0
    %v1418 = vadd.f32 %v446, %v1417
    %v1419 = vpop.f32.mrb[0].mxu0
    %v1420 = vpop.f32.mrb[0].mxu0
    %v1421 = vadd.f32 %v446, %v1420
    %v1422 = vpop.f32.mrb[0].mxu0
    %1423 = vdwg.mxu0
    %1424 = vmatprep.subr.bf16.mxu0 0
    %1425 = vmatpush1.bf16.msra.mxu0 %v1135
    %1426 = vmatprep.subr.bf16.mxu0 0
    %1427 = vmatpush1.bf16.msra.mxu0 %v1136
    %1428 = vmatprep.subr.bf16.mxu0 0
    %1429 = vmatpush1.bf16.msra.mxu0 %v1137
    %1430 = vmatprep.subr.bf16.mxu0 0
    %1431 = vmatpush1.bf16.msra.mxu0 %v1138
    %1432 = vmatprep.subr.bf16.mxu0 0
    %1433 = vmatpush1.bf16.msra.mxu0 %v1139
    %1434 = vmatprep.subr.bf16.mxu0 0
    %1435 = vmatpush1.bf16.msra.mxu0 %v1140
    %1436 = vmatprep.subr.bf16.mxu0 0
    %1437 = vmatpush1.bf16.msra.mxu0 %v1141
    %1438 = vmatprep.subr.bf16.mxu0 0
    %1439 = vmatpush1.bf16.msra.mxu0 %v1142
    %1440 = vmatprep.subr.bf16.mxu0 0
    %1441 = vmatpush1.bf16.msra.mxu0 %v1143
    %1442 = vmatprep.subr.bf16.mxu0 0
    %1443 = vmatpush1.bf16.msra.mxu0 %v1144
    %1444 = vmatprep.subr.bf16.mxu0 0
    %1445 = vmatpush1.bf16.msra.mxu0 %v1145
    %1446 = vmatprep.subr.bf16.mxu0 0
    %1447 = vmatpush1.bf16.msra.mxu0 %v1146
    %1448 = vmatprep.subr.bf16.mxu0 0
    %1449 = vmatpush1.bf16.msra.mxu0 %v1147
    %1450 = vmatprep.subr.bf16.mxu0 0
    %1451 = vmatpush1.bf16.msra.mxu0 %v1148
    %1452 = vmatprep.subr.bf16.mxu0 0
    %1453 = vmatpush1.bf16.msra.mxu0 %v1149
    %1454 = vmatprep.subr.bf16.mxu0 0
    %1455 = vmatpush1.bf16.msra.mxu0 %v1150
    %1456 = vmatprep.mubr.bf16.mxu0 %v546
    %1457 = vmatmul.mubr.bf16.gmra.mrb[0].mxu0 %v545
    %v1458 = vpop.f32.mrb[0].mxu0
    %v1459 = vadd.f32 %v1410, %v1458
    %v1460 = vpop.f32.mrb[0].mxu0
    %v1461 = vpop.f32.mrb[0].mxu0
    %v1462 = vadd.f32 %v1413, %v1461
    %v1463 = vpop.f32.mrb[0].mxu0
    %1464 = vmatprep.mubr.bf16.mxu0 %v562
    %1465 = vmatmul.mubr.bf16.gmra.mrb[0].mxu0 %v561
    %v1466 = vpop.f32.mrb[0].mxu0
    %v1467 = vadd.f32 %v1418, %v1466
    %v1468 = vpop.f32.mrb[0].mxu0
    %v1469 = vpop.f32.mrb[0].mxu0
    %v1470 = vadd.f32 %v1421, %v1469
    %v1471 = vpop.f32.mrb[0].mxu0
    %1472 = vdwg.mxu0
    %1473 = vmatprep.subr.bf16.mxu0 0
    %1474 = vmatpush1.bf16.msra.mxu0 %v1151
    %1475 = vmatprep.subr.bf16.mxu0 0
    %1476 = vmatpush1.bf16.msra.mxu0 %v1152
    %1477 = vmatprep.subr.bf16.mxu0 0
    %1478 = vmatpush1.bf16.msra.mxu0 %v1153
    %1479 = vmatprep.subr.bf16.mxu0 0
    %1480 = vmatpush1.bf16.msra.mxu0 %v1154
    %1481 = vmatprep.subr.bf16.mxu0 0
    %1482 = vmatpush1.bf16.msra.mxu0 %v1155
    %1483 = vmatprep.subr.bf16.mxu0 0
    %1484 = vmatpush1.bf16.msra.mxu0 %v1156
    %1485 = vmatprep.subr.bf16.mxu0 0
    %1486 = vmatpush1.bf16.msra.mxu0 %v1157
    %1487 = vmatprep.subr.bf16.mxu0 0
    %1488 = vmatpush1.bf16.msra.mxu0 %v1158
    %1489 = vmatprep.subr.bf16.mxu0 0
    %1490 = vmatpush1.bf16.msra.mxu0 %v1159
    %1491 = vmatprep.subr.bf16.mxu0 0
    %1492 = vmatpush1.bf16.msra.mxu0 %v1160
    %1493 = vmatprep.subr.bf16.mxu0 0
    %1494 = vmatpush1.bf16.msra.mxu0 %v1161
    %1495 = vmatprep.subr.bf16.mxu0 0
    %1496 = vmatpush1.bf16.msra.mxu0 %v1162
    %1497 = vmatprep.subr.bf16.mxu0 0
    %1498 = vmatpush1.bf16.msra.mxu0 %v1163
    %1499 = vmatprep.subr.bf16.mxu0 0
    %1500 = vmatpush1.bf16.msra.mxu0 %v1164
    %1501 = vmatprep.subr.bf16.mxu0 0
    %1502 = vmatpush1.bf16.msra.mxu0 %v1165
    %1503 = vmatprep.subr.bf16.mxu0 0
    %1504 = vmatpush1.bf16.msra.mxu0 %v1166
    %1505 = vmatprep.mubr.bf16.mxu0 %v548
    %1506 = vmatmul.mubr.bf16.gmra.mrb[0].mxu0 %v547
    %v1507 = vpop.f32.mrb[0].mxu0
    %v1508 = vadd.f32 %v1459, %v1507
    %v1509 = vpop.f32.mrb[0].mxu0
    %v1510 = vpop.f32.mrb[0].mxu0
    %v1511 = vadd.f32 %v1462, %v1510
    %v1512 = vpop.f32.mrb[0].mxu0
    %1513 = vmatprep.mubr.bf16.mxu0 %v564
    %1514 = vmatmul.mubr.bf16.gmra.mrb[0].mxu0 %v563
    %v1515 = vpop.f32.mrb[0].mxu0
    %v1516 = vadd.f32 %v1467, %v1515
    %v1517 = vpop.f32.mrb[0].mxu0
    %v1518 = vpop.f32.mrb[0].mxu0
    %v1519 = vadd.f32 %v1470, %v1518
    %v1520 = vpop.f32.mrb[0].mxu0
    %1521 = vdwg.mxu0
    %1522 = vmatprep.subr.bf16.mxu0 0
    %1523 = vmatpush1.bf16.msra.mxu0 %v1167
    %1524 = vmatprep.subr.bf16.mxu0 0
    %1525 = vmatpush1.bf16.msra.mxu0 %v1168
    %1526 = vmatprep.subr.bf16.mxu0 0
    %1527 = vmatpush1.bf16.msra.mxu0 %v1169
    %1528 = vmatprep.subr.bf16.mxu0 0
    %1529 = vmatpush1.bf16.msra.mxu0 %v1170
    %1530 = vmatprep.subr.bf16.mxu0 0
    %1531 = vmatpush1.bf16.msra.mxu0 %v1171
    %1532 = vmatprep.subr.bf16.mxu0 0
    %1533 = vmatpush1.bf16.msra.mxu0 %v1172
    %1534 = vmatprep.subr.bf16.mxu0 0
    %1535 = vmatpush1.bf16.msra.mxu0 %v1173
    %1536 = vmatprep.subr.bf16.mxu0 0
    %1537 = vmatpush1.bf16.msra.mxu0 %v1174
    %1538 = vmatprep.subr.bf16.mxu0 0
    %1539 = vmatpush1.bf16.msra.mxu0 %v1175
    %1540 = vmatprep.subr.bf16.mxu0 0
    %1541 = vmatpush1.bf16.msra.mxu0 %v1176
    %1542 = vmatprep.subr.bf16.mxu0 0
    %1543 = vmatpush1.bf16.msra.mxu0 %v1177
    %1544 = vmatprep.subr.bf16.mxu0 0
    %1545 = vmatpush1.bf16.msra.mxu0 %v1178
    %1546 = vmatprep.subr.bf16.mxu0 0
    %1547 = vmatpush1.bf16.msra.mxu0 %v1179
    %1548 = vmatprep.subr.bf16.mxu0 0
    %1549 = vmatpush1.bf16.msra.mxu0 %v1180
    %1550 = vmatprep.subr.bf16.mxu0 0
    %1551 = vmatpush1.bf16.msra.mxu0 %v1181
    %1552 = vmatprep.subr.bf16.mxu0 0
    %1553 = vmatpush1.bf16.msra.mxu0 %v1182
    %1554 = vmatprep.mubr.bf16.mxu0 %v550
    %1555 = vmatmul.mubr.bf16.gmra.mrb[0].mxu0 %v549
    %v1556 = vpop.f32.mrb[0].mxu0
    %v1557 = vadd.f32 %v1508, %v1556
    %v1558 = vpop.f32.mrb[0].mxu0
    %v1559 = vpop.f32.mrb[0].mxu0
    %v1560 = vadd.f32 %v1511, %v1559
    %v1561 = vpop.f32.mrb[0].mxu0
    %1562 = vmatprep.mubr.bf16.mxu0 %v566
    %1563 = vmatmul.mubr.bf16.gmra.mrb[0].mxu0 %v565
    %v1564 = vpop.f32.mrb[0].mxu0
    %v1565 = vadd.f32 %v1516, %v1564
    %v1566 = vpop.f32.mrb[0].mxu0
    %v1567 = vpop.f32.mrb[0].mxu0
    %v1568 = vadd.f32 %v1519, %v1567
    %v1569 = vpop.f32.mrb[0].mxu0
    %1570 = vdwg.mxu0
    %1571 = vmatprep.subr.bf16.mxu0 0
    %1572 = vmatpush1.bf16.msra.mxu0 %v1183
    %1573 = vmatprep.subr.bf16.mxu0 0
    %1574 = vmatpush1.bf16.msra.mxu0 %v1184
    %1575 = vmatprep.subr.bf16.mxu0 0
    %1576 = vmatpush1.bf16.msra.mxu0 %v1185
    %1577 = vmatprep.subr.bf16.mxu0 0
    %1578 = vmatpush1.bf16.msra.mxu0 %v1186
    %1579 = vmatprep.subr.bf16.mxu0 0
    %1580 = vmatpush1.bf16.msra.mxu0 %v1187
    %1581 = vmatprep.subr.bf16.mxu0 0
    %1582 = vmatpush1.bf16.msra.mxu0 %v1188
    %1583 = vmatprep.subr.bf16.mxu0 0
    %1584 = vmatpush1.bf16.msra.mxu0 %v1189
    %1585 = vmatprep.subr.bf16.mxu0 0
    %1586 = vmatpush1.bf16.msra.mxu0 %v1190
    %1587 = vmatprep.subr.bf16.mxu0 0
    %1588 = vmatpush1.bf16.msra.mxu0 %v1191
    %1589 = vmatprep.subr.bf16.mxu0 0
    %1590 = vmatpush1.bf16.msra.mxu0 %v1192
    %1591 = vmatprep.subr.bf16.mxu0 0
    %1592 = vmatpush1.bf16.msra.mxu0 %v1193
    %1593 = vmatprep.subr.bf16.mxu0 0
    %1594 = vmatpush1.bf16.msra.mxu0 %v1194
    %1595 = vmatprep.subr.bf16.mxu0 0
    %1596 = vmatpush1.bf16.msra.mxu0 %v1195
    %1597 = vmatprep.subr.bf16.mxu0 0
    %1598 = vmatpush1.bf16.msra.mxu0 %v1196
    %1599 = vmatprep.subr.bf16.mxu0 0
    %1600 = vmatpush1.bf16.msra.mxu0 %v1197
    %1601 = vmatprep.subr.bf16.mxu0 0
    %1602 = vmatpush1.bf16.msra.mxu0 %v1198
    %1603 = vmatprep.mubr.bf16.mxu0 %v552
    %1604 = vmatmul.mubr.bf16.gmra.mrb[0].mxu0 %v551
    %v1605 = vpop.f32.mrb[0].mxu0
    %v1606 = vadd.f32 %v1557, %v1605
    %v1607 = vpop.f32.mrb[0].mxu0
    %v1608 = vpop.f32.mrb[0].mxu0
    %v1609 = vadd.f32 %v1560, %v1608
    %v1610 = vpop.f32.mrb[0].mxu0
    %1611 = vmatprep.mubr.bf16.mxu0 %v568
    %1612 = vmatmul.mubr.bf16.gmra.mrb[0].mxu0 %v567
    %v1613 = vpop.f32.mrb[0].mxu0
    %v1614 = vadd.f32 %v1565, %v1613
    %v1615 = vpop.f32.mrb[0].mxu0
    %v1616 = vpop.f32.mrb[0].mxu0
    %v1617 = vadd.f32 %v1568, %v1616
    %v1618 = vpop.f32.mrb[0].mxu0
    %1619 = vdwg.mxu0
    %1620 = vmatprep.subr.bf16.mxu0 0
    %1621 = vmatpush1.bf16.msra.mxu0 %v1199
    %1622 = vmatprep.subr.bf16.mxu0 0
    %1623 = vmatpush1.bf16.msra.mxu0 %v1200
    %1624 = vmatprep.subr.bf16.mxu0 0
    %1625 = vmatpush1.bf16.msra.mxu0 %v1201
    %1626 = vmatprep.subr.bf16.mxu0 0
    %1627 = vmatpush1.bf16.msra.mxu0 %v1202
    %1628 = vmatprep.subr.bf16.mxu0 0
    %1629 = vmatpush1.bf16.msra.mxu0 %v1203
    %1630 = vmatprep.subr.bf16.mxu0 0
    %1631 = vmatpush1.bf16.msra.mxu0 %v1204
    %1632 = vmatprep.subr.bf16.mxu0 0
    %1633 = vmatpush1.bf16.msra.mxu0 %v1205
    %1634 = vmatprep.subr.bf16.mxu0 0
    %1635 = vmatpush1.bf16.msra.mxu0 %v1206
    %1636 = vmatprep.subr.bf16.mxu0 0
    %1637 = vmatpush1.bf16.msra.mxu0 %v1207
    %1638 = vmatprep.subr.bf16.mxu0 0
    %1639 = vmatpush1.bf16.msra.mxu0 %v1208
    %1640 = vmatprep.subr.bf16.mxu0 0
    %1641 = vmatpush1.bf16.msra.mxu0 %v1209
    %1642 = vmatprep.subr.bf16.mxu0 0
    %1643 = vmatpush1.bf16.msra.mxu0 %v1210
    %1644 = vmatprep.subr.bf16.mxu0 0
    %1645 = vmatpush1.bf16.msra.mxu0 %v1211
    %1646 = vmatprep.subr.bf16.mxu0 0
    %1647 = vmatpush1.bf16.msra.mxu0 %v1212
    %1648 = vmatprep.subr.bf16.mxu0 0
    %1649 = vmatpush1.bf16.msra.mxu0 %v1213
    %1650 = vmatprep.subr.bf16.mxu0 0
    %1651 = vmatpush1.bf16.msra.mxu0 %v1214
    %1652 = vmatprep.mubr.bf16.mxu0 %v554
    %1653 = vmatmul.mubr.bf16.gmra.mrb[0].mxu0 %v553
    %v1654 = vpop.f32.mrb[0].mxu0
    %v1655 = vadd.f32 %v1606, %v1654
    %v1656 = vpop.f32.mrb[0].mxu0
    %v1657 = vpop.f32.mrb[0].mxu0
    %v1658 = vadd.f32 %v1609, %v1657
    %v1659 = vpop.f32.mrb[0].mxu0
    %1660 = vmatprep.mubr.bf16.mxu0 %v570
    %1661 = vmatmul.mubr.bf16.gmra.mrb[0].mxu0 %v569
    %v1662 = vpop.f32.mrb[0].mxu0
    %v1663 = vadd.f32 %v1614, %v1662
    %v1664 = vpop.f32.mrb[0].mxu0
    %v1665 = vpop.f32.mrb[0].mxu0
    %v1666 = vadd.f32 %v1617, %v1665
    %v1667 = vpop.f32.mrb[0].mxu0
    %1668 = vdwg.mxu0
    %1669 = vmatprep.subr.bf16.mxu0 0
    %1670 = vmatpush1.bf16.msra.mxu0 %v1215
    %1671 = vmatprep.subr.bf16.mxu0 0
    %1672 = vmatpush1.bf16.msra.mxu0 %v1216
    %1673 = vmatprep.subr.bf16.mxu0 0
    %1674 = vmatpush1.bf16.msra.mxu0 %v1217
    %1675 = vmatprep.subr.bf16.mxu0 0
    %1676 = vmatpush1.bf16.msra.mxu0 %v1218
    %1677 = vmatprep.subr.bf16.mxu0 0
    %1678 = vmatpush1.bf16.msra.mxu0 %v1219
    %1679 = vmatprep.subr.bf16.mxu0 0
    %1680 = vmatpush1.bf16.msra.mxu0 %v1220
    %1681 = vmatprep.subr.bf16.mxu0 0
    %1682 = vmatpush1.bf16.msra.mxu0 %v1221
    %1683 = vmatprep.subr.bf16.mxu0 0
    %1684 = vmatpush1.bf16.msra.mxu0 %v1222
    %1685 = vmatprep.subr.bf16.mxu0 0
    %1686 = vmatpush1.bf16.msra.mxu0 %v1223
    %1687 = vmatprep.subr.bf16.mxu0 0
    %1688 = vmatpush1.bf16.msra.mxu0 %v1224
    %1689 = vmatprep.subr.bf16.mxu0 0
    %1690 = vmatpush1.bf16.msra.mxu0 %v1225
    %1691 = vmatprep.subr.bf16.mxu0 0
    %1692 = vmatpush1.bf16.msra.mxu0 %v1226
    %1693 = vmatprep.subr.bf16.mxu0 0
    %1694 = vmatpush1.bf16.msra.mxu0 %v1227
    %1695 = vmatprep.subr.bf16.mxu0 0
    %1696 = vmatpush1.bf16.msra.mxu0 %v1228
    %1697 = vmatprep.subr.bf16.mxu0 0
    %1698 = vmatpush1.bf16.msra.mxu0 %v1229
    %1699 = vmatprep.subr.bf16.mxu0 0
    %1700 = vmatpush1.bf16.msra.mxu0 %v1230
    %1701 = vmatprep.mubr.bf16.mxu0 %v556
    %1702 = vmatmul.mubr.bf16.gmra.mrb[0].mxu0 %v555
    %v1703 = vpop.f32.mrb[0].mxu0
    %v1704 = vadd.f32 %v1655, %v1703
    %v1705 = vpop.f32.mrb[0].mxu0
    %v1706 = vpop.f32.mrb[0].mxu0
    %v1707 = vadd.f32 %v1658, %v1706
    %v1708 = vpop.f32.mrb[0].mxu0
    %1709 = vmatprep.mubr.bf16.mxu0 %v572
    %1710 = vmatmul.mubr.bf16.gmra.mrb[0].mxu0 %v571
    %v1711 = vpop.f32.mrb[0].mxu0
    %v1712 = vadd.f32 %v1663, %v1711
    %v1713 = vpop.f32.mrb[0].mxu0
    %v1714 = vpop.f32.mrb[0].mxu0
    %v1715 = vadd.f32 %v1666, %v1714
    %v1716 = vpop.f32.mrb[0].mxu0
    %1717 = vdwg.mxu0
    %1718 = vmatprep.subr.bf16.mxu0 0
    %1719 = vmatpush1.bf16.msra.mxu0 %v1231
    %1720 = vmatprep.subr.bf16.mxu0 0
    %1721 = vmatpush1.bf16.msra.mxu0 %v1232
    %1722 = vmatprep.subr.bf16.mxu0 0
    %1723 = vmatpush1.bf16.msra.mxu0 %v1233
    %1724 = vmatprep.subr.bf16.mxu0 0
    %1725 = vmatpush1.bf16.msra.mxu0 %v1234
    %1726 = vmatprep.subr.bf16.mxu0 0
    %1727 = vmatpush1.bf16.msra.mxu0 %v1235
    %1728 = vmatprep.subr.bf16.mxu0 0
    %1729 = vmatpush1.bf16.msra.mxu0 %v1236
    %1730 = vmatprep.subr.bf16.mxu0 0
    %1731 = vmatpush1.bf16.msra.mxu0 %v1237
    %1732 = vmatprep.subr.bf16.mxu0 0
    %1733 = vmatpush1.bf16.msra.mxu0 %v1238
    %1734 = vmatprep.subr.bf16.mxu0 0
    %1735 = vmatpush1.bf16.msra.mxu0 %v1239
    %1736 = vmatprep.subr.bf16.mxu0 0
    %1737 = vmatpush1.bf16.msra.mxu0 %v1240
    %1738 = vmatprep.subr.bf16.mxu0 0
    %1739 = vmatpush1.bf16.msra.mxu0 %v1241
    %1740 = vmatprep.subr.bf16.mxu0 0
    %1741 = vmatpush1.bf16.msra.mxu0 %v1242
    %1742 = vmatprep.subr.bf16.mxu0 0
    %1743 = vmatpush1.bf16.msra.mxu0 %v1243
    %1744 = vmatprep.subr.bf16.mxu0 0
    %1745 = vmatpush1.bf16.msra.mxu0 %v1244
    %1746 = vmatprep.subr.bf16.mxu0 0
    %1747 = vmatpush1.bf16.msra.mxu0 %v1245
    %1748 = vmatprep.subr.bf16.mxu0 0
    %1749 = vmatpush1.bf16.msra.mxu0 %v1246
    %1750 = vmatprep.mubr.bf16.mxu0 %v558
    %1751 = vmatmul.mubr.bf16.gmra.mrb[0].mxu0 %v557
    %v1752 = vpop.f32.mrb[0].mxu0
    %v1753 = vadd.f32 %v1704, %v1752
    %v1754 = vpop.f32.mrb[0].mxu0
    %v1755 = vpop.f32.mrb[0].mxu0
    %v1756 = vadd.f32 %v1707, %v1755
    %v1757 = vpop.f32.mrb[0].mxu0
    %1758 = vmatprep.mubr.bf16.mxu0 %v574
    %1759 = vmatmul.mubr.bf16.gmra.mrb[0].mxu0 %v573
    %v1760 = vpop.f32.mrb[0].mxu0
    %v1761 = vadd.f32 %v1712, %v1760
    %v1762 = vpop.f32.mrb[0].mxu0
    %v1763 = vpop.f32.mrb[0].mxu0
    %v1764 = vadd.f32 %v1715, %v1763
    %v1765 = vpop.f32.mrb[0].mxu0
    %1766 = vdwg.mxu0
    %v1767 = vtanh.pop %v1753
    %v1768 = vtanh.pop %v1756
    %v1769 = vtanh.pop %v1761
    %v1770 = vtanh.pop %v1764
    %v1771 = vsub.f32 0.0, %v1753
    %v1772 = vsub.f32 0.0, %v1756
    %v1773 = vsub.f32 0.0, %v1761
    %v1774 = vsub.f32 0.0, %v1764
    %v1775 = vmul.f32 %v1771, 1.442695
    %v1776 = vpow.pop %v1775
    %v1777 = vmul.f32 %v1772, 1.442695
    %v1778 = vpow.pop %v1777
    %v1779 = vmul.f32 %v1773, 1.442695
    %v1780 = vpow.pop %v1779
    %v1781 = vmul.f32 %v1774, 1.442695
    %v1782 = vpow.pop %v1781
    %v1783 = vadd.f32 %v1776, 1.0
    %v1784 = vadd.f32 %v1778, 1.0
    %v1785 = vadd.f32 %v1780, 1.0
    %v1786 = vadd.f32 %v1782, 1.0
    %v1787 = vrcp.pop %v1783
    %v1788 = vrcp.pop %v1784
    %v1789 = vrcp.pop %v1785
    %v1790 = vrcp.pop %v1786
    %1795 = vrot.lane.b32.xlu0 %v1787, 96
    %v1796 = vpop.permute.xlu0 %1795
    %1797 = vrot.lane.b32.xlu0 %v1788, 96
    %v1798 = vpop.permute.xlu0 %1797
    %1799 = vrot.lane.b32.xlu0 %v1789, 96
    %v1800 = vpop.permute.xlu0 %1799
    %1801 = vrot.lane.b32.xlu0 %v1790, 96
    %v1802 = vpop.permute.xlu0 %1801
    %v1807 = vmul.f32 %v1767, %v1796
    %v1808 = vmul.f32 %v1768, %v1798
    %v1809 = vmul.f32 %v1769, %v1800
    %v1810 = vmul.f32 %v1770, %v1802
    %v1811 = vlaneseq
    %v1812 = vshrl.u32 %v1811, 7
    %v1813 = vsub.s32 1, %v1812
    %v1814 = vrot.slane %v186, %v1813
    %v1815 = vmul.f32 %v1807, %v1814
    %v1816 = vmul.f32 %v1808, %v1814
    %v1817 = vmul.f32 %v1809, %v1814
    %v1818 = vmul.f32 %v1810, %v1814
    %vm1819 = vcmask 261120
    %v1820 = vsel %vm1819, %v1815, 0.0
    %1821 = vadd.xlane.f32.xlu0 %v1820
    %v1822 = vpop.xlane.xlu0 %1821
    %v1823 = vsel %vm1819, %v1816, 0.0
    %1824 = vadd.xlane.f32.xlu0 %v1823
    %v1825 = vpop.xlane.xlu0 %1824
    %v1826 = vsel %vm1819, %v1817, 0.0
    %1827 = vadd.xlane.f32.xlu0 %v1826
    %v1828 = vpop.xlane.xlu0 %1827
    %v1829 = vsel %vm1819, %v1818, 0.0
    %1830 = vadd.xlane.f32.xlu0 %v1829
    %v1831 = vpop.xlane.xlu0 %1830
    %s1832 = sld [smem:[#allocation11]]
    %v1833 = vstv %s1832
    %v1834 = vadd.f32 %v1822, %v1833
    %v1835 = vadd.f32 %v1825, %v1833
    %v1836 = vadd.f32 %v1828, %v1833
    %v1837 = vadd.f32 %v1831, %v1833
    %v1838 = vlaneseq
    %v1839 = vshrl.u32 %v1838, 7
    %vm1840 = vcmp.lt.s32.totalorder %v1839, 6
    %v1841 = vsel %vm1840, %v1834, -1e+30
    %v1842 = vsel %vm1840, %v1835, -1e+30
    %v1843 = vsel %vm1840, %v1836, -1e+30
    %v1844 = vsel %vm1840, %v1837, -1e+30
    %v1845 = vrot.slane %v1841, 4
    %v1846 = vmax.f32 %v1841, %v1845
    %v1847 = vrot.slane %v1846, 2
    %v1848 = vmax.f32 %v1846, %v1847
    %v1849 = vrot.slane %v1848, 1
    %v1850 = vmax.f32 %v1848, %v1849
    %v1851 = vrot.slane %v1842, 4
    %v1852 = vmax.f32 %v1842, %v1851
    %v1853 = vrot.slane %v1852, 2
    %v1854 = vmax.f32 %v1852, %v1853
    %v1855 = vrot.slane %v1854, 1
    %v1856 = vmax.f32 %v1854, %v1855
    %v1857 = vrot.slane %v1843, 4
    %v1858 = vmax.f32 %v1843, %v1857
    %v1859 = vrot.slane %v1858, 2
    %v1860 = vmax.f32 %v1858, %v1859
    %v1861 = vrot.slane %v1860, 1
    %v1862 = vmax.f32 %v1860, %v1861
    %v1863 = vrot.slane %v1844, 4
    %v1864 = vmax.f32 %v1844, %v1863
    %v1865 = vrot.slane %v1864, 2
    %v1866 = vmax.f32 %v1864, %v1865
    %v1867 = vrot.slane %v1866, 1
    %v1868 = vmax.f32 %v1866, %v1867
    %v1869 = vsub.f32 %v1841, %v1850
    %v1870 = vsub.f32 %v1842, %v1856
    %v1871 = vsub.f32 %v1843, %v1862
    %v1872 = vsub.f32 %v1844, %v1868
    %v1873 = vmul.f32 %v1869, 1.442695
    %v1874 = vpow.pop %v1873
    %v1875 = vmul.f32 %v1870, 1.442695
    %v1876 = vpow.pop %v1875
    %v1877 = vmul.f32 %v1871, 1.442695
    %v1878 = vpow.pop %v1877
    %v1879 = vmul.f32 %v1872, 1.442695
    %v1880 = vpow.pop %v1879
    %v1881 = vrot.slane %v1874, 4
    %v1882 = vadd.f32 %v1874, %v1881
    %v1883 = vrot.slane %v1882, 2
    %v1884 = vadd.f32 %v1882, %v1883
    %v1885 = vrot.slane %v1884, 1
    %v1886 = vadd.f32 %v1884, %v1885
    %v1887 = vrot.slane %v1876, 4
    %v1888 = vadd.f32 %v1876, %v1887
    %v1889 = vrot.slane %v1888, 2
    %v1890 = vadd.f32 %v1888, %v1889
    %v1891 = vrot.slane %v1890, 1
    %v1892 = vadd.f32 %v1890, %v1891
    %v1893 = vrot.slane %v1878, 4
    %v1894 = vadd.f32 %v1878, %v1893
    %v1895 = vrot.slane %v1894, 2
    %v1896 = vadd.f32 %v1894, %v1895
    %v1897 = vrot.slane %v1896, 1
    %v1898 = vadd.f32 %v1896, %v1897
    %v1899 = vrot.slane %v1880, 4
    %v1900 = vadd.f32 %v1880, %v1899
    %v1901 = vrot.slane %v1900, 2
    %v1902 = vadd.f32 %v1900, %v1901
    %v1903 = vrot.slane %v1902, 1
    %v1904 = vadd.f32 %v1902, %v1903
    %v1905 = vrcp.pop %v1886
    %v1906 = vrcp.pop %v1892
    %v1907 = vrcp.pop %v1898
    %v1908 = vrcp.pop %v1904
    %v1909 = vmul.f32 %v1874, %v1905
    %v1910 = vmul.f32 %v1876, %v1906
    %v1911 = vmul.f32 %v1878, %v1907
    %v1912 = vmul.f32 %v1880, %v1908
    %v1913 = vmul.f32 %v1909, %v122
    %v1914 = vmul.f32 %v1909, %v123
    %v1915 = vmul.f32 %v1909, %v124
    %v1916 = vmul.f32 %v1909, %v125
    %v1917 = vmul.f32 %v1909, %v126
    %v1918 = vmul.f32 %v1909, %v127
    %v1919 = vmul.f32 %v1909, %v128
    %v1920 = vmul.f32 %v1909, %v129
    %v1921 = vmul.f32 %v1909, %v130
    %v1922 = vmul.f32 %v1909, %v131
    %v1923 = vmul.f32 %v1909, %v132
    %v1924 = vmul.f32 %v1909, %v133
    %v1925 = vmul.f32 %v1909, %v134
    %v1926 = vmul.f32 %v1909, %v135
    %v1927 = vmul.f32 %v1909, %v136
    %v1928 = vmul.f32 %v1909, %v137
    %v1929 = vmul.f32 %v1910, %v138
    %v1930 = vmul.f32 %v1910, %v139
    %v1931 = vmul.f32 %v1910, %v140
    %v1932 = vmul.f32 %v1910, %v141
    %v1933 = vmul.f32 %v1910, %v142
    %v1934 = vmul.f32 %v1910, %v143
    %v1935 = vmul.f32 %v1910, %v144
    %v1936 = vmul.f32 %v1910, %v145
    %v1937 = vmul.f32 %v1910, %v146
    %v1938 = vmul.f32 %v1910, %v147
    %v1939 = vmul.f32 %v1910, %v148
    %v1940 = vmul.f32 %v1910, %v149
    %v1941 = vmul.f32 %v1910, %v150
    %v1942 = vmul.f32 %v1910, %v151
    %v1943 = vmul.f32 %v1910, %v152
    %v1944 = vmul.f32 %v1910, %v153
    %v1945 = vmul.f32 %v1911, %v154
    %v1946 = vmul.f32 %v1911, %v155
    %v1947 = vmul.f32 %v1911, %v156
    %v1948 = vmul.f32 %v1911, %v157
    %v1949 = vmul.f32 %v1911, %v158
    %v1950 = vmul.f32 %v1911, %v159
    %v1951 = vmul.f32 %v1911, %v160
    %v1952 = vmul.f32 %v1911, %v161
    %v1953 = vmul.f32 %v1911, %v162
    %v1954 = vmul.f32 %v1911, %v163
    %v1955 = vmul.f32 %v1911, %v164
    %v1956 = vmul.f32 %v1911, %v165
    %v1957 = vmul.f32 %v1911, %v166
    %v1958 = vmul.f32 %v1911, %v167
    %v1959 = vmul.f32 %v1911, %v168
    %v1960 = vmul.f32 %v1911, %v169
    %v1961 = vmul.f32 %v1912, %v170
    %v1962 = vmul.f32 %v1912, %v171
    %v1963 = vmul.f32 %v1912, %v172
    %v1964 = vmul.f32 %v1912, %v173
    %v1965 = vmul.f32 %v1912, %v174
    %v1966 = vmul.f32 %v1912, %v175
    %v1967 = vmul.f32 %v1912, %v176
    %v1968 = vmul.f32 %v1912, %v177
    %v1969 = vmul.f32 %v1912, %v178
    %v1970 = vmul.f32 %v1912, %v179
    %v1971 = vmul.f32 %v1912, %v180
    %v1972 = vmul.f32 %v1912, %v181
    %v1973 = vmul.f32 %v1912, %v182
    %v1974 = vmul.f32 %v1912, %v183
    %v1975 = vmul.f32 %v1912, %v184
    %v1976 = vmul.f32 %v1912, %v185
    %v1977 = vrot.slane %v1913, 4
    %v1978 = vadd.f32 %v1913, %v1977
    %v1979 = vrot.slane %v1978, 2
    %v1980 = vadd.f32 %v1978, %v1979
    %v1981 = vrot.slane %v1980, 1
    %v1982 = vadd.f32 %v1980, %v1981
    %v1983 = vrot.slane %v1914, 4
    %v1984 = vadd.f32 %v1914, %v1983
    %v1985 = vrot.slane %v1984, 2
    %v1986 = vadd.f32 %v1984, %v1985
    %v1987 = vrot.slane %v1986, 1
    %v1988 = vadd.f32 %v1986, %v1987
    %v1989 = vrot.slane %v1915, 4
    %v1990 = vadd.f32 %v1915, %v1989
    %v1991 = vrot.slane %v1990, 2
    %v1992 = vadd.f32 %v1990, %v1991
    %v1993 = vrot.slane %v1992, 1
    %v1994 = vadd.f32 %v1992, %v1993
    %v1995 = vrot.slane %v1916, 4
    %v1996 = vadd.f32 %v1916, %v1995
    %v1997 = vrot.slane %v1996, 2
    %v1998 = vadd.f32 %v1996, %v1997
    %v1999 = vrot.slane %v1998, 1
    %v2000 = vadd.f32 %v1998, %v1999
    %v2001 = vrot.slane %v1917, 4
    %v2002 = vadd.f32 %v1917, %v2001
    %v2003 = vrot.slane %v2002, 2
    %v2004 = vadd.f32 %v2002, %v2003
    %v2005 = vrot.slane %v2004, 1
    %v2006 = vadd.f32 %v2004, %v2005
    %v2007 = vrot.slane %v1918, 4
    %v2008 = vadd.f32 %v1918, %v2007
    %v2009 = vrot.slane %v2008, 2
    %v2010 = vadd.f32 %v2008, %v2009
    %v2011 = vrot.slane %v2010, 1
    %v2012 = vadd.f32 %v2010, %v2011
    %v2013 = vrot.slane %v1919, 4
    %v2014 = vadd.f32 %v1919, %v2013
    %v2015 = vrot.slane %v2014, 2
    %v2016 = vadd.f32 %v2014, %v2015
    %v2017 = vrot.slane %v2016, 1
    %v2018 = vadd.f32 %v2016, %v2017
    %v2019 = vrot.slane %v1920, 4
    %v2020 = vadd.f32 %v1920, %v2019
    %v2021 = vrot.slane %v2020, 2
    %v2022 = vadd.f32 %v2020, %v2021
    %v2023 = vrot.slane %v2022, 1
    %v2024 = vadd.f32 %v2022, %v2023
    %v2025 = vrot.slane %v1921, 4
    %v2026 = vadd.f32 %v1921, %v2025
    %v2027 = vrot.slane %v2026, 2
    %v2028 = vadd.f32 %v2026, %v2027
    %v2029 = vrot.slane %v2028, 1
    %v2030 = vadd.f32 %v2028, %v2029
    %v2031 = vrot.slane %v1922, 4
    %v2032 = vadd.f32 %v1922, %v2031
    %v2033 = vrot.slane %v2032, 2
    %v2034 = vadd.f32 %v2032, %v2033
    %v2035 = vrot.slane %v2034, 1
    %v2036 = vadd.f32 %v2034, %v2035
    %v2037 = vrot.slane %v1923, 4
    %v2038 = vadd.f32 %v1923, %v2037
    %v2039 = vrot.slane %v2038, 2
    %v2040 = vadd.f32 %v2038, %v2039
    %v2041 = vrot.slane %v2040, 1
    %v2042 = vadd.f32 %v2040, %v2041
    %v2043 = vrot.slane %v1924, 4
    %v2044 = vadd.f32 %v1924, %v2043
    %v2045 = vrot.slane %v2044, 2
    %v2046 = vadd.f32 %v2044, %v2045
    %v2047 = vrot.slane %v2046, 1
    %v2048 = vadd.f32 %v2046, %v2047
    %v2049 = vrot.slane %v1925, 4
    %v2050 = vadd.f32 %v1925, %v2049
    %v2051 = vrot.slane %v2050, 2
    %v2052 = vadd.f32 %v2050, %v2051
    %v2053 = vrot.slane %v2052, 1
    %v2054 = vadd.f32 %v2052, %v2053
    %v2055 = vrot.slane %v1926, 4
    %v2056 = vadd.f32 %v1926, %v2055
    %v2057 = vrot.slane %v2056, 2
    %v2058 = vadd.f32 %v2056, %v2057
    %v2059 = vrot.slane %v2058, 1
    %v2060 = vadd.f32 %v2058, %v2059
    %v2061 = vrot.slane %v1927, 4
    %v2062 = vadd.f32 %v1927, %v2061
    %v2063 = vrot.slane %v2062, 2
    %v2064 = vadd.f32 %v2062, %v2063
    %v2065 = vrot.slane %v2064, 1
    %v2066 = vadd.f32 %v2064, %v2065
    %v2067 = vrot.slane %v1928, 4
    %v2068 = vadd.f32 %v1928, %v2067
    %v2069 = vrot.slane %v2068, 2
    %v2070 = vadd.f32 %v2068, %v2069
    %v2071 = vrot.slane %v2070, 1
    %v2072 = vadd.f32 %v2070, %v2071
    %v2073 = vrot.slane %v1929, 4
    %v2074 = vadd.f32 %v1929, %v2073
    %v2075 = vrot.slane %v2074, 2
    %v2076 = vadd.f32 %v2074, %v2075
    %v2077 = vrot.slane %v2076, 1
    %v2078 = vadd.f32 %v2076, %v2077
    %v2079 = vrot.slane %v1930, 4
    %v2080 = vadd.f32 %v1930, %v2079
    %v2081 = vrot.slane %v2080, 2
    %v2082 = vadd.f32 %v2080, %v2081
    %v2083 = vrot.slane %v2082, 1
    %v2084 = vadd.f32 %v2082, %v2083
    %v2085 = vrot.slane %v1931, 4
    %v2086 = vadd.f32 %v1931, %v2085
    %v2087 = vrot.slane %v2086, 2
    %v2088 = vadd.f32 %v2086, %v2087
    %v2089 = vrot.slane %v2088, 1
    %v2090 = vadd.f32 %v2088, %v2089
    %v2091 = vrot.slane %v1932, 4
    %v2092 = vadd.f32 %v1932, %v2091
    %v2093 = vrot.slane %v2092, 2
    %v2094 = vadd.f32 %v2092, %v2093
    %v2095 = vrot.slane %v2094, 1
    %v2096 = vadd.f32 %v2094, %v2095
    %v2097 = vrot.slane %v1933, 4
    %v2098 = vadd.f32 %v1933, %v2097
    %v2099 = vrot.slane %v2098, 2
    %v2100 = vadd.f32 %v2098, %v2099
    %v2101 = vrot.slane %v2100, 1
    %v2102 = vadd.f32 %v2100, %v2101
    %v2103 = vrot.slane %v1934, 4
    %v2104 = vadd.f32 %v1934, %v2103
    %v2105 = vrot.slane %v2104, 2
    %v2106 = vadd.f32 %v2104, %v2105
    %v2107 = vrot.slane %v2106, 1
    %v2108 = vadd.f32 %v2106, %v2107
    %v2109 = vrot.slane %v1935, 4
    %v2110 = vadd.f32 %v1935, %v2109
    %v2111 = vrot.slane %v2110, 2
    %v2112 = vadd.f32 %v2110, %v2111
    %v2113 = vrot.slane %v2112, 1
    %v2114 = vadd.f32 %v2112, %v2113
    %v2115 = vrot.slane %v1936, 4
    %v2116 = vadd.f32 %v1936, %v2115
    %v2117 = vrot.slane %v2116, 2
    %v2118 = vadd.f32 %v2116, %v2117
    %v2119 = vrot.slane %v2118, 1
    %v2120 = vadd.f32 %v2118, %v2119
    %v2121 = vrot.slane %v1937, 4
    %v2122 = vadd.f32 %v1937, %v2121
    %v2123 = vrot.slane %v2122, 2
    %v2124 = vadd.f32 %v2122, %v2123
    %v2125 = vrot.slane %v2124, 1
    %v2126 = vadd.f32 %v2124, %v2125
    %v2127 = vrot.slane %v1938, 4
    %v2128 = vadd.f32 %v1938, %v2127
    %v2129 = vrot.slane %v2128, 2
    %v2130 = vadd.f32 %v2128, %v2129
    %v2131 = vrot.slane %v2130, 1
    %v2132 = vadd.f32 %v2130, %v2131
    %v2133 = vrot.slane %v1939, 4
    %v2134 = vadd.f32 %v1939, %v2133
    %v2135 = vrot.slane %v2134, 2
    %v2136 = vadd.f32 %v2134, %v2135
    %v2137 = vrot.slane %v2136, 1
    %v2138 = vadd.f32 %v2136, %v2137
    %v2139 = vrot.slane %v1940, 4
    %v2140 = vadd.f32 %v1940, %v2139
    %v2141 = vrot.slane %v2140, 2
    %v2142 = vadd.f32 %v2140, %v2141
    %v2143 = vrot.slane %v2142, 1
    %v2144 = vadd.f32 %v2142, %v2143
    %v2145 = vrot.slane %v1941, 4
    %v2146 = vadd.f32 %v1941, %v2145
    %v2147 = vrot.slane %v2146, 2
    %v2148 = vadd.f32 %v2146, %v2147
    %v2149 = vrot.slane %v2148, 1
    %v2150 = vadd.f32 %v2148, %v2149
    %v2151 = vrot.slane %v1942, 4
    %v2152 = vadd.f32 %v1942, %v2151
    %v2153 = vrot.slane %v2152, 2
    %v2154 = vadd.f32 %v2152, %v2153
    %v2155 = vrot.slane %v2154, 1
    %v2156 = vadd.f32 %v2154, %v2155
    %v2157 = vrot.slane %v1943, 4
    %v2158 = vadd.f32 %v1943, %v2157
    %v2159 = vrot.slane %v2158, 2
    %v2160 = vadd.f32 %v2158, %v2159
    %v2161 = vrot.slane %v2160, 1
    %v2162 = vadd.f32 %v2160, %v2161
    %v2163 = vrot.slane %v1944, 4
    %v2164 = vadd.f32 %v1944, %v2163
    %v2165 = vrot.slane %v2164, 2
    %v2166 = vadd.f32 %v2164, %v2165
    %v2167 = vrot.slane %v2166, 1
    %v2168 = vadd.f32 %v2166, %v2167
    %v2169 = vrot.slane %v1945, 4
    %v2170 = vadd.f32 %v1945, %v2169
    %v2171 = vrot.slane %v2170, 2
    %v2172 = vadd.f32 %v2170, %v2171
    %v2173 = vrot.slane %v2172, 1
    %v2174 = vadd.f32 %v2172, %v2173
    %v2175 = vrot.slane %v1946, 4
    %v2176 = vadd.f32 %v1946, %v2175
    %v2177 = vrot.slane %v2176, 2
    %v2178 = vadd.f32 %v2176, %v2177
    %v2179 = vrot.slane %v2178, 1
    %v2180 = vadd.f32 %v2178, %v2179
    %v2181 = vrot.slane %v1947, 4
    %v2182 = vadd.f32 %v1947, %v2181
    %v2183 = vrot.slane %v2182, 2
    %v2184 = vadd.f32 %v2182, %v2183
    %v2185 = vrot.slane %v2184, 1
    %v2186 = vadd.f32 %v2184, %v2185
    %v2187 = vrot.slane %v1948, 4
    %v2188 = vadd.f32 %v1948, %v2187
    %v2189 = vrot.slane %v2188, 2
    %v2190 = vadd.f32 %v2188, %v2189
    %v2191 = vrot.slane %v2190, 1
    %v2192 = vadd.f32 %v2190, %v2191
    %v2193 = vrot.slane %v1949, 4
    %v2194 = vadd.f32 %v1949, %v2193
    %v2195 = vrot.slane %v2194, 2
    %v2196 = vadd.f32 %v2194, %v2195
    %v2197 = vrot.slane %v2196, 1
    %v2198 = vadd.f32 %v2196, %v2197
    %v2199 = vrot.slane %v1950, 4
    %v2200 = vadd.f32 %v1950, %v2199
    %v2201 = vrot.slane %v2200, 2
    %v2202 = vadd.f32 %v2200, %v2201
    %v2203 = vrot.slane %v2202, 1
    %v2204 = vadd.f32 %v2202, %v2203
    %v2205 = vrot.slane %v1951, 4
    %v2206 = vadd.f32 %v1951, %v2205
    %v2207 = vrot.slane %v2206, 2
    %v2208 = vadd.f32 %v2206, %v2207
    %v2209 = vrot.slane %v2208, 1
    %v2210 = vadd.f32 %v2208, %v2209
    %v2211 = vrot.slane %v1952, 4
    %v2212 = vadd.f32 %v1952, %v2211
    %v2213 = vrot.slane %v2212, 2
    %v2214 = vadd.f32 %v2212, %v2213
    %v2215 = vrot.slane %v2214, 1
    %v2216 = vadd.f32 %v2214, %v2215
    %v2217 = vrot.slane %v1953, 4
    %v2218 = vadd.f32 %v1953, %v2217
    %v2219 = vrot.slane %v2218, 2
    %v2220 = vadd.f32 %v2218, %v2219
    %v2221 = vrot.slane %v2220, 1
    %v2222 = vadd.f32 %v2220, %v2221
    %v2223 = vrot.slane %v1954, 4
    %v2224 = vadd.f32 %v1954, %v2223
    %v2225 = vrot.slane %v2224, 2
    %v2226 = vadd.f32 %v2224, %v2225
    %v2227 = vrot.slane %v2226, 1
    %v2228 = vadd.f32 %v2226, %v2227
    %v2229 = vrot.slane %v1955, 4
    %v2230 = vadd.f32 %v1955, %v2229
    %v2231 = vrot.slane %v2230, 2
    %v2232 = vadd.f32 %v2230, %v2231
    %v2233 = vrot.slane %v2232, 1
    %v2234 = vadd.f32 %v2232, %v2233
    %v2235 = vrot.slane %v1956, 4
    %v2236 = vadd.f32 %v1956, %v2235
    %v2237 = vrot.slane %v2236, 2
    %v2238 = vadd.f32 %v2236, %v2237
    %v2239 = vrot.slane %v2238, 1
    %v2240 = vadd.f32 %v2238, %v2239
    %v2241 = vrot.slane %v1957, 4
    %v2242 = vadd.f32 %v1957, %v2241
    %v2243 = vrot.slane %v2242, 2
    %v2244 = vadd.f32 %v2242, %v2243
    %v2245 = vrot.slane %v2244, 1
    %v2246 = vadd.f32 %v2244, %v2245
    %v2247 = vrot.slane %v1958, 4
    %v2248 = vadd.f32 %v1958, %v2247
    %v2249 = vrot.slane %v2248, 2
    %v2250 = vadd.f32 %v2248, %v2249
    %v2251 = vrot.slane %v2250, 1
    %v2252 = vadd.f32 %v2250, %v2251
    %v2253 = vrot.slane %v1959, 4
    %v2254 = vadd.f32 %v1959, %v2253
    %v2255 = vrot.slane %v2254, 2
    %v2256 = vadd.f32 %v2254, %v2255
    %v2257 = vrot.slane %v2256, 1
    %v2258 = vadd.f32 %v2256, %v2257
    %v2259 = vrot.slane %v1960, 4
    %v2260 = vadd.f32 %v1960, %v2259
    %v2261 = vrot.slane %v2260, 2
    %v2262 = vadd.f32 %v2260, %v2261
    %v2263 = vrot.slane %v2262, 1
    %v2264 = vadd.f32 %v2262, %v2263
    %v2265 = vrot.slane %v1961, 4
    %v2266 = vadd.f32 %v1961, %v2265
    %v2267 = vrot.slane %v2266, 2
    %v2268 = vadd.f32 %v2266, %v2267
    %v2269 = vrot.slane %v2268, 1
    %v2270 = vadd.f32 %v2268, %v2269
    %v2271 = vrot.slane %v1962, 4
    %v2272 = vadd.f32 %v1962, %v2271
    %v2273 = vrot.slane %v2272, 2
    %v2274 = vadd.f32 %v2272, %v2273
    %v2275 = vrot.slane %v2274, 1
    %v2276 = vadd.f32 %v2274, %v2275
    %v2277 = vrot.slane %v1963, 4
    %v2278 = vadd.f32 %v1963, %v2277
    %v2279 = vrot.slane %v2278, 2
    %v2280 = vadd.f32 %v2278, %v2279
    %v2281 = vrot.slane %v2280, 1
    %v2282 = vadd.f32 %v2280, %v2281
    %v2283 = vrot.slane %v1964, 4
    %v2284 = vadd.f32 %v1964, %v2283
    %v2285 = vrot.slane %v2284, 2
    %v2286 = vadd.f32 %v2284, %v2285
    %v2287 = vrot.slane %v2286, 1
    %v2288 = vadd.f32 %v2286, %v2287
    %v2289 = vrot.slane %v1965, 4
    %v2290 = vadd.f32 %v1965, %v2289
    %v2291 = vrot.slane %v2290, 2
    %v2292 = vadd.f32 %v2290, %v2291
    %v2293 = vrot.slane %v2292, 1
    %v2294 = vadd.f32 %v2292, %v2293
    %v2295 = vrot.slane %v1966, 4
    %v2296 = vadd.f32 %v1966, %v2295
    %v2297 = vrot.slane %v2296, 2
    %v2298 = vadd.f32 %v2296, %v2297
    %v2299 = vrot.slane %v2298, 1
    %v2300 = vadd.f32 %v2298, %v2299
    %v2301 = vrot.slane %v1967, 4
    %v2302 = vadd.f32 %v1967, %v2301
    %v2303 = vrot.slane %v2302, 2
    %v2304 = vadd.f32 %v2302, %v2303
    %v2305 = vrot.slane %v2304, 1
    %v2306 = vadd.f32 %v2304, %v2305
    %v2307 = vrot.slane %v1968, 4
    %v2308 = vadd.f32 %v1968, %v2307
    %v2309 = vrot.slane %v2308, 2
    %v2310 = vadd.f32 %v2308, %v2309
    %v2311 = vrot.slane %v2310, 1
    %v2312 = vadd.f32 %v2310, %v2311
    %v2313 = vrot.slane %v1969, 4
    %v2314 = vadd.f32 %v1969, %v2313
    %v2315 = vrot.slane %v2314, 2
    %v2316 = vadd.f32 %v2314, %v2315
    %v2317 = vrot.slane %v2316, 1
    %v2318 = vadd.f32 %v2316, %v2317
    %v2319 = vrot.slane %v1970, 4
    %v2320 = vadd.f32 %v1970, %v2319
    %v2321 = vrot.slane %v2320, 2
    %v2322 = vadd.f32 %v2320, %v2321
    %v2323 = vrot.slane %v2322, 1
    %v2324 = vadd.f32 %v2322, %v2323
    %v2325 = vrot.slane %v1971, 4
    %v2326 = vadd.f32 %v1971, %v2325
    %v2327 = vrot.slane %v2326, 2
    %v2328 = vadd.f32 %v2326, %v2327
    %v2329 = vrot.slane %v2328, 1
    %v2330 = vadd.f32 %v2328, %v2329
    %v2331 = vrot.slane %v1972, 4
    %v2332 = vadd.f32 %v1972, %v2331
    %v2333 = vrot.slane %v2332, 2
    %v2334 = vadd.f32 %v2332, %v2333
    %v2335 = vrot.slane %v2334, 1
    %v2336 = vadd.f32 %v2334, %v2335
    %v2337 = vrot.slane %v1973, 4
    %v2338 = vadd.f32 %v1973, %v2337
    %v2339 = vrot.slane %v2338, 2
    %v2340 = vadd.f32 %v2338, %v2339
    %v2341 = vrot.slane %v2340, 1
    %v2342 = vadd.f32 %v2340, %v2341
    %v2343 = vrot.slane %v1974, 4
    %v2344 = vadd.f32 %v1974, %v2343
    %v2345 = vrot.slane %v2344, 2
    %v2346 = vadd.f32 %v2344, %v2345
    %v2347 = vrot.slane %v2346, 1
    %v2348 = vadd.f32 %v2346, %v2347
    %v2349 = vrot.slane %v1975, 4
    %v2350 = vadd.f32 %v1975, %v2349
    %v2351 = vrot.slane %v2350, 2
    %v2352 = vadd.f32 %v2350, %v2351
    %v2353 = vrot.slane %v2352, 1
    %v2354 = vadd.f32 %v2352, %v2353
    %v2355 = vrot.slane %v1976, 4
    %v2356 = vadd.f32 %v1976, %v2355
    %v2357 = vrot.slane %v2356, 2
    %v2358 = vadd.f32 %v2356, %v2357
    %v2359 = vrot.slane %v2358, 1
    %v2360 = vadd.f32 %v2358, %v2359
    %v2361 = vpack.c.bf16 %v1982, %v1982
    %v2362 = vpack.c.bf16 %v1988, %v1988
    %v2363 = vpack.c.bf16 %v1994, %v1994
    %v2364 = vpack.c.bf16 %v2000, %v2000
    %v2365 = vpack.c.bf16 %v2006, %v2006
    %v2366 = vpack.c.bf16 %v2012, %v2012
    %v2367 = vpack.c.bf16 %v2018, %v2018
    %v2368 = vpack.c.bf16 %v2024, %v2024
    %v2369 = vpack.c.bf16 %v2030, %v2030
    %v2370 = vpack.c.bf16 %v2036, %v2036
    %v2371 = vpack.c.bf16 %v2042, %v2042
    %v2372 = vpack.c.bf16 %v2048, %v2048
    %v2373 = vpack.c.bf16 %v2054, %v2054
    %v2374 = vpack.c.bf16 %v2060, %v2060
    %v2375 = vpack.c.bf16 %v2066, %v2066
    %v2376 = vpack.c.bf16 %v2072, %v2072
    %v2377 = vpack.c.bf16 %v2078, %v2078
    %v2378 = vpack.c.bf16 %v2084, %v2084
    %v2379 = vpack.c.bf16 %v2090, %v2090
    %v2380 = vpack.c.bf16 %v2096, %v2096
    %v2381 = vpack.c.bf16 %v2102, %v2102
    %v2382 = vpack.c.bf16 %v2108, %v2108
    %v2383 = vpack.c.bf16 %v2114, %v2114
    %v2384 = vpack.c.bf16 %v2120, %v2120
    %v2385 = vpack.c.bf16 %v2126, %v2126
    %v2386 = vpack.c.bf16 %v2132, %v2132
    %v2387 = vpack.c.bf16 %v2138, %v2138
    %v2388 = vpack.c.bf16 %v2144, %v2144
    %v2389 = vpack.c.bf16 %v2150, %v2150
    %v2390 = vpack.c.bf16 %v2156, %v2156
    %v2391 = vpack.c.bf16 %v2162, %v2162
    %v2392 = vpack.c.bf16 %v2168, %v2168
    %v2393 = vpack.c.bf16 %v2174, %v2174
    %v2394 = vpack.c.bf16 %v2180, %v2180
    %v2395 = vpack.c.bf16 %v2186, %v2186
    %v2396 = vpack.c.bf16 %v2192, %v2192
    %v2397 = vpack.c.bf16 %v2198, %v2198
    %v2398 = vpack.c.bf16 %v2204, %v2204
    %v2399 = vpack.c.bf16 %v2210, %v2210
    %v2400 = vpack.c.bf16 %v2216, %v2216
    %v2401 = vpack.c.bf16 %v2222, %v2222
    %v2402 = vpack.c.bf16 %v2228, %v2228
    %v2403 = vpack.c.bf16 %v2234, %v2234
    %v2404 = vpack.c.bf16 %v2240, %v2240
    %v2405 = vpack.c.bf16 %v2246, %v2246
    %v2406 = vpack.c.bf16 %v2252, %v2252
    %v2407 = vpack.c.bf16 %v2258, %v2258
    %v2408 = vpack.c.bf16 %v2264, %v2264
    %v2409 = vpack.c.bf16 %v2270, %v2270
    %v2410 = vpack.c.bf16 %v2276, %v2276
    %v2411 = vpack.c.bf16 %v2282, %v2282
    %v2412 = vpack.c.bf16 %v2288, %v2288
    %v2413 = vpack.c.bf16 %v2294, %v2294
    %v2414 = vpack.c.bf16 %v2300, %v2300
    %v2415 = vpack.c.bf16 %v2306, %v2306
    %v2416 = vpack.c.bf16 %v2312, %v2312
    %v2417 = vpack.c.bf16 %v2318, %v2318
    %v2418 = vpack.c.bf16 %v2324, %v2324
    %v2419 = vpack.c.bf16 %v2330, %v2330
    %v2420 = vpack.c.bf16 %v2336, %v2336
    %v2421 = vpack.c.bf16 %v2342, %v2342
    %v2422 = vpack.c.bf16 %v2348, %v2348
    %v2423 = vpack.c.bf16 %v2354, %v2354
    %v2424 = vpack.c.bf16 %v2360, %v2360
    %v2425 = vld [vmem:[#allocation8] sm:$0xf]
    %v2426 = vld [vmem:[#allocation8 + $0x4] sm:$0xf]
    %v2427 = vld [vmem:[#allocation8 + $0x8] sm:$0xf]
    %v2428 = vld [vmem:[#allocation8 + $0xc] sm:$0xf]
    %v2429 = vld [vmem:[#allocation8 + $0x10] sm:$0xf]
    %v2430 = vld [vmem:[#allocation8 + $0x14] sm:$0xf]
    %v2431 = vld [vmem:[#allocation8 + $0x18] sm:$0xf]
    %v2432 = vld [vmem:[#allocation8 + $0x1c] sm:$0xf]
    %v2433 = vld [vmem:[#allocation8 + $0x20] sm:$0xf]
    %v2434 = vld [vmem:[#allocation8 + $0x24] sm:$0xf]
    %v2435 = vld [vmem:[#allocation8 + $0x28] sm:$0xf]
    %v2436 = vld [vmem:[#allocation8 + $0x2c] sm:$0xf]
    %v2437 = vld [vmem:[#allocation8 + $0x30] sm:$0xf]
    %v2438 = vld [vmem:[#allocation8 + $0x34] sm:$0xf]
    %v2439 = vld [vmem:[#allocation8 + $0x38] sm:$0xf]
    %v2440 = vld [vmem:[#allocation8 + $0x3c] sm:$0xf]
    %v2441 = vld [vmem:[#allocation8 + $0x40] sm:$0xf]
    %v2442 = vld [vmem:[#allocation8 + $0x44] sm:$0xf]
    %v2443 = vld [vmem:[#allocation8 + $0x48] sm:$0xf]
    %v2444 = vld [vmem:[#allocation8 + $0x4c] sm:$0xf]
    %v2445 = vld [vmem:[#allocation8 + $0x50] sm:$0xf]
    %v2446 = vld [vmem:[#allocation8 + $0x54] sm:$0xf]
    %v2447 = vld [vmem:[#allocation8 + $0x58] sm:$0xf]
    %v2448 = vld [vmem:[#allocation8 + $0x5c] sm:$0xf]
    %v2449 = vld [vmem:[#allocation8 + $0x60] sm:$0xf]
    %v2450 = vld [vmem:[#allocation8 + $0x64] sm:$0xf]
    %v2451 = vld [vmem:[#allocation8 + $0x68] sm:$0xf]
    %v2452 = vld [vmem:[#allocation8 + $0x6c] sm:$0xf]
    %v2453 = vld [vmem:[#allocation8 + $0x70] sm:$0xf]
    %v2454 = vld [vmem:[#allocation8 + $0x74] sm:$0xf]
    %v2455 = vld [vmem:[#allocation8 + $0x78] sm:$0xf]
    %v2456 = vld [vmem:[#allocation8 + $0x7c] sm:$0xf]
    %v2457 = vld [vmem:[#allocation8 + $0x80] sm:$0xf]
    %v2458 = vld [vmem:[#allocation8 + $0x84] sm:$0xf]
    %v2459 = vld [vmem:[#allocation8 + $0x88] sm:$0xf]
    %v2460 = vld [vmem:[#allocation8 + $0x8c] sm:$0xf]
    %v2461 = vld [vmem:[#allocation8 + $0x90] sm:$0xf]
    %v2462 = vld [vmem:[#allocation8 + $0x94] sm:$0xf]
    %v2463 = vld [vmem:[#allocation8 + $0x98] sm:$0xf]
    %v2464 = vld [vmem:[#allocation8 + $0x9c] sm:$0xf]
    %v2465 = vld [vmem:[#allocation8 + $0xa0] sm:$0xf]
    %v2466 = vld [vmem:[#allocation8 + $0xa4] sm:$0xf]
    %v2467 = vld [vmem:[#allocation8 + $0xa8] sm:$0xf]
    %v2468 = vld [vmem:[#allocation8 + $0xac] sm:$0xf]
    %v2469 = vld [vmem:[#allocation8 + $0xb0] sm:$0xf]
    %v2470 = vld [vmem:[#allocation8 + $0xb4] sm:$0xf]
    %v2471 = vld [vmem:[#allocation8 + $0xb8] sm:$0xf]
    %v2472 = vld [vmem:[#allocation8 + $0xbc] sm:$0xf]
    %v2473 = vld [vmem:[#allocation8 + $0xc0] sm:$0xf]
    %v2474 = vld [vmem:[#allocation8 + $0xc4] sm:$0xf]
    %v2475 = vld [vmem:[#allocation8 + $0xc8] sm:$0xf]
    %v2476 = vld [vmem:[#allocation8 + $0xcc] sm:$0xf]
    %v2477 = vld [vmem:[#allocation8 + $0xd0] sm:$0xf]
    %v2478 = vld [vmem:[#allocation8 + $0xd4] sm:$0xf]
    %v2479 = vld [vmem:[#allocation8 + $0xd8] sm:$0xf]
    %v2480 = vld [vmem:[#allocation8 + $0xdc] sm:$0xf]
    %v2481 = vld [vmem:[#allocation8 + $0xe0] sm:$0xf]
    %v2482 = vld [vmem:[#allocation8 + $0xe4] sm:$0xf]
    %v2483 = vld [vmem:[#allocation8 + $0xe8] sm:$0xf]
    %v2484 = vld [vmem:[#allocation8 + $0xec] sm:$0xf]
    %v2485 = vld [vmem:[#allocation8 + $0xf0] sm:$0xf]
    %v2486 = vld [vmem:[#allocation8 + $0xf4] sm:$0xf]
    %v2487 = vld [vmem:[#allocation8 + $0xf8] sm:$0xf]
    %v2488 = vld [vmem:[#allocation8 + $0xfc] sm:$0xf]
    %v2489 = vld [vmem:[#allocation8 + $0x100] sm:$0xf]
    %v2490 = vld [vmem:[#allocation8 + $0x104] sm:$0xf]
    %v2491 = vld [vmem:[#allocation8 + $0x108] sm:$0xf]
    %v2492 = vld [vmem:[#allocation8 + $0x10c] sm:$0xf]
    %v2493 = vld [vmem:[#allocation8 + $0x110] sm:$0xf]
    %v2494 = vld [vmem:[#allocation8 + $0x114] sm:$0xf]
    %v2495 = vld [vmem:[#allocation8 + $0x118] sm:$0xf]
    %v2496 = vld [vmem:[#allocation8 + $0x11c] sm:$0xf]
    %v2497 = vld [vmem:[#allocation8 + $0x120] sm:$0xf]
    %v2498 = vld [vmem:[#allocation8 + $0x124] sm:$0xf]
    %v2499 = vld [vmem:[#allocation8 + $0x128] sm:$0xf]
    %v2500 = vld [vmem:[#allocation8 + $0x12c] sm:$0xf]
    %v2501 = vld [vmem:[#allocation8 + $0x130] sm:$0xf]
    %v2502 = vld [vmem:[#allocation8 + $0x134] sm:$0xf]
    %v2503 = vld [vmem:[#allocation8 + $0x138] sm:$0xf]
    %v2504 = vld [vmem:[#allocation8 + $0x13c] sm:$0xf]
    %v2505 = vld [vmem:[#allocation8 + $0x140] sm:$0xf]
    %v2506 = vld [vmem:[#allocation8 + $0x144] sm:$0xf]
    %v2507 = vld [vmem:[#allocation8 + $0x148] sm:$0xf]
    %v2508 = vld [vmem:[#allocation8 + $0x14c] sm:$0xf]
    %v2509 = vld [vmem:[#allocation8 + $0x150] sm:$0xf]
    %v2510 = vld [vmem:[#allocation8 + $0x154] sm:$0xf]
    %v2511 = vld [vmem:[#allocation8 + $0x158] sm:$0xf]
    %v2512 = vld [vmem:[#allocation8 + $0x15c] sm:$0xf]
    %v2513 = vld [vmem:[#allocation8 + $0x160] sm:$0xf]
    %v2514 = vld [vmem:[#allocation8 + $0x164] sm:$0xf]
    %v2515 = vld [vmem:[#allocation8 + $0x168] sm:$0xf]
    %v2516 = vld [vmem:[#allocation8 + $0x16c] sm:$0xf]
    %v2517 = vld [vmem:[#allocation8 + $0x170] sm:$0xf]
    %v2518 = vld [vmem:[#allocation8 + $0x174] sm:$0xf]
    %v2519 = vld [vmem:[#allocation8 + $0x178] sm:$0xf]
    %v2520 = vld [vmem:[#allocation8 + $0x17c] sm:$0xf]
    %v2521 = vld [vmem:[#allocation8 + $0x180] sm:$0xf]
    %v2522 = vld [vmem:[#allocation8 + $0x184] sm:$0xf]
    %v2523 = vld [vmem:[#allocation8 + $0x188] sm:$0xf]
    %v2524 = vld [vmem:[#allocation8 + $0x18c] sm:$0xf]
    %v2525 = vld [vmem:[#allocation8 + $0x190] sm:$0xf]
    %v2526 = vld [vmem:[#allocation8 + $0x194] sm:$0xf]
    %v2527 = vld [vmem:[#allocation8 + $0x198] sm:$0xf]
    %v2528 = vld [vmem:[#allocation8 + $0x19c] sm:$0xf]
    %v2529 = vld [vmem:[#allocation8 + $0x1a0] sm:$0xf]
    %v2530 = vld [vmem:[#allocation8 + $0x1a4] sm:$0xf]
    %v2531 = vld [vmem:[#allocation8 + $0x1a8] sm:$0xf]
    %v2532 = vld [vmem:[#allocation8 + $0x1ac] sm:$0xf]
    %v2533 = vld [vmem:[#allocation8 + $0x1b0] sm:$0xf]
    %v2534 = vld [vmem:[#allocation8 + $0x1b4] sm:$0xf]
    %v2535 = vld [vmem:[#allocation8 + $0x1b8] sm:$0xf]
    %v2536 = vld [vmem:[#allocation8 + $0x1bc] sm:$0xf]
    %v2537 = vld [vmem:[#allocation8 + $0x1c0] sm:$0xf]
    %v2538 = vld [vmem:[#allocation8 + $0x1c4] sm:$0xf]
    %v2539 = vld [vmem:[#allocation8 + $0x1c8] sm:$0xf]
    %v2540 = vld [vmem:[#allocation8 + $0x1cc] sm:$0xf]
    %v2541 = vld [vmem:[#allocation8 + $0x1d0] sm:$0xf]
    %v2542 = vld [vmem:[#allocation8 + $0x1d4] sm:$0xf]
    %v2543 = vld [vmem:[#allocation8 + $0x1d8] sm:$0xf]
    %v2544 = vld [vmem:[#allocation8 + $0x1dc] sm:$0xf]
    %v2545 = vld [vmem:[#allocation8 + $0x1e0] sm:$0xf]
    %v2546 = vld [vmem:[#allocation8 + $0x1e4] sm:$0xf]
    %v2547 = vld [vmem:[#allocation8 + $0x1e8] sm:$0xf]
    %v2548 = vld [vmem:[#allocation8 + $0x1ec] sm:$0xf]
    %v2549 = vld [vmem:[#allocation8 + $0x1f0] sm:$0xf]
    %v2550 = vld [vmem:[#allocation8 + $0x1f4] sm:$0xf]
    %v2551 = vld [vmem:[#allocation8 + $0x1f8] sm:$0xf]
    %v2552 = vld [vmem:[#allocation8 + $0x1fc] sm:$0xf]
    %v2553 = vld [vmem:[#allocation8 + $0x200] sm:$0xf]
    %v2554 = vld [vmem:[#allocation8 + $0x204] sm:$0xf]
    %v2555 = vld [vmem:[#allocation8 + $0x208] sm:$0xf]
    %v2556 = vld [vmem:[#allocation8 + $0x20c] sm:$0xf]
    %v2557 = vld [vmem:[#allocation8 + $0x210] sm:$0xf]
    %v2558 = vld [vmem:[#allocation8 + $0x214] sm:$0xf]
    %v2559 = vld [vmem:[#allocation8 + $0x218] sm:$0xf]
    %v2560 = vld [vmem:[#allocation8 + $0x21c] sm:$0xf]
    %v2561 = vld [vmem:[#allocation8 + $0x220] sm:$0xf]
    %v2562 = vld [vmem:[#allocation8 + $0x224] sm:$0xf]
    %v2563 = vld [vmem:[#allocation8 + $0x228] sm:$0xf]
    %v2564 = vld [vmem:[#allocation8 + $0x22c] sm:$0xf]
    %v2565 = vld [vmem:[#allocation8 + $0x230] sm:$0xf]
    %v2566 = vld [vmem:[#allocation8 + $0x234] sm:$0xf]
    %v2567 = vld [vmem:[#allocation8 + $0x238] sm:$0xf]
    %v2568 = vld [vmem:[#allocation8 + $0x23c] sm:$0xf]
    %v2569 = vld [vmem:[#allocation8 + $0x240] sm:$0xf]
    %v2570 = vld [vmem:[#allocation8 + $0x244] sm:$0xf]
    %v2571 = vld [vmem:[#allocation8 + $0x248] sm:$0xf]
    %v2572 = vld [vmem:[#allocation8 + $0x24c] sm:$0xf]
    %v2573 = vld [vmem:[#allocation8 + $0x250] sm:$0xf]
    %v2574 = vld [vmem:[#allocation8 + $0x254] sm:$0xf]
    %v2575 = vld [vmem:[#allocation8 + $0x258] sm:$0xf]
    %v2576 = vld [vmem:[#allocation8 + $0x25c] sm:$0xf]
    %v2577 = vld [vmem:[#allocation8 + $0x260] sm:$0xf]
    %v2578 = vld [vmem:[#allocation8 + $0x264] sm:$0xf]
    %v2579 = vld [vmem:[#allocation8 + $0x268] sm:$0xf]
    %v2580 = vld [vmem:[#allocation8 + $0x26c] sm:$0xf]
    %v2581 = vld [vmem:[#allocation8 + $0x270] sm:$0xf]
    %v2582 = vld [vmem:[#allocation8 + $0x274] sm:$0xf]
    %v2583 = vld [vmem:[#allocation8 + $0x278] sm:$0xf]
    %v2584 = vld [vmem:[#allocation8 + $0x27c] sm:$0xf]
    %v2585 = vld [vmem:[#allocation8 + $0x280] sm:$0xf]
    %v2586 = vld [vmem:[#allocation8 + $0x284] sm:$0xf]
    %v2587 = vld [vmem:[#allocation8 + $0x288] sm:$0xf]
    %v2588 = vld [vmem:[#allocation8 + $0x28c] sm:$0xf]
    %v2589 = vld [vmem:[#allocation8 + $0x290] sm:$0xf]
    %v2590 = vld [vmem:[#allocation8 + $0x294] sm:$0xf]
    %v2591 = vld [vmem:[#allocation8 + $0x298] sm:$0xf]
    %v2592 = vld [vmem:[#allocation8 + $0x29c] sm:$0xf]
    %v2593 = vld [vmem:[#allocation8 + $0x2a0] sm:$0xf]
    %v2594 = vld [vmem:[#allocation8 + $0x2a4] sm:$0xf]
    %v2595 = vld [vmem:[#allocation8 + $0x2a8] sm:$0xf]
    %v2596 = vld [vmem:[#allocation8 + $0x2ac] sm:$0xf]
    %v2597 = vld [vmem:[#allocation8 + $0x2b0] sm:$0xf]
    %v2598 = vld [vmem:[#allocation8 + $0x2b4] sm:$0xf]
    %v2599 = vld [vmem:[#allocation8 + $0x2b8] sm:$0xf]
    %v2600 = vld [vmem:[#allocation8 + $0x2bc] sm:$0xf]
    %v2601 = vld [vmem:[#allocation8 + $0x2c0] sm:$0xf]
    %v2602 = vld [vmem:[#allocation8 + $0x2c4] sm:$0xf]
    %v2603 = vld [vmem:[#allocation8 + $0x2c8] sm:$0xf]
    %v2604 = vld [vmem:[#allocation8 + $0x2cc] sm:$0xf]
    %v2605 = vld [vmem:[#allocation8 + $0x2d0] sm:$0xf]
    %v2606 = vld [vmem:[#allocation8 + $0x2d4] sm:$0xf]
    %v2607 = vld [vmem:[#allocation8 + $0x2d8] sm:$0xf]
    %v2608 = vld [vmem:[#allocation8 + $0x2dc] sm:$0xf]
    %v2609 = vld [vmem:[#allocation8 + $0x2e0] sm:$0xf]
    %v2610 = vld [vmem:[#allocation8 + $0x2e4] sm:$0xf]
    %v2611 = vld [vmem:[#allocation8 + $0x2e8] sm:$0xf]
    %v2612 = vld [vmem:[#allocation8 + $0x2ec] sm:$0xf]
    %v2613 = vld [vmem:[#allocation8 + $0x2f0] sm:$0xf]
    %v2614 = vld [vmem:[#allocation8 + $0x2f4] sm:$0xf]
    %v2615 = vld [vmem:[#allocation8 + $0x2f8] sm:$0xf]
    %v2616 = vld [vmem:[#allocation8 + $0x2fc] sm:$0xf]
    %v2617 = vld [vmem:[#allocation8 + $0x300] sm:$0xf]
    %v2618 = vld [vmem:[#allocation8 + $0x304] sm:$0xf]
    %v2619 = vld [vmem:[#allocation8 + $0x308] sm:$0xf]
    %v2620 = vld [vmem:[#allocation8 + $0x30c] sm:$0xf]
    %v2621 = vld [vmem:[#allocation8 + $0x310] sm:$0xf]
    %v2622 = vld [vmem:[#allocation8 + $0x314] sm:$0xf]
    %v2623 = vld [vmem:[#allocation8 + $0x318] sm:$0xf]
    %v2624 = vld [vmem:[#allocation8 + $0x31c] sm:$0xf]
    %v2625 = vld [vmem:[#allocation8 + $0x320] sm:$0xf]
    %v2626 = vld [vmem:[#allocation8 + $0x324] sm:$0xf]
    %v2627 = vld [vmem:[#allocation8 + $0x328] sm:$0xf]
    %v2628 = vld [vmem:[#allocation8 + $0x32c] sm:$0xf]
    %v2629 = vld [vmem:[#allocation8 + $0x330] sm:$0xf]
    %v2630 = vld [vmem:[#allocation8 + $0x334] sm:$0xf]
    %v2631 = vld [vmem:[#allocation8 + $0x338] sm:$0xf]
    %v2632 = vld [vmem:[#allocation8 + $0x33c] sm:$0xf]
    %v2633 = vld [vmem:[#allocation8 + $0x340] sm:$0xf]
    %v2634 = vld [vmem:[#allocation8 + $0x344] sm:$0xf]
    %v2635 = vld [vmem:[#allocation8 + $0x348] sm:$0xf]
    %v2636 = vld [vmem:[#allocation8 + $0x34c] sm:$0xf]
    %v2637 = vld [vmem:[#allocation8 + $0x350] sm:$0xf]
    %v2638 = vld [vmem:[#allocation8 + $0x354] sm:$0xf]
    %v2639 = vld [vmem:[#allocation8 + $0x358] sm:$0xf]
    %v2640 = vld [vmem:[#allocation8 + $0x35c] sm:$0xf]
    %v2641 = vld [vmem:[#allocation8 + $0x360] sm:$0xf]
    %v2642 = vld [vmem:[#allocation8 + $0x364] sm:$0xf]
    %v2643 = vld [vmem:[#allocation8 + $0x368] sm:$0xf]
    %v2644 = vld [vmem:[#allocation8 + $0x36c] sm:$0xf]
    %v2645 = vld [vmem:[#allocation8 + $0x370] sm:$0xf]
    %v2646 = vld [vmem:[#allocation8 + $0x374] sm:$0xf]
    %v2647 = vld [vmem:[#allocation8 + $0x378] sm:$0xf]
    %v2648 = vld [vmem:[#allocation8 + $0x37c] sm:$0xf]
    %v2649 = vld [vmem:[#allocation8 + $0x380] sm:$0xf]
    %v2650 = vld [vmem:[#allocation8 + $0x384] sm:$0xf]
    %v2651 = vld [vmem:[#allocation8 + $0x388] sm:$0xf]
    %v2652 = vld [vmem:[#allocation8 + $0x38c] sm:$0xf]
    %v2653 = vld [vmem:[#allocation8 + $0x390] sm:$0xf]
    %v2654 = vld [vmem:[#allocation8 + $0x394] sm:$0xf]
    %v2655 = vld [vmem:[#allocation8 + $0x398] sm:$0xf]
    %v2656 = vld [vmem:[#allocation8 + $0x39c] sm:$0xf]
    %v2657 = vld [vmem:[#allocation8 + $0x3a0] sm:$0xf]
    %v2658 = vld [vmem:[#allocation8 + $0x3a4] sm:$0xf]
    %v2659 = vld [vmem:[#allocation8 + $0x3a8] sm:$0xf]
    %v2660 = vld [vmem:[#allocation8 + $0x3ac] sm:$0xf]
    %v2661 = vld [vmem:[#allocation8 + $0x3b0] sm:$0xf]
    %v2662 = vld [vmem:[#allocation8 + $0x3b4] sm:$0xf]
    %v2663 = vld [vmem:[#allocation8 + $0x3b8] sm:$0xf]
    %v2664 = vld [vmem:[#allocation8 + $0x3bc] sm:$0xf]
    %v2665 = vld [vmem:[#allocation8 + $0x3c0] sm:$0xf]
    %v2666 = vld [vmem:[#allocation8 + $0x3c4] sm:$0xf]
    %v2667 = vld [vmem:[#allocation8 + $0x3c8] sm:$0xf]
    %v2668 = vld [vmem:[#allocation8 + $0x3cc] sm:$0xf]
    %v2669 = vld [vmem:[#allocation8 + $0x3d0] sm:$0xf]
    %v2670 = vld [vmem:[#allocation8 + $0x3d4] sm:$0xf]
    %v2671 = vld [vmem:[#allocation8 + $0x3d8] sm:$0xf]
    %v2672 = vld [vmem:[#allocation8 + $0x3dc] sm:$0xf]
    %v2673 = vld [vmem:[#allocation8 + $0x3e0] sm:$0xf]
    %v2674 = vld [vmem:[#allocation8 + $0x3e4] sm:$0xf]
    %v2675 = vld [vmem:[#allocation8 + $0x3e8] sm:$0xf]
    %v2676 = vld [vmem:[#allocation8 + $0x3ec] sm:$0xf]
    %v2677 = vld [vmem:[#allocation8 + $0x3f0] sm:$0xf]
    %v2678 = vld [vmem:[#allocation8 + $0x3f4] sm:$0xf]
    %v2679 = vld [vmem:[#allocation8 + $0x3f8] sm:$0xf]
    %v2680 = vld [vmem:[#allocation8 + $0x3fc] sm:$0xf]
    %v2681 = vlaneseq
    %v2682 = vshrl.u32 %v2681, 7
    %v2683 = vsub.s32 2, %v2682
    %v2684 = vrot.slane %v186, %v2683
    %v2749 = vunpack.c.l.b16 %v2361
    %v2750 = vunpack.c.l.b16 %v2362
    %v2751 = vunpack.c.l.b16 %v2363
    %v2752 = vunpack.c.l.b16 %v2364
    %v2753 = vunpack.c.l.b16 %v2365
    %v2754 = vunpack.c.l.b16 %v2366
    %v2755 = vunpack.c.l.b16 %v2367
    %v2756 = vunpack.c.l.b16 %v2368
    %v2757 = vunpack.c.l.b16 %v2369
    %v2758 = vunpack.c.l.b16 %v2370
    %v2759 = vunpack.c.l.b16 %v2371
    %v2760 = vunpack.c.l.b16 %v2372
    %v2761 = vunpack.c.l.b16 %v2373
    %v2762 = vunpack.c.l.b16 %v2374
    %v2763 = vunpack.c.l.b16 %v2375
    %v2764 = vunpack.c.l.b16 %v2376
    %v2765 = vunpack.c.l.b16 %v2377
    %v2766 = vunpack.c.l.b16 %v2378
    %v2767 = vunpack.c.l.b16 %v2379
    %v2768 = vunpack.c.l.b16 %v2380
    %v2769 = vunpack.c.l.b16 %v2381
    %v2770 = vunpack.c.l.b16 %v2382
    %v2771 = vunpack.c.l.b16 %v2383
    %v2772 = vunpack.c.l.b16 %v2384
    %v2773 = vunpack.c.l.b16 %v2385
    %v2774 = vunpack.c.l.b16 %v2386
    %v2775 = vunpack.c.l.b16 %v2387
    %v2776 = vunpack.c.l.b16 %v2388
    %v2777 = vunpack.c.l.b16 %v2389
    %v2778 = vunpack.c.l.b16 %v2390
    %v2779 = vunpack.c.l.b16 %v2391
    %v2780 = vunpack.c.l.b16 %v2392
    %v2781 = vunpack.c.l.b16 %v2393
    %v2782 = vunpack.c.l.b16 %v2394
    %v2783 = vunpack.c.l.b16 %v2395
    %v2784 = vunpack.c.l.b16 %v2396
    %v2785 = vunpack.c.l.b16 %v2397
    %v2786 = vunpack.c.l.b16 %v2398
    %v2787 = vunpack.c.l.b16 %v2399
    %v2788 = vunpack.c.l.b16 %v2400
    %v2789 = vunpack.c.l.b16 %v2401
    %v2790 = vunpack.c.l.b16 %v2402
    %v2791 = vunpack.c.l.b16 %v2403
    %v2792 = vunpack.c.l.b16 %v2404
    %v2793 = vunpack.c.l.b16 %v2405
    %v2794 = vunpack.c.l.b16 %v2406
    %v2795 = vunpack.c.l.b16 %v2407
    %v2796 = vunpack.c.l.b16 %v2408
    %v2797 = vunpack.c.l.b16 %v2409
    %v2798 = vunpack.c.l.b16 %v2410
    %v2799 = vunpack.c.l.b16 %v2411
    %v2800 = vunpack.c.l.b16 %v2412
    %v2801 = vunpack.c.l.b16 %v2413
    %v2802 = vunpack.c.l.b16 %v2414
    %v2803 = vunpack.c.l.b16 %v2415
    %v2804 = vunpack.c.l.b16 %v2416
    %v2805 = vunpack.c.l.b16 %v2417
    %v2806 = vunpack.c.l.b16 %v2418
    %v2807 = vunpack.c.l.b16 %v2419
    %v2808 = vunpack.c.l.b16 %v2420
    %v2809 = vunpack.c.l.b16 %v2421
    %v2810 = vunpack.c.l.b16 %v2422
    %v2811 = vunpack.c.l.b16 %v2423
    %v2812 = vunpack.c.l.b16 %v2424
    %vm2813 = vcmask 1041409
    %v2814 = vsel %vm2813, %v2765, %v2749
    %vm2815 = vcmask 1042434
    %v2816 = vsel %vm2815, %v2781, %v2814
    %vm2817 = vcmask 1043459
    %v2818 = vsel %vm2817, %v2797, %v2816
    %v2819 = vsel %vm2813, %v2766, %v2750
    %v2820 = vsel %vm2815, %v2782, %v2819
    %v2821 = vsel %vm2817, %v2798, %v2820
    %v2822 = vsel %vm2813, %v2767, %v2751
    %v2823 = vsel %vm2815, %v2783, %v2822
    %v2824 = vsel %vm2817, %v2799, %v2823
    %v2825 = vsel %vm2813, %v2768, %v2752
    %v2826 = vsel %vm2815, %v2784, %v2825
    %v2827 = vsel %vm2817, %v2800, %v2826
    %v2828 = vsel %vm2813, %v2769, %v2753
    %v2829 = vsel %vm2815, %v2785, %v2828
    %v2830 = vsel %vm2817, %v2801, %v2829
    %v2831 = vsel %vm2813, %v2770, %v2754
    %v2832 = vsel %vm2815, %v2786, %v2831
    %v2833 = vsel %vm2817, %v2802, %v2832
    %v2834 = vsel %vm2813, %v2771, %v2755
    %v2835 = vsel %vm2815, %v2787, %v2834
    %v2836 = vsel %vm2817, %v2803, %v2835
    %v2837 = vsel %vm2813, %v2772, %v2756
    %v2838 = vsel %vm2815, %v2788, %v2837
    %v2839 = vsel %vm2817, %v2804, %v2838
    %v2840 = vsel %vm2813, %v2773, %v2757
    %v2841 = vsel %vm2815, %v2789, %v2840
    %v2842 = vsel %vm2817, %v2805, %v2841
    %v2843 = vsel %vm2813, %v2774, %v2758
    %v2844 = vsel %vm2815, %v2790, %v2843
    %v2845 = vsel %vm2817, %v2806, %v2844
    %v2846 = vsel %vm2813, %v2775, %v2759
    %v2847 = vsel %vm2815, %v2791, %v2846
    %v2848 = vsel %vm2817, %v2807, %v2847
    %v2849 = vsel %vm2813, %v2776, %v2760
    %v2850 = vsel %vm2815, %v2792, %v2849
    %v2851 = vsel %vm2817, %v2808, %v2850
    %v2852 = vsel %vm2813, %v2777, %v2761
    %v2853 = vsel %vm2815, %v2793, %v2852
    %v2854 = vsel %vm2817, %v2809, %v2853
    %v2855 = vsel %vm2813, %v2778, %v2762
    %v2856 = vsel %vm2815, %v2794, %v2855
    %v2857 = vsel %vm2817, %v2810, %v2856
    %v2858 = vsel %vm2813, %v2779, %v2763
    %v2859 = vsel %vm2815, %v2795, %v2858
    %v2860 = vsel %vm2817, %v2811, %v2859
    %v2861 = vsel %vm2813, %v2780, %v2764
    %v2862 = vsel %vm2815, %v2796, %v2861
    %v2863 = vsel %vm2817, %v2812, %v2862
    %v2864 = vpack.c.b16 %v2818, %v2818
    %v2865 = vpack.c.b16 %v2821, %v2821
    %v2866 = vpack.c.b16 %v2824, %v2824
    %v2867 = vpack.c.b16 %v2827, %v2827
    %v2868 = vpack.c.b16 %v2830, %v2830
    %v2869 = vpack.c.b16 %v2833, %v2833
    %v2870 = vpack.c.b16 %v2836, %v2836
    %v2871 = vpack.c.b16 %v2839, %v2839
    %v2872 = vpack.c.b16 %v2842, %v2842
    %v2873 = vpack.c.b16 %v2845, %v2845
    %v2874 = vpack.c.b16 %v2848, %v2848
    %v2875 = vpack.c.b16 %v2851, %v2851
    %v2876 = vpack.c.b16 %v2854, %v2854
    %v2877 = vpack.c.b16 %v2857, %v2857
    %v2878 = vpack.c.b16 %v2860, %v2860
    %v2879 = vpack.c.b16 %v2863, %v2863
    %v3152 = vunpack.c.l.b16 %v2425
    %v3153 = vunpack.c.l.b16 %v2426
    %v3154 = vunpack.c.l.b16 %v2427
    %v3155 = vunpack.c.l.b16 %v2428
    %v3156 = vunpack.c.l.b16 %v2429
    %v3157 = vunpack.c.l.b16 %v2430
    %v3158 = vunpack.c.l.b16 %v2431
    %v3159 = vunpack.c.l.b16 %v2432
    %v3160 = vunpack.c.l.b16 %v2433
    %v3161 = vunpack.c.l.b16 %v2434
    %v3162 = vunpack.c.l.b16 %v2435
    %v3163 = vunpack.c.l.b16 %v2436
    %v3164 = vunpack.c.l.b16 %v2437
    %v3165 = vunpack.c.l.b16 %v2438
    %v3166 = vunpack.c.l.b16 %v2439
    %v3167 = vunpack.c.l.b16 %v2440
    %v3168 = vunpack.c.l.b16 %v2441
    %v3169 = vunpack.c.l.b16 %v2442
    %v3170 = vunpack.c.l.b16 %v2443
    %v3171 = vunpack.c.l.b16 %v2444
    %v3172 = vunpack.c.l.b16 %v2445
    %v3173 = vunpack.c.l.b16 %v2446
    %v3174 = vunpack.c.l.b16 %v2447
    %v3175 = vunpack.c.l.b16 %v2448
    %v3176 = vunpack.c.l.b16 %v2449
    %v3177 = vunpack.c.l.b16 %v2450
    %v3178 = vunpack.c.l.b16 %v2451
    %v3179 = vunpack.c.l.b16 %v2452
    %v3180 = vunpack.c.l.b16 %v2453
    %v3181 = vunpack.c.l.b16 %v2454
    %v3182 = vunpack.c.l.b16 %v2455
    %v3183 = vunpack.c.l.b16 %v2456
    %v3184 = vunpack.c.l.b16 %v2457
    %v3185 = vunpack.c.l.b16 %v2458
    %v3186 = vunpack.c.l.b16 %v2459
    %v3187 = vunpack.c.l.b16 %v2460
    %v3188 = vunpack.c.l.b16 %v2461
    %v3189 = vunpack.c.l.b16 %v2462
    %v3190 = vunpack.c.l.b16 %v2463
    %v3191 = vunpack.c.l.b16 %v2464
    %v3192 = vunpack.c.l.b16 %v2465
    %v3193 = vunpack.c.l.b16 %v2466
    %v3194 = vunpack.c.l.b16 %v2467
    %v3195 = vunpack.c.l.b16 %v2468
    %v3196 = vunpack.c.l.b16 %v2469
    %v3197 = vunpack.c.l.b16 %v2470
    %v3198 = vunpack.c.l.b16 %v2471
    %v3199 = vunpack.c.l.b16 %v2472
    %v3200 = vunpack.c.l.b16 %v2473
    %v3201 = vunpack.c.l.b16 %v2474
    %v3202 = vunpack.c.l.b16 %v2475
    %v3203 = vunpack.c.l.b16 %v2476
    %v3204 = vunpack.c.l.b16 %v2477
    %v3205 = vunpack.c.l.b16 %v2478
    %v3206 = vunpack.c.l.b16 %v2479
    %v3207 = vunpack.c.l.b16 %v2480
    %v3208 = vunpack.c.l.b16 %v2481
    %v3209 = vunpack.c.l.b16 %v2482
    %v3210 = vunpack.c.l.b16 %v2483
    %v3211 = vunpack.c.l.b16 %v2484
    %v3212 = vunpack.c.l.b16 %v2485
    %v3213 = vunpack.c.l.b16 %v2486
    %v3214 = vunpack.c.l.b16 %v2487
    %v3215 = vunpack.c.l.b16 %v2488
    %v3216 = vunpack.c.l.b16 %v2489
    %v3217 = vunpack.c.l.b16 %v2490
    %v3218 = vunpack.c.l.b16 %v2491
    %v3219 = vunpack.c.l.b16 %v2492
    %v3220 = vunpack.c.l.b16 %v2493
    %v3221 = vunpack.c.l.b16 %v2494
    %v3222 = vunpack.c.l.b16 %v2495
    %v3223 = vunpack.c.l.b16 %v2496
    %v3224 = vunpack.c.l.b16 %v2497
    %v3225 = vunpack.c.l.b16 %v2498
    %v3226 = vunpack.c.l.b16 %v2499
    %v3227 = vunpack.c.l.b16 %v2500
    %v3228 = vunpack.c.l.b16 %v2501
    %v3229 = vunpack.c.l.b16 %v2502
    %v3230 = vunpack.c.l.b16 %v2503
    %v3231 = vunpack.c.l.b16 %v2504
    %v3232 = vunpack.c.l.b16 %v2505
    %v3233 = vunpack.c.l.b16 %v2506
    %v3234 = vunpack.c.l.b16 %v2507
    %v3235 = vunpack.c.l.b16 %v2508
    %v3236 = vunpack.c.l.b16 %v2509
    %v3237 = vunpack.c.l.b16 %v2510
    %v3238 = vunpack.c.l.b16 %v2511
    %v3239 = vunpack.c.l.b16 %v2512
    %v3240 = vunpack.c.l.b16 %v2513
    %v3241 = vunpack.c.l.b16 %v2514
    %v3242 = vunpack.c.l.b16 %v2515
    %v3243 = vunpack.c.l.b16 %v2516
    %v3244 = vunpack.c.l.b16 %v2517
    %v3245 = vunpack.c.l.b16 %v2518
    %v3246 = vunpack.c.l.b16 %v2519
    %v3247 = vunpack.c.l.b16 %v2520
    %v3248 = vunpack.c.l.b16 %v2521
    %v3249 = vunpack.c.l.b16 %v2522
    %v3250 = vunpack.c.l.b16 %v2523
    %v3251 = vunpack.c.l.b16 %v2524
    %v3252 = vunpack.c.l.b16 %v2525
    %v3253 = vunpack.c.l.b16 %v2526
    %v3254 = vunpack.c.l.b16 %v2527
    %v3255 = vunpack.c.l.b16 %v2528
    %v3256 = vunpack.c.l.b16 %v2529
    %v3257 = vunpack.c.l.b16 %v2530
    %v3258 = vunpack.c.l.b16 %v2531
    %v3259 = vunpack.c.l.b16 %v2532
    %v3260 = vunpack.c.l.b16 %v2533
    %v3261 = vunpack.c.l.b16 %v2534
    %v3262 = vunpack.c.l.b16 %v2535
    %v3263 = vunpack.c.l.b16 %v2536
    %v3264 = vunpack.c.l.b16 %v2537
    %v3265 = vunpack.c.l.b16 %v2538
    %v3266 = vunpack.c.l.b16 %v2539
    %v3267 = vunpack.c.l.b16 %v2540
    %v3268 = vunpack.c.l.b16 %v2541
    %v3269 = vunpack.c.l.b16 %v2542
    %v3270 = vunpack.c.l.b16 %v2543
    %v3271 = vunpack.c.l.b16 %v2544
    %v3272 = vunpack.c.l.b16 %v2545
    %v3273 = vunpack.c.l.b16 %v2546
    %v3274 = vunpack.c.l.b16 %v2547
    %v3275 = vunpack.c.l.b16 %v2548
    %v3276 = vunpack.c.l.b16 %v2549
    %v3277 = vunpack.c.l.b16 %v2550
    %v3278 = vunpack.c.l.b16 %v2551
    %v3279 = vunpack.c.l.b16 %v2552
    %v3280 = vunpack.c.l.b16 %v2553
    %v3281 = vunpack.c.l.b16 %v2554
    %v3282 = vunpack.c.l.b16 %v2555
    %v3283 = vunpack.c.l.b16 %v2556
    %v3284 = vunpack.c.l.b16 %v2557
    %v3285 = vunpack.c.l.b16 %v2558
    %v3286 = vunpack.c.l.b16 %v2559
    %v3287 = vunpack.c.l.b16 %v2560
    %v3288 = vunpack.c.l.b16 %v2561
    %v3289 = vunpack.c.l.b16 %v2562
    %v3290 = vunpack.c.l.b16 %v2563
    %v3291 = vunpack.c.l.b16 %v2564
    %v3292 = vunpack.c.l.b16 %v2565
    %v3293 = vunpack.c.l.b16 %v2566
    %v3294 = vunpack.c.l.b16 %v2567
    %v3295 = vunpack.c.l.b16 %v2568
    %v3296 = vunpack.c.l.b16 %v2569
    %v3297 = vunpack.c.l.b16 %v2570
    %v3298 = vunpack.c.l.b16 %v2571
    %v3299 = vunpack.c.l.b16 %v2572
    %v3300 = vunpack.c.l.b16 %v2573
    %v3301 = vunpack.c.l.b16 %v2574
    %v3302 = vunpack.c.l.b16 %v2575
    %v3303 = vunpack.c.l.b16 %v2576
    %v3304 = vunpack.c.l.b16 %v2577
    %v3305 = vunpack.c.l.b16 %v2578
    %v3306 = vunpack.c.l.b16 %v2579
    %v3307 = vunpack.c.l.b16 %v2580
    %v3308 = vunpack.c.l.b16 %v2581
    %v3309 = vunpack.c.l.b16 %v2582
    %v3310 = vunpack.c.l.b16 %v2583
    %v3311 = vunpack.c.l.b16 %v2584
    %v3312 = vunpack.c.l.b16 %v2585
    %v3313 = vunpack.c.l.b16 %v2586
    %v3314 = vunpack.c.l.b16 %v2587
    %v3315 = vunpack.c.l.b16 %v2588
    %v3316 = vunpack.c.l.b16 %v2589
    %v3317 = vunpack.c.l.b16 %v2590
    %v3318 = vunpack.c.l.b16 %v2591
    %v3319 = vunpack.c.l.b16 %v2592
    %v3320 = vunpack.c.l.b16 %v2593
    %v3321 = vunpack.c.l.b16 %v2594
    %v3322 = vunpack.c.l.b16 %v2595
    %v3323 = vunpack.c.l.b16 %v2596
    %v3324 = vunpack.c.l.b16 %v2597
    %v3325 = vunpack.c.l.b16 %v2598
    %v3326 = vunpack.c.l.b16 %v2599
    %v3327 = vunpack.c.l.b16 %v2600
    %v3328 = vunpack.c.l.b16 %v2601
    %v3329 = vunpack.c.l.b16 %v2602
    %v3330 = vunpack.c.l.b16 %v2603
    %v3331 = vunpack.c.l.b16 %v2604
    %v3332 = vunpack.c.l.b16 %v2605
    %v3333 = vunpack.c.l.b16 %v2606
    %v3334 = vunpack.c.l.b16 %v2607
    %v3335 = vunpack.c.l.b16 %v2608
    %v3336 = vunpack.c.l.b16 %v2609
    %v3337 = vunpack.c.l.b16 %v2610
    %v3338 = vunpack.c.l.b16 %v2611
    %v3339 = vunpack.c.l.b16 %v2612
    %v3340 = vunpack.c.l.b16 %v2613
    %v3341 = vunpack.c.l.b16 %v2614
    %v3342 = vunpack.c.l.b16 %v2615
    %v3343 = vunpack.c.l.b16 %v2616
    %v3344 = vunpack.c.l.b16 %v2617
    %v3345 = vunpack.c.l.b16 %v2618
    %v3346 = vunpack.c.l.b16 %v2619
    %v3347 = vunpack.c.l.b16 %v2620
    %v3348 = vunpack.c.l.b16 %v2621
    %v3349 = vunpack.c.l.b16 %v2622
    %v3350 = vunpack.c.l.b16 %v2623
    %v3351 = vunpack.c.l.b16 %v2624
    %v3352 = vunpack.c.l.b16 %v2625
    %v3353 = vunpack.c.l.b16 %v2626
    %v3354 = vunpack.c.l.b16 %v2627
    %v3355 = vunpack.c.l.b16 %v2628
    %v3356 = vunpack.c.l.b16 %v2629
    %v3357 = vunpack.c.l.b16 %v2630
    %v3358 = vunpack.c.l.b16 %v2631
    %v3359 = vunpack.c.l.b16 %v2632
    %v3360 = vunpack.c.l.b16 %v2633
    %v3361 = vunpack.c.l.b16 %v2634
    %v3362 = vunpack.c.l.b16 %v2635
    %v3363 = vunpack.c.l.b16 %v2636
    %v3364 = vunpack.c.l.b16 %v2637
    %v3365 = vunpack.c.l.b16 %v2638
    %v3366 = vunpack.c.l.b16 %v2639
    %v3367 = vunpack.c.l.b16 %v2640
    %v3368 = vunpack.c.l.b16 %v2641
    %v3369 = vunpack.c.l.b16 %v2642
    %v3370 = vunpack.c.l.b16 %v2643
    %v3371 = vunpack.c.l.b16 %v2644
    %v3372 = vunpack.c.l.b16 %v2645
    %v3373 = vunpack.c.l.b16 %v2646
    %v3374 = vunpack.c.l.b16 %v2647
    %v3375 = vunpack.c.l.b16 %v2648
    %v3376 = vunpack.c.l.b16 %v2649
    %v3377 = vunpack.c.l.b16 %v2650
    %v3378 = vunpack.c.l.b16 %v2651
    %v3379 = vunpack.c.l.b16 %v2652
    %v3380 = vunpack.c.l.b16 %v2653
    %v3381 = vunpack.c.l.b16 %v2654
    %v3382 = vunpack.c.l.b16 %v2655
    %v3383 = vunpack.c.l.b16 %v2656
    %v3384 = vunpack.c.l.b16 %v2657
    %v3385 = vunpack.c.l.b16 %v2658
    %v3386 = vunpack.c.l.b16 %v2659
    %v3387 = vunpack.c.l.b16 %v2660
    %v3388 = vunpack.c.l.b16 %v2661
    %v3389 = vunpack.c.l.b16 %v2662
    %v3390 = vunpack.c.l.b16 %v2663
    %v3391 = vunpack.c.l.b16 %v2664
    %v3392 = vunpack.c.l.b16 %v2665
    %v3393 = vunpack.c.l.b16 %v2666
    %v3394 = vunpack.c.l.b16 %v2667
    %v3395 = vunpack.c.l.b16 %v2668
    %v3396 = vunpack.c.l.b16 %v2669
    %v3397 = vunpack.c.l.b16 %v2670
    %v3398 = vunpack.c.l.b16 %v2671
    %v3399 = vunpack.c.l.b16 %v2672
    %v3400 = vunpack.c.l.b16 %v2673
    %v3401 = vunpack.c.l.b16 %v2674
    %v3402 = vunpack.c.l.b16 %v2675
    %v3403 = vunpack.c.l.b16 %v2676
    %v3404 = vunpack.c.l.b16 %v2677
    %v3405 = vunpack.c.l.b16 %v2678
    %v3406 = vunpack.c.l.b16 %v2679
    %v3407 = vunpack.c.l.b16 %v2680
    %v3408 = vpack.c.b16 %v3153, %v3152
    %v3409 = vpack.c.b16 %v3155, %v3154
    %v3410 = vpack.c.b16 %v3157, %v3156
    %v3411 = vpack.c.b16 %v3159, %v3158
    %v3412 = vpack.c.b16 %v3161, %v3160
    %v3413 = vpack.c.b16 %v3163, %v3162
    %v3414 = vpack.c.b16 %v3165, %v3164
    %v3415 = vpack.c.b16 %v3167, %v3166
    %v3416 = vpack.c.b16 %v3169, %v3168
    %v3417 = vpack.c.b16 %v3171, %v3170
    %v3418 = vpack.c.b16 %v3173, %v3172
    %v3419 = vpack.c.b16 %v3175, %v3174
    %v3420 = vpack.c.b16 %v3177, %v3176
    %v3421 = vpack.c.b16 %v3179, %v3178
    %v3422 = vpack.c.b16 %v3181, %v3180
    %v3423 = vpack.c.b16 %v3183, %v3182
    %v3424 = vpack.c.b16 %v3185, %v3184
    %v3425 = vpack.c.b16 %v3187, %v3186
    %v3426 = vpack.c.b16 %v3189, %v3188
    %v3427 = vpack.c.b16 %v3191, %v3190
    %v3428 = vpack.c.b16 %v3193, %v3192
    %v3429 = vpack.c.b16 %v3195, %v3194
    %v3430 = vpack.c.b16 %v3197, %v3196
    %v3431 = vpack.c.b16 %v3199, %v3198
    %v3432 = vpack.c.b16 %v3201, %v3200
    %v3433 = vpack.c.b16 %v3203, %v3202
    %v3434 = vpack.c.b16 %v3205, %v3204
    %v3435 = vpack.c.b16 %v3207, %v3206
    %v3436 = vpack.c.b16 %v3209, %v3208
    %v3437 = vpack.c.b16 %v3211, %v3210
    %v3438 = vpack.c.b16 %v3213, %v3212
    %v3439 = vpack.c.b16 %v3215, %v3214
    %v3440 = vpack.c.b16 %v3217, %v3216
    %v3441 = vpack.c.b16 %v3219, %v3218
    %v3442 = vpack.c.b16 %v3221, %v3220
    %v3443 = vpack.c.b16 %v3223, %v3222
    %v3444 = vpack.c.b16 %v3225, %v3224
    %v3445 = vpack.c.b16 %v3227, %v3226
    %v3446 = vpack.c.b16 %v3229, %v3228
    %v3447 = vpack.c.b16 %v3231, %v3230
    %v3448 = vpack.c.b16 %v3233, %v3232
    %v3449 = vpack.c.b16 %v3235, %v3234
    %v3450 = vpack.c.b16 %v3237, %v3236
    %v3451 = vpack.c.b16 %v3239, %v3238
    %v3452 = vpack.c.b16 %v3241, %v3240
    %v3453 = vpack.c.b16 %v3243, %v3242
    %v3454 = vpack.c.b16 %v3245, %v3244
    %v3455 = vpack.c.b16 %v3247, %v3246
    %v3456 = vpack.c.b16 %v3249, %v3248
    %v3457 = vpack.c.b16 %v3251, %v3250
    %v3458 = vpack.c.b16 %v3253, %v3252
    %v3459 = vpack.c.b16 %v3255, %v3254
    %v3460 = vpack.c.b16 %v3257, %v3256
    %v3461 = vpack.c.b16 %v3259, %v3258
    %v3462 = vpack.c.b16 %v3261, %v3260
    %v3463 = vpack.c.b16 %v3263, %v3262
    %v3464 = vpack.c.b16 %v3265, %v3264
    %v3465 = vpack.c.b16 %v3267, %v3266
    %v3466 = vpack.c.b16 %v3269, %v3268
    %v3467 = vpack.c.b16 %v3271, %v3270
    %v3468 = vpack.c.b16 %v3273, %v3272
    %v3469 = vpack.c.b16 %v3275, %v3274
    %v3470 = vpack.c.b16 %v3277, %v3276
    %v3471 = vpack.c.b16 %v3279, %v3278
    %v3472 = vpack.c.b16 %v3281, %v3280
    %v3473 = vpack.c.b16 %v3283, %v3282
    %v3474 = vpack.c.b16 %v3285, %v3284
    %v3475 = vpack.c.b16 %v3287, %v3286
    %v3476 = vpack.c.b16 %v3289, %v3288
    %v3477 = vpack.c.b16 %v3291, %v3290
    %v3478 = vpack.c.b16 %v3293, %v3292
    %v3479 = vpack.c.b16 %v3295, %v3294
    %v3480 = vpack.c.b16 %v3297, %v3296
    %v3481 = vpack.c.b16 %v3299, %v3298
    %v3482 = vpack.c.b16 %v3301, %v3300
    %v3483 = vpack.c.b16 %v3303, %v3302
    %v3484 = vpack.c.b16 %v3305, %v3304
    %v3485 = vpack.c.b16 %v3307, %v3306
    %v3486 = vpack.c.b16 %v3309, %v3308
    %v3487 = vpack.c.b16 %v3311, %v3310
    %v3488 = vpack.c.b16 %v3313, %v3312
    %v3489 = vpack.c.b16 %v3315, %v3314
    %v3490 = vpack.c.b16 %v3317, %v3316
    %v3491 = vpack.c.b16 %v3319, %v3318
    %v3492 = vpack.c.b16 %v3321, %v3320
    %v3493 = vpack.c.b16 %v3323, %v3322
    %v3494 = vpack.c.b16 %v3325, %v3324
    %v3495 = vpack.c.b16 %v3327, %v3326
    %v3496 = vpack.c.b16 %v3329, %v3328
    %v3497 = vpack.c.b16 %v3331, %v3330
    %v3498 = vpack.c.b16 %v3333, %v3332
    %v3499 = vpack.c.b16 %v3335, %v3334
    %v3500 = vpack.c.b16 %v3337, %v3336
    %v3501 = vpack.c.b16 %v3339, %v3338
    %v3502 = vpack.c.b16 %v3341, %v3340
    %v3503 = vpack.c.b16 %v3343, %v3342
    %v3504 = vpack.c.b16 %v3345, %v3344
    %v3505 = vpack.c.b16 %v3347, %v3346
    %v3506 = vpack.c.b16 %v3349, %v3348
    %v3507 = vpack.c.b16 %v3351, %v3350
    %v3508 = vpack.c.b16 %v3353, %v3352
    %v3509 = vpack.c.b16 %v3355, %v3354
    %v3510 = vpack.c.b16 %v3357, %v3356
    %v3511 = vpack.c.b16 %v3359, %v3358
    %v3512 = vpack.c.b16 %v3361, %v3360
    %v3513 = vpack.c.b16 %v3363, %v3362
    %v3514 = vpack.c.b16 %v3365, %v3364
    %v3515 = vpack.c.b16 %v3367, %v3366
    %v3516 = vpack.c.b16 %v3369, %v3368
    %v3517 = vpack.c.b16 %v3371, %v3370
    %v3518 = vpack.c.b16 %v3373, %v3372
    %v3519 = vpack.c.b16 %v3375, %v3374
    %v3520 = vpack.c.b16 %v3377, %v3376
    %v3521 = vpack.c.b16 %v3379, %v3378
    %v3522 = vpack.c.b16 %v3381, %v3380
    %v3523 = vpack.c.b16 %v3383, %v3382
    %v3524 = vpack.c.b16 %v3385, %v3384
    %v3525 = vpack.c.b16 %v3387, %v3386
    %v3526 = vpack.c.b16 %v3389, %v3388
    %v3527 = vpack.c.b16 %v3391, %v3390
    %v3528 = vpack.c.b16 %v3393, %v3392
    %v3529 = vpack.c.b16 %v3395, %v3394
    %v3530 = vpack.c.b16 %v3397, %v3396
    %v3531 = vpack.c.b16 %v3399, %v3398
    %v3532 = vpack.c.b16 %v3401, %v3400
    %v3533 = vpack.c.b16 %v3403, %v3402
    %v3534 = vpack.c.b16 %v3405, %v3404
    %v3535 = vpack.c.b16 %v3407, %v3406
    %3664 = vmatprep.subr.bf16.mxu0 0
    %3665 = vmatpush1.bf16.msra.mxu0 %v3408
    %3666 = vmatprep.subr.bf16.mxu0 0
    %3667 = vmatpush1.bf16.msra.mxu0 %v3409
    %3668 = vmatprep.subr.bf16.mxu0 0
    %3669 = vmatpush1.bf16.msra.mxu0 %v3410
    %3670 = vmatprep.subr.bf16.mxu0 0
    %3671 = vmatpush1.bf16.msra.mxu0 %v3411
    %3672 = vmatprep.subr.bf16.mxu0 0
    %3673 = vmatpush1.bf16.msra.mxu0 %v3412
    %3674 = vmatprep.subr.bf16.mxu0 0
    %3675 = vmatpush1.bf16.msra.mxu0 %v3413
    %3676 = vmatprep.subr.bf16.mxu0 0
    %3677 = vmatpush1.bf16.msra.mxu0 %v3414
    %3678 = vmatprep.subr.bf16.mxu0 0
    %3679 = vmatpush1.bf16.msra.mxu0 %v3415
    %3680 = vmatprep.subr.bf16.mxu0 0
    %3681 = vmatpush1.bf16.msra.mxu0 %v3416
    %3682 = vmatprep.subr.bf16.mxu0 0
    %3683 = vmatpush1.bf16.msra.mxu0 %v3417
    %3684 = vmatprep.subr.bf16.mxu0 0
    %3685 = vmatpush1.bf16.msra.mxu0 %v3418
    %3686 = vmatprep.subr.bf16.mxu0 0
    %3687 = vmatpush1.bf16.msra.mxu0 %v3419
    %3688 = vmatprep.subr.bf16.mxu0 0
    %3689 = vmatpush1.bf16.msra.mxu0 %v3420
    %3690 = vmatprep.subr.bf16.mxu0 0
    %3691 = vmatpush1.bf16.msra.mxu0 %v3421
    %3692 = vmatprep.subr.bf16.mxu0 0
    %3693 = vmatpush1.bf16.msra.mxu0 %v3422
    %3694 = vmatprep.subr.bf16.mxu0 0
    %3695 = vmatpush1.bf16.msra.mxu0 %v3423
    %3696 = vmatprep.mubr.bf16.mxu0 %v2865
    %3697 = vmatmul.mubr.bf16.gmra.mrb[0].mxu0 %v2864
    %v3698 = vpop.f32.mrb[0].mxu0
    %v3699 = vadd.f32 %v2684, %v3698
    %v3700 = vpop.f32.mrb[0].mxu0
    %v3701 = vpop.f32.mrb[0].mxu0
    %v3702 = vpop.f32.mrb[0].mxu0
    %3703 = vdwg.mxu0
    %3704 = vmatprep.subr.bf16.mxu0 0
    %3705 = vmatpush1.bf16.msra.mxu0 %v3424
    %3706 = vmatprep.subr.bf16.mxu0 0
    %3707 = vmatpush1.bf16.msra.mxu0 %v3425
    %3708 = vmatprep.subr.bf16.mxu0 0
    %3709 = vmatpush1.bf16.msra.mxu0 %v3426
    %3710 = vmatprep.subr.bf16.mxu0 0
    %3711 = vmatpush1.bf16.msra.mxu0 %v3427
    %3712 = vmatprep.subr.bf16.mxu0 0
    %3713 = vmatpush1.bf16.msra.mxu0 %v3428
    %3714 = vmatprep.subr.bf16.mxu0 0
    %3715 = vmatpush1.bf16.msra.mxu0 %v3429
    %3716 = vmatprep.subr.bf16.mxu0 0
    %3717 = vmatpush1.bf16.msra.mxu0 %v3430
    %3718 = vmatprep.subr.bf16.mxu0 0
    %3719 = vmatpush1.bf16.msra.mxu0 %v3431
    %3720 = vmatprep.subr.bf16.mxu0 0
    %3721 = vmatpush1.bf16.msra.mxu0 %v3432
    %3722 = vmatprep.subr.bf16.mxu0 0
    %3723 = vmatpush1.bf16.msra.mxu0 %v3433
    %3724 = vmatprep.subr.bf16.mxu0 0
    %3725 = vmatpush1.bf16.msra.mxu0 %v3434
    %3726 = vmatprep.subr.bf16.mxu0 0
    %3727 = vmatpush1.bf16.msra.mxu0 %v3435
    %3728 = vmatprep.subr.bf16.mxu0 0
    %3729 = vmatpush1.bf16.msra.mxu0 %v3436
    %3730 = vmatprep.subr.bf16.mxu0 0
    %3731 = vmatpush1.bf16.msra.mxu0 %v3437
    %3732 = vmatprep.subr.bf16.mxu0 0
    %3733 = vmatpush1.bf16.msra.mxu0 %v3438
    %3734 = vmatprep.subr.bf16.mxu0 0
    %3735 = vmatpush1.bf16.msra.mxu0 %v3439
    %3736 = vmatprep.mubr.bf16.mxu0 %v2867
    %3737 = vmatmul.mubr.bf16.gmra.mrb[0].mxu0 %v2866
    %v3738 = vpop.f32.mrb[0].mxu0
    %v3739 = vadd.f32 %v3699, %v3738
    %v3740 = vpop.f32.mrb[0].mxu0
    %v3741 = vpop.f32.mrb[0].mxu0
    %v3742 = vpop.f32.mrb[0].mxu0
    %3743 = vdwg.mxu0
    %3744 = vmatprep.subr.bf16.mxu0 0
    %3745 = vmatpush1.bf16.msra.mxu0 %v3440
    %3746 = vmatprep.subr.bf16.mxu0 0
    %3747 = vmatpush1.bf16.msra.mxu0 %v3441
    %3748 = vmatprep.subr.bf16.mxu0 0
    %3749 = vmatpush1.bf16.msra.mxu0 %v3442
    %3750 = vmatprep.subr.bf16.mxu0 0
    %3751 = vmatpush1.bf16.msra.mxu0 %v3443
    %3752 = vmatprep.subr.bf16.mxu0 0
    %3753 = vmatpush1.bf16.msra.mxu0 %v3444
    %3754 = vmatprep.subr.bf16.mxu0 0
    %3755 = vmatpush1.bf16.msra.mxu0 %v3445
    %3756 = vmatprep.subr.bf16.mxu0 0
    %3757 = vmatpush1.bf16.msra.mxu0 %v3446
    %3758 = vmatprep.subr.bf16.mxu0 0
    %3759 = vmatpush1.bf16.msra.mxu0 %v3447
    %3760 = vmatprep.subr.bf16.mxu0 0
    %3761 = vmatpush1.bf16.msra.mxu0 %v3448
    %3762 = vmatprep.subr.bf16.mxu0 0
    %3763 = vmatpush1.bf16.msra.mxu0 %v3449
    %3764 = vmatprep.subr.bf16.mxu0 0
    %3765 = vmatpush1.bf16.msra.mxu0 %v3450
    %3766 = vmatprep.subr.bf16.mxu0 0
    %3767 = vmatpush1.bf16.msra.mxu0 %v3451
    %3768 = vmatprep.subr.bf16.mxu0 0
    %3769 = vmatpush1.bf16.msra.mxu0 %v3452
    %3770 = vmatprep.subr.bf16.mxu0 0
    %3771 = vmatpush1.bf16.msra.mxu0 %v3453
    %3772 = vmatprep.subr.bf16.mxu0 0
    %3773 = vmatpush1.bf16.msra.mxu0 %v3454
    %3774 = vmatprep.subr.bf16.mxu0 0
    %3775 = vmatpush1.bf16.msra.mxu0 %v3455
    %3776 = vmatprep.mubr.bf16.mxu0 %v2869
    %3777 = vmatmul.mubr.bf16.gmra.mrb[0].mxu0 %v2868
    %v3778 = vpop.f32.mrb[0].mxu0
    %v3779 = vadd.f32 %v3739, %v3778
    %v3780 = vpop.f32.mrb[0].mxu0
    %v3781 = vpop.f32.mrb[0].mxu0
    %v3782 = vpop.f32.mrb[0].mxu0
    %3783 = vdwg.mxu0
    %3784 = vmatprep.subr.bf16.mxu0 0
    %3785 = vmatpush1.bf16.msra.mxu0 %v3456
    %3786 = vmatprep.subr.bf16.mxu0 0
    %3787 = vmatpush1.bf16.msra.mxu0 %v3457
    %3788 = vmatprep.subr.bf16.mxu0 0
    %3789 = vmatpush1.bf16.msra.mxu0 %v3458
    %3790 = vmatprep.subr.bf16.mxu0 0
    %3791 = vmatpush1.bf16.msra.mxu0 %v3459
    %3792 = vmatprep.subr.bf16.mxu0 0
    %3793 = vmatpush1.bf16.msra.mxu0 %v3460
    %3794 = vmatprep.subr.bf16.mxu0 0
    %3795 = vmatpush1.bf16.msra.mxu0 %v3461
    %3796 = vmatprep.subr.bf16.mxu0 0
    %3797 = vmatpush1.bf16.msra.mxu0 %v3462
    %3798 = vmatprep.subr.bf16.mxu0 0
    %3799 = vmatpush1.bf16.msra.mxu0 %v3463
    %3800 = vmatprep.subr.bf16.mxu0 0
    %3801 = vmatpush1.bf16.msra.mxu0 %v3464
    %3802 = vmatprep.subr.bf16.mxu0 0
    %3803 = vmatpush1.bf16.msra.mxu0 %v3465
    %3804 = vmatprep.subr.bf16.mxu0 0
    %3805 = vmatpush1.bf16.msra.mxu0 %v3466
    %3806 = vmatprep.subr.bf16.mxu0 0
    %3807 = vmatpush1.bf16.msra.mxu0 %v3467
    %3808 = vmatprep.subr.bf16.mxu0 0
    %3809 = vmatpush1.bf16.msra.mxu0 %v3468
    %3810 = vmatprep.subr.bf16.mxu0 0
    %3811 = vmatpush1.bf16.msra.mxu0 %v3469
    %3812 = vmatprep.subr.bf16.mxu0 0
    %3813 = vmatpush1.bf16.msra.mxu0 %v3470
    %3814 = vmatprep.subr.bf16.mxu0 0
    %3815 = vmatpush1.bf16.msra.mxu0 %v3471
    %3816 = vmatprep.mubr.bf16.mxu0 %v2871
    %3817 = vmatmul.mubr.bf16.gmra.mrb[0].mxu0 %v2870
    %v3818 = vpop.f32.mrb[0].mxu0
    %v3819 = vadd.f32 %v3779, %v3818
    %v3820 = vpop.f32.mrb[0].mxu0
    %v3821 = vpop.f32.mrb[0].mxu0
    %v3822 = vpop.f32.mrb[0].mxu0
    %3823 = vdwg.mxu0
    %3824 = vmatprep.subr.bf16.mxu0 0
    %3825 = vmatpush1.bf16.msra.mxu0 %v3472
    %3826 = vmatprep.subr.bf16.mxu0 0
    %3827 = vmatpush1.bf16.msra.mxu0 %v3473
    %3828 = vmatprep.subr.bf16.mxu0 0
    %3829 = vmatpush1.bf16.msra.mxu0 %v3474
    %3830 = vmatprep.subr.bf16.mxu0 0
    %3831 = vmatpush1.bf16.msra.mxu0 %v3475
    %3832 = vmatprep.subr.bf16.mxu0 0
    %3833 = vmatpush1.bf16.msra.mxu0 %v3476
    %3834 = vmatprep.subr.bf16.mxu0 0
    %3835 = vmatpush1.bf16.msra.mxu0 %v3477
    %3836 = vmatprep.subr.bf16.mxu0 0
    %3837 = vmatpush1.bf16.msra.mxu0 %v3478
    %3838 = vmatprep.subr.bf16.mxu0 0
    %3839 = vmatpush1.bf16.msra.mxu0 %v3479
    %3840 = vmatprep.subr.bf16.mxu0 0
    %3841 = vmatpush1.bf16.msra.mxu0 %v3480
    %3842 = vmatprep.subr.bf16.mxu0 0
    %3843 = vmatpush1.bf16.msra.mxu0 %v3481
    %3844 = vmatprep.subr.bf16.mxu0 0
    %3845 = vmatpush1.bf16.msra.mxu0 %v3482
    %3846 = vmatprep.subr.bf16.mxu0 0
    %3847 = vmatpush1.bf16.msra.mxu0 %v3483
    %3848 = vmatprep.subr.bf16.mxu0 0
    %3849 = vmatpush1.bf16.msra.mxu0 %v3484
    %3850 = vmatprep.subr.bf16.mxu0 0
    %3851 = vmatpush1.bf16.msra.mxu0 %v3485
    %3852 = vmatprep.subr.bf16.mxu0 0
    %3853 = vmatpush1.bf16.msra.mxu0 %v3486
    %3854 = vmatprep.subr.bf16.mxu0 0
    %3855 = vmatpush1.bf16.msra.mxu0 %v3487
    %3856 = vmatprep.mubr.bf16.mxu0 %v2873
    %3857 = vmatmul.mubr.bf16.gmra.mrb[0].mxu0 %v2872
    %v3858 = vpop.f32.mrb[0].mxu0
    %v3859 = vadd.f32 %v3819, %v3858
    %v3860 = vpop.f32.mrb[0].mxu0
    %v3861 = vpop.f32.mrb[0].mxu0
    %v3862 = vpop.f32.mrb[0].mxu0
    %3863 = vdwg.mxu0
    %3864 = vmatprep.subr.bf16.mxu0 0
    %3865 = vmatpush1.bf16.msra.mxu0 %v3488
    %3866 = vmatprep.subr.bf16.mxu0 0
    %3867 = vmatpush1.bf16.msra.mxu0 %v3489
    %3868 = vmatprep.subr.bf16.mxu0 0
    %3869 = vmatpush1.bf16.msra.mxu0 %v3490
    %3870 = vmatprep.subr.bf16.mxu0 0
    %3871 = vmatpush1.bf16.msra.mxu0 %v3491
    %3872 = vmatprep.subr.bf16.mxu0 0
    %3873 = vmatpush1.bf16.msra.mxu0 %v3492
    %3874 = vmatprep.subr.bf16.mxu0 0
    %3875 = vmatpush1.bf16.msra.mxu0 %v3493
    %3876 = vmatprep.subr.bf16.mxu0 0
    %3877 = vmatpush1.bf16.msra.mxu0 %v3494
    %3878 = vmatprep.subr.bf16.mxu0 0
    %3879 = vmatpush1.bf16.msra.mxu0 %v3495
    %3880 = vmatprep.subr.bf16.mxu0 0
    %3881 = vmatpush1.bf16.msra.mxu0 %v3496
    %3882 = vmatprep.subr.bf16.mxu0 0
    %3883 = vmatpush1.bf16.msra.mxu0 %v3497
    %3884 = vmatprep.subr.bf16.mxu0 0
    %3885 = vmatpush1.bf16.msra.mxu0 %v3498
    %3886 = vmatprep.subr.bf16.mxu0 0
    %3887 = vmatpush1.bf16.msra.mxu0 %v3499
    %3888 = vmatprep.subr.bf16.mxu0 0
    %3889 = vmatpush1.bf16.msra.mxu0 %v3500
    %3890 = vmatprep.subr.bf16.mxu0 0
    %3891 = vmatpush1.bf16.msra.mxu0 %v3501
    %3892 = vmatprep.subr.bf16.mxu0 0
    %3893 = vmatpush1.bf16.msra.mxu0 %v3502
    %3894 = vmatprep.subr.bf16.mxu0 0
    %3895 = vmatpush1.bf16.msra.mxu0 %v3503
    %3896 = vmatprep.mubr.bf16.mxu0 %v2875
    %3897 = vmatmul.mubr.bf16.gmra.mrb[0].mxu0 %v2874
    %v3898 = vpop.f32.mrb[0].mxu0
    %v3899 = vadd.f32 %v3859, %v3898
    %v3900 = vpop.f32.mrb[0].mxu0
    %v3901 = vpop.f32.mrb[0].mxu0
    %v3902 = vpop.f32.mrb[0].mxu0
    %3903 = vdwg.mxu0
    %3904 = vmatprep.subr.bf16.mxu0 0
    %3905 = vmatpush1.bf16.msra.mxu0 %v3504
    %3906 = vmatprep.subr.bf16.mxu0 0
    %3907 = vmatpush1.bf16.msra.mxu0 %v3505
    %3908 = vmatprep.subr.bf16.mxu0 0
    %3909 = vmatpush1.bf16.msra.mxu0 %v3506
    %3910 = vmatprep.subr.bf16.mxu0 0
    %3911 = vmatpush1.bf16.msra.mxu0 %v3507
    %3912 = vmatprep.subr.bf16.mxu0 0
    %3913 = vmatpush1.bf16.msra.mxu0 %v3508
    %3914 = vmatprep.subr.bf16.mxu0 0
    %3915 = vmatpush1.bf16.msra.mxu0 %v3509
    %3916 = vmatprep.subr.bf16.mxu0 0
    %3917 = vmatpush1.bf16.msra.mxu0 %v3510
    %3918 = vmatprep.subr.bf16.mxu0 0
    %3919 = vmatpush1.bf16.msra.mxu0 %v3511
    %3920 = vmatprep.subr.bf16.mxu0 0
    %3921 = vmatpush1.bf16.msra.mxu0 %v3512
    %3922 = vmatprep.subr.bf16.mxu0 0
    %3923 = vmatpush1.bf16.msra.mxu0 %v3513
    %3924 = vmatprep.subr.bf16.mxu0 0
    %3925 = vmatpush1.bf16.msra.mxu0 %v3514
    %3926 = vmatprep.subr.bf16.mxu0 0
    %3927 = vmatpush1.bf16.msra.mxu0 %v3515
    %3928 = vmatprep.subr.bf16.mxu0 0
    %3929 = vmatpush1.bf16.msra.mxu0 %v3516
    %3930 = vmatprep.subr.bf16.mxu0 0
    %3931 = vmatpush1.bf16.msra.mxu0 %v3517
    %3932 = vmatprep.subr.bf16.mxu0 0
    %3933 = vmatpush1.bf16.msra.mxu0 %v3518
    %3934 = vmatprep.subr.bf16.mxu0 0
    %3935 = vmatpush1.bf16.msra.mxu0 %v3519
    %3936 = vmatprep.mubr.bf16.mxu0 %v2877
    %3937 = vmatmul.mubr.bf16.gmra.mrb[0].mxu0 %v2876
    %v3938 = vpop.f32.mrb[0].mxu0
    %v3939 = vadd.f32 %v3899, %v3938
    %v3940 = vpop.f32.mrb[0].mxu0
    %v3941 = vpop.f32.mrb[0].mxu0
    %v3942 = vpop.f32.mrb[0].mxu0
    %3943 = vdwg.mxu0
    %3944 = vmatprep.subr.bf16.mxu0 0
    %3945 = vmatpush1.bf16.msra.mxu0 %v3520
    %3946 = vmatprep.subr.bf16.mxu0 0
    %3947 = vmatpush1.bf16.msra.mxu0 %v3521
    %3948 = vmatprep.subr.bf16.mxu0 0
    %3949 = vmatpush1.bf16.msra.mxu0 %v3522
    %3950 = vmatprep.subr.bf16.mxu0 0
    %3951 = vmatpush1.bf16.msra.mxu0 %v3523
    %3952 = vmatprep.subr.bf16.mxu0 0
    %3953 = vmatpush1.bf16.msra.mxu0 %v3524
    %3954 = vmatprep.subr.bf16.mxu0 0
    %3955 = vmatpush1.bf16.msra.mxu0 %v3525
    %3956 = vmatprep.subr.bf16.mxu0 0
    %3957 = vmatpush1.bf16.msra.mxu0 %v3526
    %3958 = vmatprep.subr.bf16.mxu0 0
    %3959 = vmatpush1.bf16.msra.mxu0 %v3527
    %3960 = vmatprep.subr.bf16.mxu0 0
    %3961 = vmatpush1.bf16.msra.mxu0 %v3528
    %3962 = vmatprep.subr.bf16.mxu0 0
    %3963 = vmatpush1.bf16.msra.mxu0 %v3529
    %3964 = vmatprep.subr.bf16.mxu0 0
    %3965 = vmatpush1.bf16.msra.mxu0 %v3530
    %3966 = vmatprep.subr.bf16.mxu0 0
    %3967 = vmatpush1.bf16.msra.mxu0 %v3531
    %3968 = vmatprep.subr.bf16.mxu0 0
    %3969 = vmatpush1.bf16.msra.mxu0 %v3532
    %3970 = vmatprep.subr.bf16.mxu0 0
    %3971 = vmatpush1.bf16.msra.mxu0 %v3533
    %3972 = vmatprep.subr.bf16.mxu0 0
    %3973 = vmatpush1.bf16.msra.mxu0 %v3534
    %3974 = vmatprep.subr.bf16.mxu0 0
    %3975 = vmatpush1.bf16.msra.mxu0 %v3535
    %3976 = vmatprep.mubr.bf16.mxu0 %v2879
    %3977 = vmatmul.mubr.bf16.gmra.mrb[0].mxu0 %v2878
    %v3978 = vpop.f32.mrb[0].mxu0
    %v3979 = vadd.f32 %v3939, %v3978
    %v3980 = vpop.f32.mrb[0].mxu0
    %v3981 = vpop.f32.mrb[0].mxu0
    %v3982 = vpop.f32.mrb[0].mxu0
    %3983 = vdwg.mxu0
    %s3984 = scalar_lea.vmem [#allocation9], 8
    %v3985 = vld [vmem:[%s3984] sm:$0xff]
    %s3986 = scalar_lea.vmem [#allocation6], 1024
    %v3987 = vld [vmem:[%s3986] sm:$0xf]
    %v3988 = vld [vmem:[%s3986 + $0x4] sm:$0xf]
    %v3989 = vld [vmem:[%s3986 + $0x8] sm:$0xf]
    %v3990 = vld [vmem:[%s3986 + $0xc] sm:$0xf]
    %v3991 = vld [vmem:[%s3986 + $0x10] sm:$0xf]
    %v3992 = vld [vmem:[%s3986 + $0x14] sm:$0xf]
    %v3993 = vld [vmem:[%s3986 + $0x18] sm:$0xf]
    %v3994 = vld [vmem:[%s3986 + $0x1c] sm:$0xf]
    %v3995 = vld [vmem:[%s3986 + $0x20] sm:$0xf]
    %v3996 = vld [vmem:[%s3986 + $0x24] sm:$0xf]
    %v3997 = vld [vmem:[%s3986 + $0x28] sm:$0xf]
    %v3998 = vld [vmem:[%s3986 + $0x2c] sm:$0xf]
    %v3999 = vld [vmem:[%s3986 + $0x30] sm:$0xf]
    %v4000 = vld [vmem:[%s3986 + $0x34] sm:$0xf]
    %v4001 = vld [vmem:[%s3986 + $0x38] sm:$0xf]
    %v4002 = vld [vmem:[%s3986 + $0x3c] sm:$0xf]
    %v4003 = vld [vmem:[%s3986 + $0x40] sm:$0xf]
    %v4004 = vld [vmem:[%s3986 + $0x44] sm:$0xf]
    %v4005 = vld [vmem:[%s3986 + $0x48] sm:$0xf]
    %v4006 = vld [vmem:[%s3986 + $0x4c] sm:$0xf]
    %v4007 = vld [vmem:[%s3986 + $0x50] sm:$0xf]
    %v4008 = vld [vmem:[%s3986 + $0x54] sm:$0xf]
    %v4009 = vld [vmem:[%s3986 + $0x58] sm:$0xf]
    %v4010 = vld [vmem:[%s3986 + $0x5c] sm:$0xf]
    %v4011 = vld [vmem:[%s3986 + $0x60] sm:$0xf]
    %v4012 = vld [vmem:[%s3986 + $0x64] sm:$0xf]
    %v4013 = vld [vmem:[%s3986 + $0x68] sm:$0xf]
    %v4014 = vld [vmem:[%s3986 + $0x6c] sm:$0xf]
    %v4015 = vld [vmem:[%s3986 + $0x70] sm:$0xf]
    %v4016 = vld [vmem:[%s3986 + $0x74] sm:$0xf]
    %v4017 = vld [vmem:[%s3986 + $0x78] sm:$0xf]
    %v4018 = vld [vmem:[%s3986 + $0x7c] sm:$0xf]
    %v4019 = vld [vmem:[%s3986 + $0x80] sm:$0xf]
    %v4020 = vld [vmem:[%s3986 + $0x84] sm:$0xf]
    %v4021 = vld [vmem:[%s3986 + $0x88] sm:$0xf]
    %v4022 = vld [vmem:[%s3986 + $0x8c] sm:$0xf]
    %v4023 = vld [vmem:[%s3986 + $0x90] sm:$0xf]
    %v4024 = vld [vmem:[%s3986 + $0x94] sm:$0xf]
    %v4025 = vld [vmem:[%s3986 + $0x98] sm:$0xf]
    %v4026 = vld [vmem:[%s3986 + $0x9c] sm:$0xf]
    %v4027 = vld [vmem:[%s3986 + $0xa0] sm:$0xf]
    %v4028 = vld [vmem:[%s3986 + $0xa4] sm:$0xf]
    %v4029 = vld [vmem:[%s3986 + $0xa8] sm:$0xf]
    %v4030 = vld [vmem:[%s3986 + $0xac] sm:$0xf]
    %v4031 = vld [vmem:[%s3986 + $0xb0] sm:$0xf]
    %v4032 = vld [vmem:[%s3986 + $0xb4] sm:$0xf]
    %v4033 = vld [vmem:[%s3986 + $0xb8] sm:$0xf]
    %v4034 = vld [vmem:[%s3986 + $0xbc] sm:$0xf]
    %v4035 = vld [vmem:[%s3986 + $0xc0] sm:$0xf]
    %v4036 = vld [vmem:[%s3986 + $0xc4] sm:$0xf]
    %v4037 = vld [vmem:[%s3986 + $0xc8] sm:$0xf]
    %v4038 = vld [vmem:[%s3986 + $0xcc] sm:$0xf]
    %v4039 = vld [vmem:[%s3986 + $0xd0] sm:$0xf]
    %v4040 = vld [vmem:[%s3986 + $0xd4] sm:$0xf]
    %v4041 = vld [vmem:[%s3986 + $0xd8] sm:$0xf]
    %v4042 = vld [vmem:[%s3986 + $0xdc] sm:$0xf]
    %v4043 = vld [vmem:[%s3986 + $0xe0] sm:$0xf]
    %v4044 = vld [vmem:[%s3986 + $0xe4] sm:$0xf]
    %v4045 = vld [vmem:[%s3986 + $0xe8] sm:$0xf]
    %v4046 = vld [vmem:[%s3986 + $0xec] sm:$0xf]
    %v4047 = vld [vmem:[%s3986 + $0xf0] sm:$0xf]
    %v4048 = vld [vmem:[%s3986 + $0xf4] sm:$0xf]
    %v4049 = vld [vmem:[%s3986 + $0xf8] sm:$0xf]
    %v4050 = vld [vmem:[%s3986 + $0xfc] sm:$0xf]
    %v4051 = vld [vmem:[%s3986 + $0x100] sm:$0xf]
    %v4052 = vld [vmem:[%s3986 + $0x104] sm:$0xf]
    %v4053 = vld [vmem:[%s3986 + $0x108] sm:$0xf]
    %v4054 = vld [vmem:[%s3986 + $0x10c] sm:$0xf]
    %v4055 = vld [vmem:[%s3986 + $0x110] sm:$0xf]
    %v4056 = vld [vmem:[%s3986 + $0x114] sm:$0xf]
    %v4057 = vld [vmem:[%s3986 + $0x118] sm:$0xf]
    %v4058 = vld [vmem:[%s3986 + $0x11c] sm:$0xf]
    %v4059 = vld [vmem:[%s3986 + $0x120] sm:$0xf]
    %v4060 = vld [vmem:[%s3986 + $0x124] sm:$0xf]
    %v4061 = vld [vmem:[%s3986 + $0x128] sm:$0xf]
    %v4062 = vld [vmem:[%s3986 + $0x12c] sm:$0xf]
    %v4063 = vld [vmem:[%s3986 + $0x130] sm:$0xf]
    %v4064 = vld [vmem:[%s3986 + $0x134] sm:$0xf]
    %v4065 = vld [vmem:[%s3986 + $0x138] sm:$0xf]
    %v4066 = vld [vmem:[%s3986 + $0x13c] sm:$0xf]
    %v4067 = vld [vmem:[%s3986 + $0x140] sm:$0xf]
    %v4068 = vld [vmem:[%s3986 + $0x144] sm:$0xf]
    %v4069 = vld [vmem:[%s3986 + $0x148] sm:$0xf]
    %v4070 = vld [vmem:[%s3986 + $0x14c] sm:$0xf]
    %v4071 = vld [vmem:[%s3986 + $0x150] sm:$0xf]
    %v4072 = vld [vmem:[%s3986 + $0x154] sm:$0xf]
    %v4073 = vld [vmem:[%s3986 + $0x158] sm:$0xf]
    %v4074 = vld [vmem:[%s3986 + $0x15c] sm:$0xf]
    %v4075 = vld [vmem:[%s3986 + $0x160] sm:$0xf]
    %v4076 = vld [vmem:[%s3986 + $0x164] sm:$0xf]
    %v4077 = vld [vmem:[%s3986 + $0x168] sm:$0xf]
    %v4078 = vld [vmem:[%s3986 + $0x16c] sm:$0xf]
    %v4079 = vld [vmem:[%s3986 + $0x170] sm:$0xf]
    %v4080 = vld [vmem:[%s3986 + $0x174] sm:$0xf]
    %v4081 = vld [vmem:[%s3986 + $0x178] sm:$0xf]
    %v4082 = vld [vmem:[%s3986 + $0x17c] sm:$0xf]
    %v4083 = vld [vmem:[%s3986 + $0x180] sm:$0xf]
    %v4084 = vld [vmem:[%s3986 + $0x184] sm:$0xf]
    %v4085 = vld [vmem:[%s3986 + $0x188] sm:$0xf]
    %v4086 = vld [vmem:[%s3986 + $0x18c] sm:$0xf]
    %v4087 = vld [vmem:[%s3986 + $0x190] sm:$0xf]
    %v4088 = vld [vmem:[%s3986 + $0x194] sm:$0xf]
    %v4089 = vld [vmem:[%s3986 + $0x198] sm:$0xf]
    %v4090 = vld [vmem:[%s3986 + $0x19c] sm:$0xf]
    %v4091 = vld [vmem:[%s3986 + $0x1a0] sm:$0xf]
    %v4092 = vld [vmem:[%s3986 + $0x1a4] sm:$0xf]
    %v4093 = vld [vmem:[%s3986 + $0x1a8] sm:$0xf]
    %v4094 = vld [vmem:[%s3986 + $0x1ac] sm:$0xf]
    %v4095 = vld [vmem:[%s3986 + $0x1b0] sm:$0xf]
    %v4096 = vld [vmem:[%s3986 + $0x1b4] sm:$0xf]
    %v4097 = vld [vmem:[%s3986 + $0x1b8] sm:$0xf]
    %v4098 = vld [vmem:[%s3986 + $0x1bc] sm:$0xf]
    %v4099 = vld [vmem:[%s3986 + $0x1c0] sm:$0xf]
    %v4100 = vld [vmem:[%s3986 + $0x1c4] sm:$0xf]
    %v4101 = vld [vmem:[%s3986 + $0x1c8] sm:$0xf]
    %v4102 = vld [vmem:[%s3986 + $0x1cc] sm:$0xf]
    %v4103 = vld [vmem:[%s3986 + $0x1d0] sm:$0xf]
    %v4104 = vld [vmem:[%s3986 + $0x1d4] sm:$0xf]
    %v4105 = vld [vmem:[%s3986 + $0x1d8] sm:$0xf]
    %v4106 = vld [vmem:[%s3986 + $0x1dc] sm:$0xf]
    %v4107 = vld [vmem:[%s3986 + $0x1e0] sm:$0xf]
    %v4108 = vld [vmem:[%s3986 + $0x1e4] sm:$0xf]
    %v4109 = vld [vmem:[%s3986 + $0x1e8] sm:$0xf]
    %v4110 = vld [vmem:[%s3986 + $0x1ec] sm:$0xf]
    %v4111 = vld [vmem:[%s3986 + $0x1f0] sm:$0xf]
    %v4112 = vld [vmem:[%s3986 + $0x1f4] sm:$0xf]
    %v4113 = vld [vmem:[%s3986 + $0x1f8] sm:$0xf]
    %v4114 = vld [vmem:[%s3986 + $0x1fc] sm:$0xf]
    %v4115 = vld [vmem:[%s3986 + $0x200] sm:$0xf]
    %v4116 = vld [vmem:[%s3986 + $0x204] sm:$0xf]
    %v4117 = vld [vmem:[%s3986 + $0x208] sm:$0xf]
    %v4118 = vld [vmem:[%s3986 + $0x20c] sm:$0xf]
    %v4119 = vld [vmem:[%s3986 + $0x210] sm:$0xf]
    %v4120 = vld [vmem:[%s3986 + $0x214] sm:$0xf]
    %v4121 = vld [vmem:[%s3986 + $0x218] sm:$0xf]
    %v4122 = vld [vmem:[%s3986 + $0x21c] sm:$0xf]
    %v4123 = vld [vmem:[%s3986 + $0x220] sm:$0xf]
    %v4124 = vld [vmem:[%s3986 + $0x224] sm:$0xf]
    %v4125 = vld [vmem:[%s3986 + $0x228] sm:$0xf]
    %v4126 = vld [vmem:[%s3986 + $0x22c] sm:$0xf]
    %v4127 = vld [vmem:[%s3986 + $0x230] sm:$0xf]
    %v4128 = vld [vmem:[%s3986 + $0x234] sm:$0xf]
    %v4129 = vld [vmem:[%s3986 + $0x238] sm:$0xf]
    %v4130 = vld [vmem:[%s3986 + $0x23c] sm:$0xf]
    %v4131 = vld [vmem:[%s3986 + $0x240] sm:$0xf]
    %v4132 = vld [vmem:[%s3986 + $0x244] sm:$0xf]
    %v4133 = vld [vmem:[%s3986 + $0x248] sm:$0xf]
    %v4134 = vld [vmem:[%s3986 + $0x24c] sm:$0xf]
    %v4135 = vld [vmem:[%s3986 + $0x250] sm:$0xf]
    %v4136 = vld [vmem:[%s3986 + $0x254] sm:$0xf]
    %v4137 = vld [vmem:[%s3986 + $0x258] sm:$0xf]
    %v4138 = vld [vmem:[%s3986 + $0x25c] sm:$0xf]
    %v4139 = vld [vmem:[%s3986 + $0x260] sm:$0xf]
    %v4140 = vld [vmem:[%s3986 + $0x264] sm:$0xf]
    %v4141 = vld [vmem:[%s3986 + $0x268] sm:$0xf]
    %v4142 = vld [vmem:[%s3986 + $0x26c] sm:$0xf]
    %v4143 = vld [vmem:[%s3986 + $0x270] sm:$0xf]
    %v4144 = vld [vmem:[%s3986 + $0x274] sm:$0xf]
    %v4145 = vld [vmem:[%s3986 + $0x278] sm:$0xf]
    %v4146 = vld [vmem:[%s3986 + $0x27c] sm:$0xf]
    %v4147 = vld [vmem:[%s3986 + $0x280] sm:$0xf]
    %v4148 = vld [vmem:[%s3986 + $0x284] sm:$0xf]
    %v4149 = vld [vmem:[%s3986 + $0x288] sm:$0xf]
    %v4150 = vld [vmem:[%s3986 + $0x28c] sm:$0xf]
    %v4151 = vld [vmem:[%s3986 + $0x290] sm:$0xf]
    %v4152 = vld [vmem:[%s3986 + $0x294] sm:$0xf]
    %v4153 = vld [vmem:[%s3986 + $0x298] sm:$0xf]
    %v4154 = vld [vmem:[%s3986 + $0x29c] sm:$0xf]
    %v4155 = vld [vmem:[%s3986 + $0x2a0] sm:$0xf]
    %v4156 = vld [vmem:[%s3986 + $0x2a4] sm:$0xf]
    %v4157 = vld [vmem:[%s3986 + $0x2a8] sm:$0xf]
    %v4158 = vld [vmem:[%s3986 + $0x2ac] sm:$0xf]
    %v4159 = vld [vmem:[%s3986 + $0x2b0] sm:$0xf]
    %v4160 = vld [vmem:[%s3986 + $0x2b4] sm:$0xf]
    %v4161 = vld [vmem:[%s3986 + $0x2b8] sm:$0xf]
    %v4162 = vld [vmem:[%s3986 + $0x2bc] sm:$0xf]
    %v4163 = vld [vmem:[%s3986 + $0x2c0] sm:$0xf]
    %v4164 = vld [vmem:[%s3986 + $0x2c4] sm:$0xf]
    %v4165 = vld [vmem:[%s3986 + $0x2c8] sm:$0xf]
    %v4166 = vld [vmem:[%s3986 + $0x2cc] sm:$0xf]
    %v4167 = vld [vmem:[%s3986 + $0x2d0] sm:$0xf]
    %v4168 = vld [vmem:[%s3986 + $0x2d4] sm:$0xf]
    %v4169 = vld [vmem:[%s3986 + $0x2d8] sm:$0xf]
    %v4170 = vld [vmem:[%s3986 + $0x2dc] sm:$0xf]
    %v4171 = vld [vmem:[%s3986 + $0x2e0] sm:$0xf]
    %v4172 = vld [vmem:[%s3986 + $0x2e4] sm:$0xf]
    %v4173 = vld [vmem:[%s3986 + $0x2e8] sm:$0xf]
    %v4174 = vld [vmem:[%s3986 + $0x2ec] sm:$0xf]
    %v4175 = vld [vmem:[%s3986 + $0x2f0] sm:$0xf]
    %v4176 = vld [vmem:[%s3986 + $0x2f4] sm:$0xf]
    %v4177 = vld [vmem:[%s3986 + $0x2f8] sm:$0xf]
    %v4178 = vld [vmem:[%s3986 + $0x2fc] sm:$0xf]
    %v4179 = vld [vmem:[%s3986 + $0x300] sm:$0xf]
    %v4180 = vld [vmem:[%s3986 + $0x304] sm:$0xf]
    %v4181 = vld [vmem:[%s3986 + $0x308] sm:$0xf]
    %v4182 = vld [vmem:[%s3986 + $0x30c] sm:$0xf]
    %v4183 = vld [vmem:[%s3986 + $0x310] sm:$0xf]
    %v4184 = vld [vmem:[%s3986 + $0x314] sm:$0xf]
    %v4185 = vld [vmem:[%s3986 + $0x318] sm:$0xf]
    %v4186 = vld [vmem:[%s3986 + $0x31c] sm:$0xf]
    %v4187 = vld [vmem:[%s3986 + $0x320] sm:$0xf]
    %v4188 = vld [vmem:[%s3986 + $0x324] sm:$0xf]
    %v4189 = vld [vmem:[%s3986 + $0x328] sm:$0xf]
    %v4190 = vld [vmem:[%s3986 + $0x32c] sm:$0xf]
    %v4191 = vld [vmem:[%s3986 + $0x330] sm:$0xf]
    %v4192 = vld [vmem:[%s3986 + $0x334] sm:$0xf]
    %v4193 = vld [vmem:[%s3986 + $0x338] sm:$0xf]
    %v4194 = vld [vmem:[%s3986 + $0x33c] sm:$0xf]
    %v4195 = vld [vmem:[%s3986 + $0x340] sm:$0xf]
    %v4196 = vld [vmem:[%s3986 + $0x344] sm:$0xf]
    %v4197 = vld [vmem:[%s3986 + $0x348] sm:$0xf]
    %v4198 = vld [vmem:[%s3986 + $0x34c] sm:$0xf]
    %v4199 = vld [vmem:[%s3986 + $0x350] sm:$0xf]
    %v4200 = vld [vmem:[%s3986 + $0x354] sm:$0xf]
    %v4201 = vld [vmem:[%s3986 + $0x358] sm:$0xf]
    %v4202 = vld [vmem:[%s3986 + $0x35c] sm:$0xf]
    %v4203 = vld [vmem:[%s3986 + $0x360] sm:$0xf]
    %v4204 = vld [vmem:[%s3986 + $0x364] sm:$0xf]
    %v4205 = vld [vmem:[%s3986 + $0x368] sm:$0xf]
    %v4206 = vld [vmem:[%s3986 + $0x36c] sm:$0xf]
    %v4207 = vld [vmem:[%s3986 + $0x370] sm:$0xf]
    %v4208 = vld [vmem:[%s3986 + $0x374] sm:$0xf]
    %v4209 = vld [vmem:[%s3986 + $0x378] sm:$0xf]
    %v4210 = vld [vmem:[%s3986 + $0x37c] sm:$0xf]
    %v4211 = vld [vmem:[%s3986 + $0x380] sm:$0xf]
    %v4212 = vld [vmem:[%s3986 + $0x384] sm:$0xf]
    %v4213 = vld [vmem:[%s3986 + $0x388] sm:$0xf]
    %v4214 = vld [vmem:[%s3986 + $0x38c] sm:$0xf]
    %v4215 = vld [vmem:[%s3986 + $0x390] sm:$0xf]
    %v4216 = vld [vmem:[%s3986 + $0x394] sm:$0xf]
    %v4217 = vld [vmem:[%s3986 + $0x398] sm:$0xf]
    %v4218 = vld [vmem:[%s3986 + $0x39c] sm:$0xf]
    %v4219 = vld [vmem:[%s3986 + $0x3a0] sm:$0xf]
    %v4220 = vld [vmem:[%s3986 + $0x3a4] sm:$0xf]
    %v4221 = vld [vmem:[%s3986 + $0x3a8] sm:$0xf]
    %v4222 = vld [vmem:[%s3986 + $0x3ac] sm:$0xf]
    %v4223 = vld [vmem:[%s3986 + $0x3b0] sm:$0xf]
    %v4224 = vld [vmem:[%s3986 + $0x3b4] sm:$0xf]
    %v4225 = vld [vmem:[%s3986 + $0x3b8] sm:$0xf]
    %v4226 = vld [vmem:[%s3986 + $0x3bc] sm:$0xf]
    %v4227 = vld [vmem:[%s3986 + $0x3c0] sm:$0xf]
    %v4228 = vld [vmem:[%s3986 + $0x3c4] sm:$0xf]
    %v4229 = vld [vmem:[%s3986 + $0x3c8] sm:$0xf]
    %v4230 = vld [vmem:[%s3986 + $0x3cc] sm:$0xf]
    %v4231 = vld [vmem:[%s3986 + $0x3d0] sm:$0xf]
    %v4232 = vld [vmem:[%s3986 + $0x3d4] sm:$0xf]
    %v4233 = vld [vmem:[%s3986 + $0x3d8] sm:$0xf]
    %v4234 = vld [vmem:[%s3986 + $0x3dc] sm:$0xf]
    %v4235 = vld [vmem:[%s3986 + $0x3e0] sm:$0xf]
    %v4236 = vld [vmem:[%s3986 + $0x3e4] sm:$0xf]
    %v4237 = vld [vmem:[%s3986 + $0x3e8] sm:$0xf]
    %v4238 = vld [vmem:[%s3986 + $0x3ec] sm:$0xf]
    %v4239 = vld [vmem:[%s3986 + $0x3f0] sm:$0xf]
    %v4240 = vld [vmem:[%s3986 + $0x3f4] sm:$0xf]
    %v4241 = vld [vmem:[%s3986 + $0x3f8] sm:$0xf]
    %v4242 = vld [vmem:[%s3986 + $0x3fc] sm:$0xf]
    %v4243 = vlaneseq
    %v4244 = vshrl.u32 %v4243, 7
    %v4245 = vsub.s32 0, %v4244
    %v4246 = vrot.slane %v3985, %v4245
    %v4503 = vunpack.c.l.b16 %v3987
    %v4504 = vunpack.c.l.b16 %v3988
    %v4505 = vunpack.c.l.b16 %v3989
    %v4506 = vunpack.c.l.b16 %v3990
    %v4507 = vunpack.c.l.b16 %v3991
    %v4508 = vunpack.c.l.b16 %v3992
    %v4509 = vunpack.c.l.b16 %v3993
    %v4510 = vunpack.c.l.b16 %v3994
    %v4511 = vunpack.c.l.b16 %v3995
    %v4512 = vunpack.c.l.b16 %v3996
    %v4513 = vunpack.c.l.b16 %v3997
    %v4514 = vunpack.c.l.b16 %v3998
    %v4515 = vunpack.c.l.b16 %v3999
    %v4516 = vunpack.c.l.b16 %v4000
    %v4517 = vunpack.c.l.b16 %v4001
    %v4518 = vunpack.c.l.b16 %v4002
    %v4519 = vunpack.c.l.b16 %v4003
    %v4520 = vunpack.c.l.b16 %v4004
    %v4521 = vunpack.c.l.b16 %v4005
    %v4522 = vunpack.c.l.b16 %v4006
    %v4523 = vunpack.c.l.b16 %v4007
    %v4524 = vunpack.c.l.b16 %v4008
    %v4525 = vunpack.c.l.b16 %v4009
    %v4526 = vunpack.c.l.b16 %v4010
    %v4527 = vunpack.c.l.b16 %v4011
    %v4528 = vunpack.c.l.b16 %v4012
    %v4529 = vunpack.c.l.b16 %v4013
    %v4530 = vunpack.c.l.b16 %v4014
    %v4531 = vunpack.c.l.b16 %v4015
    %v4532 = vunpack.c.l.b16 %v4016
    %v4533 = vunpack.c.l.b16 %v4017
    %v4534 = vunpack.c.l.b16 %v4018
    %v4535 = vunpack.c.l.b16 %v4019
    %v4536 = vunpack.c.l.b16 %v4020
    %v4537 = vunpack.c.l.b16 %v4021
    %v4538 = vunpack.c.l.b16 %v4022
    %v4539 = vunpack.c.l.b16 %v4023
    %v4540 = vunpack.c.l.b16 %v4024
    %v4541 = vunpack.c.l.b16 %v4025
    %v4542 = vunpack.c.l.b16 %v4026
    %v4543 = vunpack.c.l.b16 %v4027
    %v4544 = vunpack.c.l.b16 %v4028
    %v4545 = vunpack.c.l.b16 %v4029
    %v4546 = vunpack.c.l.b16 %v4030
    %v4547 = vunpack.c.l.b16 %v4031
    %v4548 = vunpack.c.l.b16 %v4032
    %v4549 = vunpack.c.l.b16 %v4033
    %v4550 = vunpack.c.l.b16 %v4034
    %v4551 = vunpack.c.l.b16 %v4035
    %v4552 = vunpack.c.l.b16 %v4036
    %v4553 = vunpack.c.l.b16 %v4037
    %v4554 = vunpack.c.l.b16 %v4038
    %v4555 = vunpack.c.l.b16 %v4039
    %v4556 = vunpack.c.l.b16 %v4040
    %v4557 = vunpack.c.l.b16 %v4041
    %v4558 = vunpack.c.l.b16 %v4042
    %v4559 = vunpack.c.l.b16 %v4043
    %v4560 = vunpack.c.l.b16 %v4044
    %v4561 = vunpack.c.l.b16 %v4045
    %v4562 = vunpack.c.l.b16 %v4046
    %v4563 = vunpack.c.l.b16 %v4047
    %v4564 = vunpack.c.l.b16 %v4048
    %v4565 = vunpack.c.l.b16 %v4049
    %v4566 = vunpack.c.l.b16 %v4050
    %v4567 = vunpack.c.l.b16 %v4051
    %v4568 = vunpack.c.l.b16 %v4052
    %v4569 = vunpack.c.l.b16 %v4053
    %v4570 = vunpack.c.l.b16 %v4054
    %v4571 = vunpack.c.l.b16 %v4055
    %v4572 = vunpack.c.l.b16 %v4056
    %v4573 = vunpack.c.l.b16 %v4057
    %v4574 = vunpack.c.l.b16 %v4058
    %v4575 = vunpack.c.l.b16 %v4059
    %v4576 = vunpack.c.l.b16 %v4060
    %v4577 = vunpack.c.l.b16 %v4061
    %v4578 = vunpack.c.l.b16 %v4062
    %v4579 = vunpack.c.l.b16 %v4063
    %v4580 = vunpack.c.l.b16 %v4064
    %v4581 = vunpack.c.l.b16 %v4065
    %v4582 = vunpack.c.l.b16 %v4066
    %v4583 = vunpack.c.l.b16 %v4067
    %v4584 = vunpack.c.l.b16 %v4068
    %v4585 = vunpack.c.l.b16 %v4069
    %v4586 = vunpack.c.l.b16 %v4070
    %v4587 = vunpack.c.l.b16 %v4071
    %v4588 = vunpack.c.l.b16 %v4072
    %v4589 = vunpack.c.l.b16 %v4073
    %v4590 = vunpack.c.l.b16 %v4074
    %v4591 = vunpack.c.l.b16 %v4075
    %v4592 = vunpack.c.l.b16 %v4076
    %v4593 = vunpack.c.l.b16 %v4077
    %v4594 = vunpack.c.l.b16 %v4078
    %v4595 = vunpack.c.l.b16 %v4079
    %v4596 = vunpack.c.l.b16 %v4080
    %v4597 = vunpack.c.l.b16 %v4081
    %v4598 = vunpack.c.l.b16 %v4082
    %v4599 = vunpack.c.l.b16 %v4083
    %v4600 = vunpack.c.l.b16 %v4084
    %v4601 = vunpack.c.l.b16 %v4085
    %v4602 = vunpack.c.l.b16 %v4086
    %v4603 = vunpack.c.l.b16 %v4087
    %v4604 = vunpack.c.l.b16 %v4088
    %v4605 = vunpack.c.l.b16 %v4089
    %v4606 = vunpack.c.l.b16 %v4090
    %v4607 = vunpack.c.l.b16 %v4091
    %v4608 = vunpack.c.l.b16 %v4092
    %v4609 = vunpack.c.l.b16 %v4093
    %v4610 = vunpack.c.l.b16 %v4094
    %v4611 = vunpack.c.l.b16 %v4095
    %v4612 = vunpack.c.l.b16 %v4096
    %v4613 = vunpack.c.l.b16 %v4097
    %v4614 = vunpack.c.l.b16 %v4098
    %v4615 = vunpack.c.l.b16 %v4099
    %v4616 = vunpack.c.l.b16 %v4100
    %v4617 = vunpack.c.l.b16 %v4101
    %v4618 = vunpack.c.l.b16 %v4102
    %v4619 = vunpack.c.l.b16 %v4103
    %v4620 = vunpack.c.l.b16 %v4104
    %v4621 = vunpack.c.l.b16 %v4105
    %v4622 = vunpack.c.l.b16 %v4106
    %v4623 = vunpack.c.l.b16 %v4107
    %v4624 = vunpack.c.l.b16 %v4108
    %v4625 = vunpack.c.l.b16 %v4109
    %v4626 = vunpack.c.l.b16 %v4110
    %v4627 = vunpack.c.l.b16 %v4111
    %v4628 = vunpack.c.l.b16 %v4112
    %v4629 = vunpack.c.l.b16 %v4113
    %v4630 = vunpack.c.l.b16 %v4114
    %v4631 = vunpack.c.l.b16 %v4115
    %v4632 = vunpack.c.l.b16 %v4116
    %v4633 = vunpack.c.l.b16 %v4117
    %v4634 = vunpack.c.l.b16 %v4118
    %v4635 = vunpack.c.l.b16 %v4119
    %v4636 = vunpack.c.l.b16 %v4120
    %v4637 = vunpack.c.l.b16 %v4121
    %v4638 = vunpack.c.l.b16 %v4122
    %v4639 = vunpack.c.l.b16 %v4123
    %v4640 = vunpack.c.l.b16 %v4124
    %v4641 = vunpack.c.l.b16 %v4125
    %v4642 = vunpack.c.l.b16 %v4126
    %v4643 = vunpack.c.l.b16 %v4127
    %v4644 = vunpack.c.l.b16 %v4128
    %v4645 = vunpack.c.l.b16 %v4129
    %v4646 = vunpack.c.l.b16 %v4130
    %v4647 = vunpack.c.l.b16 %v4131
    %v4648 = vunpack.c.l.b16 %v4132
    %v4649 = vunpack.c.l.b16 %v4133
    %v4650 = vunpack.c.l.b16 %v4134
    %v4651 = vunpack.c.l.b16 %v4135
    %v4652 = vunpack.c.l.b16 %v4136
    %v4653 = vunpack.c.l.b16 %v4137
    %v4654 = vunpack.c.l.b16 %v4138
    %v4655 = vunpack.c.l.b16 %v4139
    %v4656 = vunpack.c.l.b16 %v4140
    %v4657 = vunpack.c.l.b16 %v4141
    %v4658 = vunpack.c.l.b16 %v4142
    %v4659 = vunpack.c.l.b16 %v4143
    %v4660 = vunpack.c.l.b16 %v4144
    %v4661 = vunpack.c.l.b16 %v4145
    %v4662 = vunpack.c.l.b16 %v4146
    %v4663 = vunpack.c.l.b16 %v4147
    %v4664 = vunpack.c.l.b16 %v4148
    %v4665 = vunpack.c.l.b16 %v4149
    %v4666 = vunpack.c.l.b16 %v4150
    %v4667 = vunpack.c.l.b16 %v4151
    %v4668 = vunpack.c.l.b16 %v4152
    %v4669 = vunpack.c.l.b16 %v4153
    %v4670 = vunpack.c.l.b16 %v4154
    %v4671 = vunpack.c.l.b16 %v4155
    %v4672 = vunpack.c.l.b16 %v4156
    %v4673 = vunpack.c.l.b16 %v4157
    %v4674 = vunpack.c.l.b16 %v4158
    %v4675 = vunpack.c.l.b16 %v4159
    %v4676 = vunpack.c.l.b16 %v4160
    %v4677 = vunpack.c.l.b16 %v4161
    %v4678 = vunpack.c.l.b16 %v4162
    %v4679 = vunpack.c.l.b16 %v4163
    %v4680 = vunpack.c.l.b16 %v4164
    %v4681 = vunpack.c.l.b16 %v4165
    %v4682 = vunpack.c.l.b16 %v4166
    %v4683 = vunpack.c.l.b16 %v4167
    %v4684 = vunpack.c.l.b16 %v4168
    %v4685 = vunpack.c.l.b16 %v4169
    %v4686 = vunpack.c.l.b16 %v4170
    %v4687 = vunpack.c.l.b16 %v4171
    %v4688 = vunpack.c.l.b16 %v4172
    %v4689 = vunpack.c.l.b16 %v4173
    %v4690 = vunpack.c.l.b16 %v4174
    %v4691 = vunpack.c.l.b16 %v4175
    %v4692 = vunpack.c.l.b16 %v4176
    %v4693 = vunpack.c.l.b16 %v4177
    %v4694 = vunpack.c.l.b16 %v4178
    %v4695 = vunpack.c.l.b16 %v4179
    %v4696 = vunpack.c.l.b16 %v4180
    %v4697 = vunpack.c.l.b16 %v4181
    %v4698 = vunpack.c.l.b16 %v4182
    %v4699 = vunpack.c.l.b16 %v4183
    %v4700 = vunpack.c.l.b16 %v4184
    %v4701 = vunpack.c.l.b16 %v4185
    %v4702 = vunpack.c.l.b16 %v4186
    %v4703 = vunpack.c.l.b16 %v4187
    %v4704 = vunpack.c.l.b16 %v4188
    %v4705 = vunpack.c.l.b16 %v4189
    %v4706 = vunpack.c.l.b16 %v4190
    %v4707 = vunpack.c.l.b16 %v4191
    %v4708 = vunpack.c.l.b16 %v4192
    %v4709 = vunpack.c.l.b16 %v4193
    %v4710 = vunpack.c.l.b16 %v4194
    %v4711 = vunpack.c.l.b16 %v4195
    %v4712 = vunpack.c.l.b16 %v4196
    %v4713 = vunpack.c.l.b16 %v4197
    %v4714 = vunpack.c.l.b16 %v4198
    %v4715 = vunpack.c.l.b16 %v4199
    %v4716 = vunpack.c.l.b16 %v4200
    %v4717 = vunpack.c.l.b16 %v4201
    %v4718 = vunpack.c.l.b16 %v4202
    %v4719 = vunpack.c.l.b16 %v4203
    %v4720 = vunpack.c.l.b16 %v4204
    %v4721 = vunpack.c.l.b16 %v4205
    %v4722 = vunpack.c.l.b16 %v4206
    %v4723 = vunpack.c.l.b16 %v4207
    %v4724 = vunpack.c.l.b16 %v4208
    %v4725 = vunpack.c.l.b16 %v4209
    %v4726 = vunpack.c.l.b16 %v4210
    %v4727 = vunpack.c.l.b16 %v4211
    %v4728 = vunpack.c.l.b16 %v4212
    %v4729 = vunpack.c.l.b16 %v4213
    %v4730 = vunpack.c.l.b16 %v4214
    %v4731 = vunpack.c.l.b16 %v4215
    %v4732 = vunpack.c.l.b16 %v4216
    %v4733 = vunpack.c.l.b16 %v4217
    %v4734 = vunpack.c.l.b16 %v4218
    %v4735 = vunpack.c.l.b16 %v4219
    %v4736 = vunpack.c.l.b16 %v4220
    %v4737 = vunpack.c.l.b16 %v4221
    %v4738 = vunpack.c.l.b16 %v4222
    %v4739 = vunpack.c.l.b16 %v4223
    %v4740 = vunpack.c.l.b16 %v4224
    %v4741 = vunpack.c.l.b16 %v4225
    %v4742 = vunpack.c.l.b16 %v4226
    %v4743 = vunpack.c.l.b16 %v4227
    %v4744 = vunpack.c.l.b16 %v4228
    %v4745 = vunpack.c.l.b16 %v4229
    %v4746 = vunpack.c.l.b16 %v4230
    %v4747 = vunpack.c.l.b16 %v4231
    %v4748 = vunpack.c.l.b16 %v4232
    %v4749 = vunpack.c.l.b16 %v4233
    %v4750 = vunpack.c.l.b16 %v4234
    %v4751 = vunpack.c.l.b16 %v4235
    %v4752 = vunpack.c.l.b16 %v4236
    %v4753 = vunpack.c.l.b16 %v4237
    %v4754 = vunpack.c.l.b16 %v4238
    %v4755 = vunpack.c.l.b16 %v4239
    %v4756 = vunpack.c.l.b16 %v4240
    %v4757 = vunpack.c.l.b16 %v4241
    %v4758 = vunpack.c.l.b16 %v4242
    %v4759 = vpack.c.b16 %v4504, %v4503
    %v4760 = vpack.c.b16 %v4506, %v4505
    %v4761 = vpack.c.b16 %v4508, %v4507
    %v4762 = vpack.c.b16 %v4510, %v4509
    %v4763 = vpack.c.b16 %v4512, %v4511
    %v4764 = vpack.c.b16 %v4514, %v4513
    %v4765 = vpack.c.b16 %v4516, %v4515
    %v4766 = vpack.c.b16 %v4518, %v4517
    %v4767 = vpack.c.b16 %v4520, %v4519
    %v4768 = vpack.c.b16 %v4522, %v4521
    %v4769 = vpack.c.b16 %v4524, %v4523
    %v4770 = vpack.c.b16 %v4526, %v4525
    %v4771 = vpack.c.b16 %v4528, %v4527
    %v4772 = vpack.c.b16 %v4530, %v4529
    %v4773 = vpack.c.b16 %v4532, %v4531
    %v4774 = vpack.c.b16 %v4534, %v4533
    %v4775 = vpack.c.b16 %v4536, %v4535
    %v4776 = vpack.c.b16 %v4538, %v4537
    %v4777 = vpack.c.b16 %v4540, %v4539
    %v4778 = vpack.c.b16 %v4542, %v4541
    %v4779 = vpack.c.b16 %v4544, %v4543
    %v4780 = vpack.c.b16 %v4546, %v4545
    %v4781 = vpack.c.b16 %v4548, %v4547
    %v4782 = vpack.c.b16 %v4550, %v4549
    %v4783 = vpack.c.b16 %v4552, %v4551
    %v4784 = vpack.c.b16 %v4554, %v4553
    %v4785 = vpack.c.b16 %v4556, %v4555
    %v4786 = vpack.c.b16 %v4558, %v4557
    %v4787 = vpack.c.b16 %v4560, %v4559
    %v4788 = vpack.c.b16 %v4562, %v4561
    %v4789 = vpack.c.b16 %v4564, %v4563
    %v4790 = vpack.c.b16 %v4566, %v4565
    %v4791 = vpack.c.b16 %v4568, %v4567
    %v4792 = vpack.c.b16 %v4570, %v4569
    %v4793 = vpack.c.b16 %v4572, %v4571
    %v4794 = vpack.c.b16 %v4574, %v4573
    %v4795 = vpack.c.b16 %v4576, %v4575
    %v4796 = vpack.c.b16 %v4578, %v4577
    %v4797 = vpack.c.b16 %v4580, %v4579
    %v4798 = vpack.c.b16 %v4582, %v4581
    %v4799 = vpack.c.b16 %v4584, %v4583
    %v4800 = vpack.c.b16 %v4586, %v4585
    %v4801 = vpack.c.b16 %v4588, %v4587
    %v4802 = vpack.c.b16 %v4590, %v4589
    %v4803 = vpack.c.b16 %v4592, %v4591
    %v4804 = vpack.c.b16 %v4594, %v4593
    %v4805 = vpack.c.b16 %v4596, %v4595
    %v4806 = vpack.c.b16 %v4598, %v4597
    %v4807 = vpack.c.b16 %v4600, %v4599
    %v4808 = vpack.c.b16 %v4602, %v4601
    %v4809 = vpack.c.b16 %v4604, %v4603
    %v4810 = vpack.c.b16 %v4606, %v4605
    %v4811 = vpack.c.b16 %v4608, %v4607
    %v4812 = vpack.c.b16 %v4610, %v4609
    %v4813 = vpack.c.b16 %v4612, %v4611
    %v4814 = vpack.c.b16 %v4614, %v4613
    %v4815 = vpack.c.b16 %v4616, %v4615
    %v4816 = vpack.c.b16 %v4618, %v4617
    %v4817 = vpack.c.b16 %v4620, %v4619
    %v4818 = vpack.c.b16 %v4622, %v4621
    %v4819 = vpack.c.b16 %v4624, %v4623
    %v4820 = vpack.c.b16 %v4626, %v4625
    %v4821 = vpack.c.b16 %v4628, %v4627
    %v4822 = vpack.c.b16 %v4630, %v4629
    %v4823 = vpack.c.b16 %v4632, %v4631
    %v4824 = vpack.c.b16 %v4634, %v4633
    %v4825 = vpack.c.b16 %v4636, %v4635
    %v4826 = vpack.c.b16 %v4638, %v4637
    %v4827 = vpack.c.b16 %v4640, %v4639
    %v4828 = vpack.c.b16 %v4642, %v4641
    %v4829 = vpack.c.b16 %v4644, %v4643
    %v4830 = vpack.c.b16 %v4646, %v4645
    %v4831 = vpack.c.b16 %v4648, %v4647
    %v4832 = vpack.c.b16 %v4650, %v4649
    %v4833 = vpack.c.b16 %v4652, %v4651
    %v4834 = vpack.c.b16 %v4654, %v4653
    %v4835 = vpack.c.b16 %v4656, %v4655
    %v4836 = vpack.c.b16 %v4658, %v4657
    %v4837 = vpack.c.b16 %v4660, %v4659
    %v4838 = vpack.c.b16 %v4662, %v4661
    %v4839 = vpack.c.b16 %v4664, %v4663
    %v4840 = vpack.c.b16 %v4666, %v4665
    %v4841 = vpack.c.b16 %v4668, %v4667
    %v4842 = vpack.c.b16 %v4670, %v4669
    %v4843 = vpack.c.b16 %v4672, %v4671
    %v4844 = vpack.c.b16 %v4674, %v4673
    %v4845 = vpack.c.b16 %v4676, %v4675
    %v4846 = vpack.c.b16 %v4678, %v4677
    %v4847 = vpack.c.b16 %v4680, %v4679
    %v4848 = vpack.c.b16 %v4682, %v4681
    %v4849 = vpack.c.b16 %v4684, %v4683
    %v4850 = vpack.c.b16 %v4686, %v4685
    %v4851 = vpack.c.b16 %v4688, %v4687
    %v4852 = vpack.c.b16 %v4690, %v4689
    %v4853 = vpack.c.b16 %v4692, %v4691
    %v4854 = vpack.c.b16 %v4694, %v4693
    %v4855 = vpack.c.b16 %v4696, %v4695
    %v4856 = vpack.c.b16 %v4698, %v4697
    %v4857 = vpack.c.b16 %v4700, %v4699
    %v4858 = vpack.c.b16 %v4702, %v4701
    %v4859 = vpack.c.b16 %v4704, %v4703
    %v4860 = vpack.c.b16 %v4706, %v4705
    %v4861 = vpack.c.b16 %v4708, %v4707
    %v4862 = vpack.c.b16 %v4710, %v4709
    %v4863 = vpack.c.b16 %v4712, %v4711
    %v4864 = vpack.c.b16 %v4714, %v4713
    %v4865 = vpack.c.b16 %v4716, %v4715
    %v4866 = vpack.c.b16 %v4718, %v4717
    %v4867 = vpack.c.b16 %v4720, %v4719
    %v4868 = vpack.c.b16 %v4722, %v4721
    %v4869 = vpack.c.b16 %v4724, %v4723
    %v4870 = vpack.c.b16 %v4726, %v4725
    %v4871 = vpack.c.b16 %v4728, %v4727
    %v4872 = vpack.c.b16 %v4730, %v4729
    %v4873 = vpack.c.b16 %v4732, %v4731
    %v4874 = vpack.c.b16 %v4734, %v4733
    %v4875 = vpack.c.b16 %v4736, %v4735
    %v4876 = vpack.c.b16 %v4738, %v4737
    %v4877 = vpack.c.b16 %v4740, %v4739
    %v4878 = vpack.c.b16 %v4742, %v4741
    %v4879 = vpack.c.b16 %v4744, %v4743
    %v4880 = vpack.c.b16 %v4746, %v4745
    %v4881 = vpack.c.b16 %v4748, %v4747
    %v4882 = vpack.c.b16 %v4750, %v4749
    %v4883 = vpack.c.b16 %v4752, %v4751
    %v4884 = vpack.c.b16 %v4754, %v4753
    %v4885 = vpack.c.b16 %v4756, %v4755
    %v4886 = vpack.c.b16 %v4758, %v4757
    %5015 = vmatprep.subr.bf16.mxu0 0
    %5016 = vmatpush1.bf16.msra.mxu0 %v4759
    %5017 = vmatprep.subr.bf16.mxu0 0
    %5018 = vmatpush1.bf16.msra.mxu0 %v4760
    %5019 = vmatprep.subr.bf16.mxu0 0
    %5020 = vmatpush1.bf16.msra.mxu0 %v4761
    %5021 = vmatprep.subr.bf16.mxu0 0
    %5022 = vmatpush1.bf16.msra.mxu0 %v4762
    %5023 = vmatprep.subr.bf16.mxu0 0
    %5024 = vmatpush1.bf16.msra.mxu0 %v4763
    %5025 = vmatprep.subr.bf16.mxu0 0
    %5026 = vmatpush1.bf16.msra.mxu0 %v4764
    %5027 = vmatprep.subr.bf16.mxu0 0
    %5028 = vmatpush1.bf16.msra.mxu0 %v4765
    %5029 = vmatprep.subr.bf16.mxu0 0
    %5030 = vmatpush1.bf16.msra.mxu0 %v4766
    %5031 = vmatprep.subr.bf16.mxu0 0
    %5032 = vmatpush1.bf16.msra.mxu0 %v4767
    %5033 = vmatprep.subr.bf16.mxu0 0
    %5034 = vmatpush1.bf16.msra.mxu0 %v4768
    %5035 = vmatprep.subr.bf16.mxu0 0
    %5036 = vmatpush1.bf16.msra.mxu0 %v4769
    %5037 = vmatprep.subr.bf16.mxu0 0
    %5038 = vmatpush1.bf16.msra.mxu0 %v4770
    %5039 = vmatprep.subr.bf16.mxu0 0
    %5040 = vmatpush1.bf16.msra.mxu0 %v4771
    %5041 = vmatprep.subr.bf16.mxu0 0
    %5042 = vmatpush1.bf16.msra.mxu0 %v4772
    %5043 = vmatprep.subr.bf16.mxu0 0
    %5044 = vmatpush1.bf16.msra.mxu0 %v4773
    %5045 = vmatprep.subr.bf16.mxu0 0
    %5046 = vmatpush1.bf16.msra.mxu0 %v4774
    %5047 = vmatprep.mubr.bf16.mxu0 %v2865
    %5048 = vmatmul.mubr.bf16.gmra.mrb[0].mxu0 %v2864
    %v5049 = vpop.f32.mrb[0].mxu0
    %v5050 = vadd.f32 %v4246, %v5049
    %v5051 = vpop.f32.mrb[0].mxu0
    %v5052 = vpop.f32.mrb[0].mxu0
    %v5053 = vpop.f32.mrb[0].mxu0
    %5054 = vdwg.mxu0
    %5055 = vmatprep.subr.bf16.mxu0 0
    %5056 = vmatpush1.bf16.msra.mxu0 %v4775
    %5057 = vmatprep.subr.bf16.mxu0 0
    %5058 = vmatpush1.bf16.msra.mxu0 %v4776
    %5059 = vmatprep.subr.bf16.mxu0 0
    %5060 = vmatpush1.bf16.msra.mxu0 %v4777
    %5061 = vmatprep.subr.bf16.mxu0 0
    %5062 = vmatpush1.bf16.msra.mxu0 %v4778
    %5063 = vmatprep.subr.bf16.mxu0 0
    %5064 = vmatpush1.bf16.msra.mxu0 %v4779
    %5065 = vmatprep.subr.bf16.mxu0 0
    %5066 = vmatpush1.bf16.msra.mxu0 %v4780
    %5067 = vmatprep.subr.bf16.mxu0 0
    %5068 = vmatpush1.bf16.msra.mxu0 %v4781
    %5069 = vmatprep.subr.bf16.mxu0 0
    %5070 = vmatpush1.bf16.msra.mxu0 %v4782
    %5071 = vmatprep.subr.bf16.mxu0 0
    %5072 = vmatpush1.bf16.msra.mxu0 %v4783
    %5073 = vmatprep.subr.bf16.mxu0 0
    %5074 = vmatpush1.bf16.msra.mxu0 %v4784
    %5075 = vmatprep.subr.bf16.mxu0 0
    %5076 = vmatpush1.bf16.msra.mxu0 %v4785
    %5077 = vmatprep.subr.bf16.mxu0 0
    %5078 = vmatpush1.bf16.msra.mxu0 %v4786
    %5079 = vmatprep.subr.bf16.mxu0 0
    %5080 = vmatpush1.bf16.msra.mxu0 %v4787
    %5081 = vmatprep.subr.bf16.mxu0 0
    %5082 = vmatpush1.bf16.msra.mxu0 %v4788
    %5083 = vmatprep.subr.bf16.mxu0 0
    %5084 = vmatpush1.bf16.msra.mxu0 %v4789
    %5085 = vmatprep.subr.bf16.mxu0 0
    %5086 = vmatpush1.bf16.msra.mxu0 %v4790
    %5087 = vmatprep.mubr.bf16.mxu0 %v2867
    %5088 = vmatmul.mubr.bf16.gmra.mrb[0].mxu0 %v2866
    %v5089 = vpop.f32.mrb[0].mxu0
    %v5090 = vadd.f32 %v5050, %v5089
    %v5091 = vpop.f32.mrb[0].mxu0
    %v5092 = vpop.f32.mrb[0].mxu0
    %v5093 = vpop.f32.mrb[0].mxu0
    %5094 = vdwg.mxu0
    %5095 = vmatprep.subr.bf16.mxu0 0
    %5096 = vmatpush1.bf16.msra.mxu0 %v4791
    %5097 = vmatprep.subr.bf16.mxu0 0
    %5098 = vmatpush1.bf16.msra.mxu0 %v4792
    %5099 = vmatprep.subr.bf16.mxu0 0
    %5100 = vmatpush1.bf16.msra.mxu0 %v4793
    %5101 = vmatprep.subr.bf16.mxu0 0
    %5102 = vmatpush1.bf16.msra.mxu0 %v4794
    %5103 = vmatprep.subr.bf16.mxu0 0
    %5104 = vmatpush1.bf16.msra.mxu0 %v4795
    %5105 = vmatprep.subr.bf16.mxu0 0
    %5106 = vmatpush1.bf16.msra.mxu0 %v4796
    %5107 = vmatprep.subr.bf16.mxu0 0
    %5108 = vmatpush1.bf16.msra.mxu0 %v4797
    %5109 = vmatprep.subr.bf16.mxu0 0
    %5110 = vmatpush1.bf16.msra.mxu0 %v4798
    %5111 = vmatprep.subr.bf16.mxu0 0
    %5112 = vmatpush1.bf16.msra.mxu0 %v4799
    %5113 = vmatprep.subr.bf16.mxu0 0
    %5114 = vmatpush1.bf16.msra.mxu0 %v4800
    %5115 = vmatprep.subr.bf16.mxu0 0
    %5116 = vmatpush1.bf16.msra.mxu0 %v4801
    %5117 = vmatprep.subr.bf16.mxu0 0
    %5118 = vmatpush1.bf16.msra.mxu0 %v4802
    %5119 = vmatprep.subr.bf16.mxu0 0
    %5120 = vmatpush1.bf16.msra.mxu0 %v4803
    %5121 = vmatprep.subr.bf16.mxu0 0
    %5122 = vmatpush1.bf16.msra.mxu0 %v4804
    %5123 = vmatprep.subr.bf16.mxu0 0
    %5124 = vmatpush1.bf16.msra.mxu0 %v4805
    %5125 = vmatprep.subr.bf16.mxu0 0
    %5126 = vmatpush1.bf16.msra.mxu0 %v4806
    %5127 = vmatprep.mubr.bf16.mxu0 %v2869
    %5128 = vmatmul.mubr.bf16.gmra.mrb[0].mxu0 %v2868
    %v5129 = vpop.f32.mrb[0].mxu0
    %v5130 = vadd.f32 %v5090, %v5129
    %v5131 = vpop.f32.mrb[0].mxu0
    %v5132 = vpop.f32.mrb[0].mxu0
    %v5133 = vpop.f32.mrb[0].mxu0
    %5134 = vdwg.mxu0
    %5135 = vmatprep.subr.bf16.mxu0 0
    %5136 = vmatpush1.bf16.msra.mxu0 %v4807
    %5137 = vmatprep.subr.bf16.mxu0 0
    %5138 = vmatpush1.bf16.msra.mxu0 %v4808
    %5139 = vmatprep.subr.bf16.mxu0 0
    %5140 = vmatpush1.bf16.msra.mxu0 %v4809
    %5141 = vmatprep.subr.bf16.mxu0 0
    %5142 = vmatpush1.bf16.msra.mxu0 %v4810
    %5143 = vmatprep.subr.bf16.mxu0 0
    %5144 = vmatpush1.bf16.msra.mxu0 %v4811
    %5145 = vmatprep.subr.bf16.mxu0 0
    %5146 = vmatpush1.bf16.msra.mxu0 %v4812
    %5147 = vmatprep.subr.bf16.mxu0 0
    %5148 = vmatpush1.bf16.msra.mxu0 %v4813
    %5149 = vmatprep.subr.bf16.mxu0 0
    %5150 = vmatpush1.bf16.msra.mxu0 %v4814
    %5151 = vmatprep.subr.bf16.mxu0 0
    %5152 = vmatpush1.bf16.msra.mxu0 %v4815
    %5153 = vmatprep.subr.bf16.mxu0 0
    %5154 = vmatpush1.bf16.msra.mxu0 %v4816
    %5155 = vmatprep.subr.bf16.mxu0 0
    %5156 = vmatpush1.bf16.msra.mxu0 %v4817
    %5157 = vmatprep.subr.bf16.mxu0 0
    %5158 = vmatpush1.bf16.msra.mxu0 %v4818
    %5159 = vmatprep.subr.bf16.mxu0 0
    %5160 = vmatpush1.bf16.msra.mxu0 %v4819
    %5161 = vmatprep.subr.bf16.mxu0 0
    %5162 = vmatpush1.bf16.msra.mxu0 %v4820
    %5163 = vmatprep.subr.bf16.mxu0 0
    %5164 = vmatpush1.bf16.msra.mxu0 %v4821
    %5165 = vmatprep.subr.bf16.mxu0 0
    %5166 = vmatpush1.bf16.msra.mxu0 %v4822
    %5167 = vmatprep.mubr.bf16.mxu0 %v2871
    %5168 = vmatmul.mubr.bf16.gmra.mrb[0].mxu0 %v2870
    %v5169 = vpop.f32.mrb[0].mxu0
    %v5170 = vadd.f32 %v5130, %v5169
    %v5171 = vpop.f32.mrb[0].mxu0
    %v5172 = vpop.f32.mrb[0].mxu0
    %v5173 = vpop.f32.mrb[0].mxu0
    %5174 = vdwg.mxu0
    %5175 = vmatprep.subr.bf16.mxu0 0
    %5176 = vmatpush1.bf16.msra.mxu0 %v4823
    %5177 = vmatprep.subr.bf16.mxu0 0
    %5178 = vmatpush1.bf16.msra.mxu0 %v4824
    %5179 = vmatprep.subr.bf16.mxu0 0
    %5180 = vmatpush1.bf16.msra.mxu0 %v4825
    %5181 = vmatprep.subr.bf16.mxu0 0
    %5182 = vmatpush1.bf16.msra.mxu0 %v4826
    %5183 = vmatprep.subr.bf16.mxu0 0
    %5184 = vmatpush1.bf16.msra.mxu0 %v4827
    %5185 = vmatprep.subr.bf16.mxu0 0
    %5186 = vmatpush1.bf16.msra.mxu0 %v4828
    %5187 = vmatprep.subr.bf16.mxu0 0
    %5188 = vmatpush1.bf16.msra.mxu0 %v4829
    %5189 = vmatprep.subr.bf16.mxu0 0
    %5190 = vmatpush1.bf16.msra.mxu0 %v4830
    %5191 = vmatprep.subr.bf16.mxu0 0
    %5192 = vmatpush1.bf16.msra.mxu0 %v4831
    %5193 = vmatprep.subr.bf16.mxu0 0
    %5194 = vmatpush1.bf16.msra.mxu0 %v4832
    %5195 = vmatprep.subr.bf16.mxu0 0
    %5196 = vmatpush1.bf16.msra.mxu0 %v4833
    %5197 = vmatprep.subr.bf16.mxu0 0
    %5198 = vmatpush1.bf16.msra.mxu0 %v4834
    %5199 = vmatprep.subr.bf16.mxu0 0
    %5200 = vmatpush1.bf16.msra.mxu0 %v4835
    %5201 = vmatprep.subr.bf16.mxu0 0
    %5202 = vmatpush1.bf16.msra.mxu0 %v4836
    %5203 = vmatprep.subr.bf16.mxu0 0
    %5204 = vmatpush1.bf16.msra.mxu0 %v4837
    %5205 = vmatprep.subr.bf16.mxu0 0
    %5206 = vmatpush1.bf16.msra.mxu0 %v4838
    %5207 = vmatprep.mubr.bf16.mxu0 %v2873
    %5208 = vmatmul.mubr.bf16.gmra.mrb[0].mxu0 %v2872
    %v5209 = vpop.f32.mrb[0].mxu0
    %v5210 = vadd.f32 %v5170, %v5209
    %v5211 = vpop.f32.mrb[0].mxu0
    %v5212 = vpop.f32.mrb[0].mxu0
    %v5213 = vpop.f32.mrb[0].mxu0
    %5214 = vdwg.mxu0
    %5215 = vmatprep.subr.bf16.mxu0 0
    %5216 = vmatpush1.bf16.msra.mxu0 %v4839
    %5217 = vmatprep.subr.bf16.mxu0 0
    %5218 = vmatpush1.bf16.msra.mxu0 %v4840
    %5219 = vmatprep.subr.bf16.mxu0 0
    %5220 = vmatpush1.bf16.msra.mxu0 %v4841
    %5221 = vmatprep.subr.bf16.mxu0 0
    %5222 = vmatpush1.bf16.msra.mxu0 %v4842
    %5223 = vmatprep.subr.bf16.mxu0 0
    %5224 = vmatpush1.bf16.msra.mxu0 %v4843
    %5225 = vmatprep.subr.bf16.mxu0 0
    %5226 = vmatpush1.bf16.msra.mxu0 %v4844
    %5227 = vmatprep.subr.bf16.mxu0 0
    %5228 = vmatpush1.bf16.msra.mxu0 %v4845
    %5229 = vmatprep.subr.bf16.mxu0 0
    %5230 = vmatpush1.bf16.msra.mxu0 %v4846
    %5231 = vmatprep.subr.bf16.mxu0 0
    %5232 = vmatpush1.bf16.msra.mxu0 %v4847
    %5233 = vmatprep.subr.bf16.mxu0 0
    %5234 = vmatpush1.bf16.msra.mxu0 %v4848
    %5235 = vmatprep.subr.bf16.mxu0 0
    %5236 = vmatpush1.bf16.msra.mxu0 %v4849
    %5237 = vmatprep.subr.bf16.mxu0 0
    %5238 = vmatpush1.bf16.msra.mxu0 %v4850
    %5239 = vmatprep.subr.bf16.mxu0 0
    %5240 = vmatpush1.bf16.msra.mxu0 %v4851
    %5241 = vmatprep.subr.bf16.mxu0 0
    %5242 = vmatpush1.bf16.msra.mxu0 %v4852
    %5243 = vmatprep.subr.bf16.mxu0 0
    %5244 = vmatpush1.bf16.msra.mxu0 %v4853
    %5245 = vmatprep.subr.bf16.mxu0 0
    %5246 = vmatpush1.bf16.msra.mxu0 %v4854
    %5247 = vmatprep.mubr.bf16.mxu0 %v2875
    %5248 = vmatmul.mubr.bf16.gmra.mrb[0].mxu0 %v2874
    %v5249 = vpop.f32.mrb[0].mxu0
    %v5250 = vadd.f32 %v5210, %v5249
    %v5251 = vpop.f32.mrb[0].mxu0
    %v5252 = vpop.f32.mrb[0].mxu0
    %v5253 = vpop.f32.mrb[0].mxu0
    %5254 = vdwg.mxu0
    %5255 = vmatprep.subr.bf16.mxu0 0
    %5256 = vmatpush1.bf16.msra.mxu0 %v4855
    %5257 = vmatprep.subr.bf16.mxu0 0
    %5258 = vmatpush1.bf16.msra.mxu0 %v4856
    %5259 = vmatprep.subr.bf16.mxu0 0
    %5260 = vmatpush1.bf16.msra.mxu0 %v4857
    %5261 = vmatprep.subr.bf16.mxu0 0
    %5262 = vmatpush1.bf16.msra.mxu0 %v4858
    %5263 = vmatprep.subr.bf16.mxu0 0
    %5264 = vmatpush1.bf16.msra.mxu0 %v4859
    %5265 = vmatprep.subr.bf16.mxu0 0
    %5266 = vmatpush1.bf16.msra.mxu0 %v4860
    %5267 = vmatprep.subr.bf16.mxu0 0
    %5268 = vmatpush1.bf16.msra.mxu0 %v4861
    %5269 = vmatprep.subr.bf16.mxu0 0
    %5270 = vmatpush1.bf16.msra.mxu0 %v4862
    %5271 = vmatprep.subr.bf16.mxu0 0
    %5272 = vmatpush1.bf16.msra.mxu0 %v4863
    %5273 = vmatprep.subr.bf16.mxu0 0
    %5274 = vmatpush1.bf16.msra.mxu0 %v4864
    %5275 = vmatprep.subr.bf16.mxu0 0
    %5276 = vmatpush1.bf16.msra.mxu0 %v4865
    %5277 = vmatprep.subr.bf16.mxu0 0
    %5278 = vmatpush1.bf16.msra.mxu0 %v4866
    %5279 = vmatprep.subr.bf16.mxu0 0
    %5280 = vmatpush1.bf16.msra.mxu0 %v4867
    %5281 = vmatprep.subr.bf16.mxu0 0
    %5282 = vmatpush1.bf16.msra.mxu0 %v4868
    %5283 = vmatprep.subr.bf16.mxu0 0
    %5284 = vmatpush1.bf16.msra.mxu0 %v4869
    %5285 = vmatprep.subr.bf16.mxu0 0
    %5286 = vmatpush1.bf16.msra.mxu0 %v4870
    %5287 = vmatprep.mubr.bf16.mxu0 %v2877
    %5288 = vmatmul.mubr.bf16.gmra.mrb[0].mxu0 %v2876
    %v5289 = vpop.f32.mrb[0].mxu0
    %v5290 = vadd.f32 %v5250, %v5289
    %v5291 = vpop.f32.mrb[0].mxu0
    %v5292 = vpop.f32.mrb[0].mxu0
    %v5293 = vpop.f32.mrb[0].mxu0
    %5294 = vdwg.mxu0
    %5295 = vmatprep.subr.bf16.mxu0 0
    %5296 = vmatpush1.bf16.msra.mxu0 %v4871
    %5297 = vmatprep.subr.bf16.mxu0 0
    %5298 = vmatpush1.bf16.msra.mxu0 %v4872
    %5299 = vmatprep.subr.bf16.mxu0 0
    %5300 = vmatpush1.bf16.msra.mxu0 %v4873
    %5301 = vmatprep.subr.bf16.mxu0 0
    %5302 = vmatpush1.bf16.msra.mxu0 %v4874
    %5303 = vmatprep.subr.bf16.mxu0 0
    %5304 = vmatpush1.bf16.msra.mxu0 %v4875
    %5305 = vmatprep.subr.bf16.mxu0 0
    %5306 = vmatpush1.bf16.msra.mxu0 %v4876
    %5307 = vmatprep.subr.bf16.mxu0 0
    %5308 = vmatpush1.bf16.msra.mxu0 %v4877
    %5309 = vmatprep.subr.bf16.mxu0 0
    %5310 = vmatpush1.bf16.msra.mxu0 %v4878
    %5311 = vmatprep.subr.bf16.mxu0 0
    %5312 = vmatpush1.bf16.msra.mxu0 %v4879
    %5313 = vmatprep.subr.bf16.mxu0 0
    %5314 = vmatpush1.bf16.msra.mxu0 %v4880
    %5315 = vmatprep.subr.bf16.mxu0 0
    %5316 = vmatpush1.bf16.msra.mxu0 %v4881
    %5317 = vmatprep.subr.bf16.mxu0 0
    %5318 = vmatpush1.bf16.msra.mxu0 %v4882
    %5319 = vmatprep.subr.bf16.mxu0 0
    %5320 = vmatpush1.bf16.msra.mxu0 %v4883
    %5321 = vmatprep.subr.bf16.mxu0 0
    %5322 = vmatpush1.bf16.msra.mxu0 %v4884
    %5323 = vmatprep.subr.bf16.mxu0 0
    %5324 = vmatpush1.bf16.msra.mxu0 %v4885
    %5325 = vmatprep.subr.bf16.mxu0 0
    %5326 = vmatpush1.bf16.msra.mxu0 %v4886
    %5327 = vmatprep.mubr.bf16.mxu0 %v2879
    %5328 = vmatmul.mubr.bf16.gmra.mrb[0].mxu0 %v2878
    %v5329 = vpop.f32.mrb[0].mxu0
    %v5330 = vadd.f32 %v5290, %v5329
    %v5331 = vpop.f32.mrb[0].mxu0
    %v5332 = vpop.f32.mrb[0].mxu0
    %v5333 = vpop.f32.mrb[0].mxu0
    %5334 = vdwg.mxu0
    %v5335 = vtanh.pop %v5330
    %v5336 = vsub.f32 0.0, %v5330
    %v5337 = vmul.f32 %v5336, 1.442695
    %v5338 = vpow.pop %v5337
    %v5339 = vadd.f32 %v5338, 1.0
    %v5340 = vrcp.pop %v5339
    %5342 = vrot.lane.b32.xlu0 %v5340, 96
    %v5343 = vpop.permute.xlu0 %5342
    %v5345 = vmul.f32 %v5335, %v5343
    %v5346 = vlaneseq
    %v5347 = vshrl.u32 %v5346, 7
    %v5348 = vsub.s32 1, %v5347
    %v5349 = vrot.slane %v3985, %v5348
    %v5350 = vmul.f32 %v5345, %v5349
    %vm5351 = vcmask 257024
    %v5352 = vsel %vm5351, %v5350, 0.0
    %5353 = vadd.xlane.f32.xlu0 %v5352
    %v5354 = vpop.xlane.xlu0 %5353
    %s5355 = sld [smem:[#allocation11 + $0x1]]
    %v5356 = vstv %s5355
    %v5357 = vadd.f32 %v5354, %v5356
    %vm5358 = vcmask 1043456
    %v5359 = vsel %vm5358, %v5357, -inf
    %v5360 = vrot.slane %v5359, 4
    %v5361 = vmax.f32 %v5359, %v5360
    %v5362 = vrot.slane %v5361, 2
    %v5363 = vmax.f32 %v5361, %v5362
    %v5364 = vrot.slane %v5363, 1
    %v5365 = vmax.f32 %v5363, %v5364
    %v5366 = vsub.f32 %v5357, %v5365
    %v5367 = vmul.f32 %v5366, 1.442695
    %v5368 = vpow.pop %v5367
    %v5369 = vsel %vm5358, %v5368, 0.0
    %v5370 = vrot.slane %v5369, 4
    %v5371 = vadd.f32 %v5369, %v5370
    %v5372 = vrot.slane %v5371, 2
    %v5373 = vadd.f32 %v5371, %v5372
    %v5374 = vrot.slane %v5373, 1
    %v5375 = vadd.f32 %v5373, %v5374
    %v5376 = vrcp.pop %v5375
    %v5377 = vmul.f32 %v5368, %v5376
    %v5442 = vsel %vm2813, %v2078, %v1982
    %v5443 = vsel %vm2815, %v2174, %v5442
    %v5444 = vsel %vm2817, %v2270, %v5443
    %v5445 = vsel %vm2813, %v2084, %v1988
    %v5446 = vsel %vm2815, %v2180, %v5445
    %v5447 = vsel %vm2817, %v2276, %v5446
    %v5448 = vsel %vm2813, %v2090, %v1994
    %v5449 = vsel %vm2815, %v2186, %v5448
    %v5450 = vsel %vm2817, %v2282, %v5449
    %v5451 = vsel %vm2813, %v2096, %v2000
    %v5452 = vsel %vm2815, %v2192, %v5451
    %v5453 = vsel %vm2817, %v2288, %v5452
    %v5454 = vsel %vm2813, %v2102, %v2006
    %v5455 = vsel %vm2815, %v2198, %v5454
    %v5456 = vsel %vm2817, %v2294, %v5455
    %v5457 = vsel %vm2813, %v2108, %v2012
    %v5458 = vsel %vm2815, %v2204, %v5457
    %v5459 = vsel %vm2817, %v2300, %v5458
    %v5460 = vsel %vm2813, %v2114, %v2018
    %v5461 = vsel %vm2815, %v2210, %v5460
    %v5462 = vsel %vm2817, %v2306, %v5461
    %v5463 = vsel %vm2813, %v2120, %v2024
    %v5464 = vsel %vm2815, %v2216, %v5463
    %v5465 = vsel %vm2817, %v2312, %v5464
    %v5466 = vsel %vm2813, %v2126, %v2030
    %v5467 = vsel %vm2815, %v2222, %v5466
    %v5468 = vsel %vm2817, %v2318, %v5467
    %v5469 = vsel %vm2813, %v2132, %v2036
    %v5470 = vsel %vm2815, %v2228, %v5469
    %v5471 = vsel %vm2817, %v2324, %v5470
    %v5472 = vsel %vm2813, %v2138, %v2042
    %v5473 = vsel %vm2815, %v2234, %v5472
    %v5474 = vsel %vm2817, %v2330, %v5473
    %v5475 = vsel %vm2813, %v2144, %v2048
    %v5476 = vsel %vm2815, %v2240, %v5475
    %v5477 = vsel %vm2817, %v2336, %v5476
    %v5478 = vsel %vm2813, %v2150, %v2054
    %v5479 = vsel %vm2815, %v2246, %v5478
    %v5480 = vsel %vm2817, %v2342, %v5479
    %v5481 = vsel %vm2813, %v2156, %v2060
    %v5482 = vsel %vm2815, %v2252, %v5481
    %v5483 = vsel %vm2817, %v2348, %v5482
    %v5484 = vsel %vm2813, %v2162, %v2066
    %v5485 = vsel %vm2815, %v2258, %v5484
    %v5486 = vsel %vm2817, %v2354, %v5485
    %v5487 = vsel %vm2813, %v2168, %v2072
    %v5488 = vsel %vm2815, %v2264, %v5487
    %v5489 = vsel %vm2817, %v2360, %v5488
    %v5506 = vmul.f32 %v5377, %v5444
    %v5507 = vmul.f32 %v5377, %v5447
    %v5508 = vmul.f32 %v5377, %v5450
    %v5509 = vmul.f32 %v5377, %v5453
    %v5510 = vmul.f32 %v5377, %v5456
    %v5511 = vmul.f32 %v5377, %v5459
    %v5512 = vmul.f32 %v5377, %v5462
    %v5513 = vmul.f32 %v5377, %v5465
    %v5514 = vmul.f32 %v5377, %v5468
    %v5515 = vmul.f32 %v5377, %v5471
    %v5516 = vmul.f32 %v5377, %v5474
    %v5517 = vmul.f32 %v5377, %v5477
    %v5518 = vmul.f32 %v5377, %v5480
    %v5519 = vmul.f32 %v5377, %v5483
    %v5520 = vmul.f32 %v5377, %v5486
    %v5521 = vmul.f32 %v5377, %v5489
    %v5522 = vsel %vm5358, %v5506, 0.0
    %v5523 = vrot.slane %v5522, 4
    %v5524 = vadd.f32 %v5522, %v5523
    %v5525 = vrot.slane %v5524, 2
    %v5526 = vadd.f32 %v5524, %v5525
    %v5527 = vrot.slane %v5526, 1
    %v5528 = vadd.f32 %v5526, %v5527
    %v5529 = vsel %vm5358, %v5507, 0.0
    %v5530 = vrot.slane %v5529, 4
    %v5531 = vadd.f32 %v5529, %v5530
    %v5532 = vrot.slane %v5531, 2
    %v5533 = vadd.f32 %v5531, %v5532
    %v5534 = vrot.slane %v5533, 1
    %v5535 = vadd.f32 %v5533, %v5534
    %v5536 = vsel %vm5358, %v5508, 0.0
    %v5537 = vrot.slane %v5536, 4
    %v5538 = vadd.f32 %v5536, %v5537
    %v5539 = vrot.slane %v5538, 2
    %v5540 = vadd.f32 %v5538, %v5539
    %v5541 = vrot.slane %v5540, 1
    %v5542 = vadd.f32 %v5540, %v5541
    %v5543 = vsel %vm5358, %v5509, 0.0
    %v5544 = vrot.slane %v5543, 4
    %v5545 = vadd.f32 %v5543, %v5544
    %v5546 = vrot.slane %v5545, 2
    %v5547 = vadd.f32 %v5545, %v5546
    %v5548 = vrot.slane %v5547, 1
    %v5549 = vadd.f32 %v5547, %v5548
    %v5550 = vsel %vm5358, %v5510, 0.0
    %v5551 = vrot.slane %v5550, 4
    %v5552 = vadd.f32 %v5550, %v5551
    %v5553 = vrot.slane %v5552, 2
    %v5554 = vadd.f32 %v5552, %v5553
    %v5555 = vrot.slane %v5554, 1
    %v5556 = vadd.f32 %v5554, %v5555
    %v5557 = vsel %vm5358, %v5511, 0.0
    %v5558 = vrot.slane %v5557, 4
    %v5559 = vadd.f32 %v5557, %v5558
    %v5560 = vrot.slane %v5559, 2
    %v5561 = vadd.f32 %v5559, %v5560
    %v5562 = vrot.slane %v5561, 1
    %v5563 = vadd.f32 %v5561, %v5562
    %v5564 = vsel %vm5358, %v5512, 0.0
    %v5565 = vrot.slane %v5564, 4
    %v5566 = vadd.f32 %v5564, %v5565
    %v5567 = vrot.slane %v5566, 2
    %v5568 = vadd.f32 %v5566, %v5567
    %v5569 = vrot.slane %v5568, 1
    %v5570 = vadd.f32 %v5568, %v5569
    %v5571 = vsel %vm5358, %v5513, 0.0
    %v5572 = vrot.slane %v5571, 4
    %v5573 = vadd.f32 %v5571, %v5572
    %v5574 = vrot.slane %v5573, 2
    %v5575 = vadd.f32 %v5573, %v5574
    %v5576 = vrot.slane %v5575, 1
    %v5577 = vadd.f32 %v5575, %v5576
    %v5578 = vsel %vm5358, %v5514, 0.0
    %v5579 = vrot.slane %v5578, 4
    %v5580 = vadd.f32 %v5578, %v5579
    %v5581 = vrot.slane %v5580, 2
    %v5582 = vadd.f32 %v5580, %v5581
    %v5583 = vrot.slane %v5582, 1
    %v5584 = vadd.f32 %v5582, %v5583
    %v5585 = vsel %vm5358, %v5515, 0.0
    %v5586 = vrot.slane %v5585, 4
    %v5587 = vadd.f32 %v5585, %v5586
    %v5588 = vrot.slane %v5587, 2
    %v5589 = vadd.f32 %v5587, %v5588
    %v5590 = vrot.slane %v5589, 1
    %v5591 = vadd.f32 %v5589, %v5590
    %v5592 = vsel %vm5358, %v5516, 0.0
    %v5593 = vrot.slane %v5592, 4
    %v5594 = vadd.f32 %v5592, %v5593
    %v5595 = vrot.slane %v5594, 2
    %v5596 = vadd.f32 %v5594, %v5595
    %v5597 = vrot.slane %v5596, 1
    %v5598 = vadd.f32 %v5596, %v5597
    %v5599 = vsel %vm5358, %v5517, 0.0
    %v5600 = vrot.slane %v5599, 4
    %v5601 = vadd.f32 %v5599, %v5600
    %v5602 = vrot.slane %v5601, 2
    %v5603 = vadd.f32 %v5601, %v5602
    %v5604 = vrot.slane %v5603, 1
    %v5605 = vadd.f32 %v5603, %v5604
    %v5606 = vsel %vm5358, %v5518, 0.0
    %v5607 = vrot.slane %v5606, 4
    %v5608 = vadd.f32 %v5606, %v5607
    %v5609 = vrot.slane %v5608, 2
    %v5610 = vadd.f32 %v5608, %v5609
    %v5611 = vrot.slane %v5610, 1
    %v5612 = vadd.f32 %v5610, %v5611
    %v5613 = vsel %vm5358, %v5519, 0.0
    %v5614 = vrot.slane %v5613, 4
    %v5615 = vadd.f32 %v5613, %v5614
    %v5616 = vrot.slane %v5615, 2
    %v5617 = vadd.f32 %v5615, %v5616
    %v5618 = vrot.slane %v5617, 1
    %v5619 = vadd.f32 %v5617, %v5618
    %v5620 = vsel %vm5358, %v5520, 0.0
    %v5621 = vrot.slane %v5620, 4
    %v5622 = vadd.f32 %v5620, %v5621
    %v5623 = vrot.slane %v5622, 2
    %v5624 = vadd.f32 %v5622, %v5623
    %v5625 = vrot.slane %v5624, 1
    %v5626 = vadd.f32 %v5624, %v5625
    %v5627 = vsel %vm5358, %v5521, 0.0
    %v5628 = vrot.slane %v5627, 4
    %v5629 = vadd.f32 %v5627, %v5628
    %v5630 = vrot.slane %v5629, 2
    %v5631 = vadd.f32 %v5629, %v5630
    %v5632 = vrot.slane %v5631, 1
    %v5633 = vadd.f32 %v5631, %v5632
    %v5634 = vpack.c.bf16 %v5528, %v5528
    %v5635 = vpack.c.bf16 %v5535, %v5535
    %v5636 = vpack.c.bf16 %v5542, %v5542
    %v5637 = vpack.c.bf16 %v5549, %v5549
    %v5638 = vpack.c.bf16 %v5556, %v5556
    %v5639 = vpack.c.bf16 %v5563, %v5563
    %v5640 = vpack.c.bf16 %v5570, %v5570
    %v5641 = vpack.c.bf16 %v5577, %v5577
    %v5642 = vpack.c.bf16 %v5584, %v5584
    %v5643 = vpack.c.bf16 %v5591, %v5591
    %v5644 = vpack.c.bf16 %v5598, %v5598
    %v5645 = vpack.c.bf16 %v5605, %v5605
    %v5646 = vpack.c.bf16 %v5612, %v5612
    %v5647 = vpack.c.bf16 %v5619, %v5619
    %v5648 = vpack.c.bf16 %v5626, %v5626
    %v5649 = vpack.c.bf16 %v5633, %v5633
    %s5650 = scalar_lea.vmem [#allocation8], 1024
    %v5651 = vld [vmem:[%s5650] sm:$0xf]
    %v5652 = vld [vmem:[%s5650 + $0x4] sm:$0xf]
    %v5653 = vld [vmem:[%s5650 + $0x8] sm:$0xf]
    %v5654 = vld [vmem:[%s5650 + $0xc] sm:$0xf]
    %v5655 = vld [vmem:[%s5650 + $0x10] sm:$0xf]
    %v5656 = vld [vmem:[%s5650 + $0x14] sm:$0xf]
    %v5657 = vld [vmem:[%s5650 + $0x18] sm:$0xf]
    %v5658 = vld [vmem:[%s5650 + $0x1c] sm:$0xf]
    %v5659 = vld [vmem:[%s5650 + $0x20] sm:$0xf]
    %v5660 = vld [vmem:[%s5650 + $0x24] sm:$0xf]
    %v5661 = vld [vmem:[%s5650 + $0x28] sm:$0xf]
    %v5662 = vld [vmem:[%s5650 + $0x2c] sm:$0xf]
    %v5663 = vld [vmem:[%s5650 + $0x30] sm:$0xf]
    %v5664 = vld [vmem:[%s5650 + $0x34] sm:$0xf]
    %v5665 = vld [vmem:[%s5650 + $0x38] sm:$0xf]
    %v5666 = vld [vmem:[%s5650 + $0x3c] sm:$0xf]
    %v5667 = vld [vmem:[%s5650 + $0x40] sm:$0xf]
    %v5668 = vld [vmem:[%s5650 + $0x44] sm:$0xf]
    %v5669 = vld [vmem:[%s5650 + $0x48] sm:$0xf]
    %v5670 = vld [vmem:[%s5650 + $0x4c] sm:$0xf]
    %v5671 = vld [vmem:[%s5650 + $0x50] sm:$0xf]
    %v5672 = vld [vmem:[%s5650 + $0x54] sm:$0xf]
    %v5673 = vld [vmem:[%s5650 + $0x58] sm:$0xf]
    %v5674 = vld [vmem:[%s5650 + $0x5c] sm:$0xf]
    %v5675 = vld [vmem:[%s5650 + $0x60] sm:$0xf]
    %v5676 = vld [vmem:[%s5650 + $0x64] sm:$0xf]
    %v5677 = vld [vmem:[%s5650 + $0x68] sm:$0xf]
    %v5678 = vld [vmem:[%s5650 + $0x6c] sm:$0xf]
    %v5679 = vld [vmem:[%s5650 + $0x70] sm:$0xf]
    %v5680 = vld [vmem:[%s5650 + $0x74] sm:$0xf]
    %v5681 = vld [vmem:[%s5650 + $0x78] sm:$0xf]
    %v5682 = vld [vmem:[%s5650 + $0x7c] sm:$0xf]
    %v5683 = vld [vmem:[%s5650 + $0x80] sm:$0xf]
    %v5684 = vld [vmem:[%s5650 + $0x84] sm:$0xf]
    %v5685 = vld [vmem:[%s5650 + $0x88] sm:$0xf]
    %v5686 = vld [vmem:[%s5650 + $0x8c] sm:$0xf]
    %v5687 = vld [vmem:[%s5650 + $0x90] sm:$0xf]
    %v5688 = vld [vmem:[%s5650 + $0x94] sm:$0xf]
    %v5689 = vld [vmem:[%s5650 + $0x98] sm:$0xf]
    %v5690 = vld [vmem:[%s5650 + $0x9c] sm:$0xf]
    %v5691 = vld [vmem:[%s5650 + $0xa0] sm:$0xf]
    %v5692 = vld [vmem:[%s5650 + $0xa4] sm:$0xf]
    %v5693 = vld [vmem:[%s5650 + $0xa8] sm:$0xf]
    %v5694 = vld [vmem:[%s5650 + $0xac] sm:$0xf]
    %v5695 = vld [vmem:[%s5650 + $0xb0] sm:$0xf]
    %v5696 = vld [vmem:[%s5650 + $0xb4] sm:$0xf]
    %v5697 = vld [vmem:[%s5650 + $0xb8] sm:$0xf]
    %v5698 = vld [vmem:[%s5650 + $0xbc] sm:$0xf]
    %v5699 = vld [vmem:[%s5650 + $0xc0] sm:$0xf]
    %v5700 = vld [vmem:[%s5650 + $0xc4] sm:$0xf]
    %v5701 = vld [vmem:[%s5650 + $0xc8] sm:$0xf]
    %v5702 = vld [vmem:[%s5650 + $0xcc] sm:$0xf]
    %v5703 = vld [vmem:[%s5650 + $0xd0] sm:$0xf]
    %v5704 = vld [vmem:[%s5650 + $0xd4] sm:$0xf]
    %v5705 = vld [vmem:[%s5650 + $0xd8] sm:$0xf]
    %v5706 = vld [vmem:[%s5650 + $0xdc] sm:$0xf]
    %v5707 = vld [vmem:[%s5650 + $0xe0] sm:$0xf]
    %v5708 = vld [vmem:[%s5650 + $0xe4] sm:$0xf]
    %v5709 = vld [vmem:[%s5650 + $0xe8] sm:$0xf]
    %v5710 = vld [vmem:[%s5650 + $0xec] sm:$0xf]
    %v5711 = vld [vmem:[%s5650 + $0xf0] sm:$0xf]
    %v5712 = vld [vmem:[%s5650 + $0xf4] sm:$0xf]
    %v5713 = vld [vmem:[%s5650 + $0xf8] sm:$0xf]
    %v5714 = vld [vmem:[%s5650 + $0xfc] sm:$0xf]
    %v5715 = vld [vmem:[%s5650 + $0x100] sm:$0xf]
    %v5716 = vld [vmem:[%s5650 + $0x104] sm:$0xf]
    %v5717 = vld [vmem:[%s5650 + $0x108] sm:$0xf]
    %v5718 = vld [vmem:[%s5650 + $0x10c] sm:$0xf]
    %v5719 = vld [vmem:[%s5650 + $0x110] sm:$0xf]
    %v5720 = vld [vmem:[%s5650 + $0x114] sm:$0xf]
    %v5721 = vld [vmem:[%s5650 + $0x118] sm:$0xf]
    %v5722 = vld [vmem:[%s5650 + $0x11c] sm:$0xf]
    %v5723 = vld [vmem:[%s5650 + $0x120] sm:$0xf]
    %v5724 = vld [vmem:[%s5650 + $0x124] sm:$0xf]
    %v5725 = vld [vmem:[%s5650 + $0x128] sm:$0xf]
    %v5726 = vld [vmem:[%s5650 + $0x12c] sm:$0xf]
    %v5727 = vld [vmem:[%s5650 + $0x130] sm:$0xf]
    %v5728 = vld [vmem:[%s5650 + $0x134] sm:$0xf]
    %v5729 = vld [vmem:[%s5650 + $0x138] sm:$0xf]
    %v5730 = vld [vmem:[%s5650 + $0x13c] sm:$0xf]
    %v5731 = vld [vmem:[%s5650 + $0x140] sm:$0xf]
    %v5732 = vld [vmem:[%s5650 + $0x144] sm:$0xf]
    %v5733 = vld [vmem:[%s5650 + $0x148] sm:$0xf]
    %v5734 = vld [vmem:[%s5650 + $0x14c] sm:$0xf]
    %v5735 = vld [vmem:[%s5650 + $0x150] sm:$0xf]
    %v5736 = vld [vmem:[%s5650 + $0x154] sm:$0xf]
    %v5737 = vld [vmem:[%s5650 + $0x158] sm:$0xf]
    %v5738 = vld [vmem:[%s5650 + $0x15c] sm:$0xf]
    %v5739 = vld [vmem:[%s5650 + $0x160] sm:$0xf]
    %v5740 = vld [vmem:[%s5650 + $0x164] sm:$0xf]
    %v5741 = vld [vmem:[%s5650 + $0x168] sm:$0xf]
    %v5742 = vld [vmem:[%s5650 + $0x16c] sm:$0xf]
    %v5743 = vld [vmem:[%s5650 + $0x170] sm:$0xf]
    %v5744 = vld [vmem:[%s5650 + $0x174] sm:$0xf]
    %v5745 = vld [vmem:[%s5650 + $0x178] sm:$0xf]
    %v5746 = vld [vmem:[%s5650 + $0x17c] sm:$0xf]
    %v5747 = vld [vmem:[%s5650 + $0x180] sm:$0xf]
    %v5748 = vld [vmem:[%s5650 + $0x184] sm:$0xf]
    %v5749 = vld [vmem:[%s5650 + $0x188] sm:$0xf]
    %v5750 = vld [vmem:[%s5650 + $0x18c] sm:$0xf]
    %v5751 = vld [vmem:[%s5650 + $0x190] sm:$0xf]
    %v5752 = vld [vmem:[%s5650 + $0x194] sm:$0xf]
    %v5753 = vld [vmem:[%s5650 + $0x198] sm:$0xf]
    %v5754 = vld [vmem:[%s5650 + $0x19c] sm:$0xf]
    %v5755 = vld [vmem:[%s5650 + $0x1a0] sm:$0xf]
    %v5756 = vld [vmem:[%s5650 + $0x1a4] sm:$0xf]
    %v5757 = vld [vmem:[%s5650 + $0x1a8] sm:$0xf]
    %v5758 = vld [vmem:[%s5650 + $0x1ac] sm:$0xf]
    %v5759 = vld [vmem:[%s5650 + $0x1b0] sm:$0xf]
    %v5760 = vld [vmem:[%s5650 + $0x1b4] sm:$0xf]
    %v5761 = vld [vmem:[%s5650 + $0x1b8] sm:$0xf]
    %v5762 = vld [vmem:[%s5650 + $0x1bc] sm:$0xf]
    %v5763 = vld [vmem:[%s5650 + $0x1c0] sm:$0xf]
    %v5764 = vld [vmem:[%s5650 + $0x1c4] sm:$0xf]
    %v5765 = vld [vmem:[%s5650 + $0x1c8] sm:$0xf]
    %v5766 = vld [vmem:[%s5650 + $0x1cc] sm:$0xf]
    %v5767 = vld [vmem:[%s5650 + $0x1d0] sm:$0xf]
    %v5768 = vld [vmem:[%s5650 + $0x1d4] sm:$0xf]
    %v5769 = vld [vmem:[%s5650 + $0x1d8] sm:$0xf]
    %v5770 = vld [vmem:[%s5650 + $0x1dc] sm:$0xf]
    %v5771 = vld [vmem:[%s5650 + $0x1e0] sm:$0xf]
    %v5772 = vld [vmem:[%s5650 + $0x1e4] sm:$0xf]
    %v5773 = vld [vmem:[%s5650 + $0x1e8] sm:$0xf]
    %v5774 = vld [vmem:[%s5650 + $0x1ec] sm:$0xf]
    %v5775 = vld [vmem:[%s5650 + $0x1f0] sm:$0xf]
    %v5776 = vld [vmem:[%s5650 + $0x1f4] sm:$0xf]
    %v5777 = vld [vmem:[%s5650 + $0x1f8] sm:$0xf]
    %v5778 = vld [vmem:[%s5650 + $0x1fc] sm:$0xf]
    %v5779 = vld [vmem:[%s5650 + $0x200] sm:$0xf]
    %v5780 = vld [vmem:[%s5650 + $0x204] sm:$0xf]
    %v5781 = vld [vmem:[%s5650 + $0x208] sm:$0xf]
    %v5782 = vld [vmem:[%s5650 + $0x20c] sm:$0xf]
    %v5783 = vld [vmem:[%s5650 + $0x210] sm:$0xf]
    %v5784 = vld [vmem:[%s5650 + $0x214] sm:$0xf]
    %v5785 = vld [vmem:[%s5650 + $0x218] sm:$0xf]
    %v5786 = vld [vmem:[%s5650 + $0x21c] sm:$0xf]
    %v5787 = vld [vmem:[%s5650 + $0x220] sm:$0xf]
    %v5788 = vld [vmem:[%s5650 + $0x224] sm:$0xf]
    %v5789 = vld [vmem:[%s5650 + $0x228] sm:$0xf]
    %v5790 = vld [vmem:[%s5650 + $0x22c] sm:$0xf]
    %v5791 = vld [vmem:[%s5650 + $0x230] sm:$0xf]
    %v5792 = vld [vmem:[%s5650 + $0x234] sm:$0xf]
    %v5793 = vld [vmem:[%s5650 + $0x238] sm:$0xf]
    %v5794 = vld [vmem:[%s5650 + $0x23c] sm:$0xf]
    %v5795 = vld [vmem:[%s5650 + $0x240] sm:$0xf]
    %v5796 = vld [vmem:[%s5650 + $0x244] sm:$0xf]
    %v5797 = vld [vmem:[%s5650 + $0x248] sm:$0xf]
    %v5798 = vld [vmem:[%s5650 + $0x24c] sm:$0xf]
    %v5799 = vld [vmem:[%s5650 + $0x250] sm:$0xf]
    %v5800 = vld [vmem:[%s5650 + $0x254] sm:$0xf]
    %v5801 = vld [vmem:[%s5650 + $0x258] sm:$0xf]
    %v5802 = vld [vmem:[%s5650 + $0x25c] sm:$0xf]
    %v5803 = vld [vmem:[%s5650 + $0x260] sm:$0xf]
    %v5804 = vld [vmem:[%s5650 + $0x264] sm:$0xf]
    %v5805 = vld [vmem:[%s5650 + $0x268] sm:$0xf]
    %v5806 = vld [vmem:[%s5650 + $0x26c] sm:$0xf]
    %v5807 = vld [vmem:[%s5650 + $0x270] sm:$0xf]
    %v5808 = vld [vmem:[%s5650 + $0x274] sm:$0xf]
    %v5809 = vld [vmem:[%s5650 + $0x278] sm:$0xf]
    %v5810 = vld [vmem:[%s5650 + $0x27c] sm:$0xf]
    %v5811 = vld [vmem:[%s5650 + $0x280] sm:$0xf]
    %v5812 = vld [vmem:[%s5650 + $0x284] sm:$0xf]
    %v5813 = vld [vmem:[%s5650 + $0x288] sm:$0xf]
    %v5814 = vld [vmem:[%s5650 + $0x28c] sm:$0xf]
    %v5815 = vld [vmem:[%s5650 + $0x290] sm:$0xf]
    %v5816 = vld [vmem:[%s5650 + $0x294] sm:$0xf]
    %v5817 = vld [vmem:[%s5650 + $0x298] sm:$0xf]
    %v5818 = vld [vmem:[%s5650 + $0x29c] sm:$0xf]
    %v5819 = vld [vmem:[%s5650 + $0x2a0] sm:$0xf]
    %v5820 = vld [vmem:[%s5650 + $0x2a4] sm:$0xf]
    %v5821 = vld [vmem:[%s5650 + $0x2a8] sm:$0xf]
    %v5822 = vld [vmem:[%s5650 + $0x2ac] sm:$0xf]
    %v5823 = vld [vmem:[%s5650 + $0x2b0] sm:$0xf]
    %v5824 = vld [vmem:[%s5650 + $0x2b4] sm:$0xf]
    %v5825 = vld [vmem:[%s5650 + $0x2b8] sm:$0xf]
    %v5826 = vld [vmem:[%s5650 + $0x2bc] sm:$0xf]
    %v5827 = vld [vmem:[%s5650 + $0x2c0] sm:$0xf]
    %v5828 = vld [vmem:[%s5650 + $0x2c4] sm:$0xf]
    %v5829 = vld [vmem:[%s5650 + $0x2c8] sm:$0xf]
    %v5830 = vld [vmem:[%s5650 + $0x2cc] sm:$0xf]
    %v5831 = vld [vmem:[%s5650 + $0x2d0] sm:$0xf]
    %v5832 = vld [vmem:[%s5650 + $0x2d4] sm:$0xf]
    %v5833 = vld [vmem:[%s5650 + $0x2d8] sm:$0xf]
    %v5834 = vld [vmem:[%s5650 + $0x2dc] sm:$0xf]
    %v5835 = vld [vmem:[%s5650 + $0x2e0] sm:$0xf]
    %v5836 = vld [vmem:[%s5650 + $0x2e4] sm:$0xf]
    %v5837 = vld [vmem:[%s5650 + $0x2e8] sm:$0xf]
    %v5838 = vld [vmem:[%s5650 + $0x2ec] sm:$0xf]
    %v5839 = vld [vmem:[%s5650 + $0x2f0] sm:$0xf]
    %v5840 = vld [vmem:[%s5650 + $0x2f4] sm:$0xf]
    %v5841 = vld [vmem:[%s5650 + $0x2f8] sm:$0xf]
    %v5842 = vld [vmem:[%s5650 + $0x2fc] sm:$0xf]
    %v5843 = vld [vmem:[%s5650 + $0x300] sm:$0xf]
    %v5844 = vld [vmem:[%s5650 + $0x304] sm:$0xf]
    %v5845 = vld [vmem:[%s5650 + $0x308] sm:$0xf]
    %v5846 = vld [vmem:[%s5650 + $0x30c] sm:$0xf]
    %v5847 = vld [vmem:[%s5650 + $0x310] sm:$0xf]
    %v5848 = vld [vmem:[%s5650 + $0x314] sm:$0xf]
    %v5849 = vld [vmem:[%s5650 + $0x318] sm:$0xf]
    %v5850 = vld [vmem:[%s5650 + $0x31c] sm:$0xf]
    %v5851 = vld [vmem:[%s5650 + $0x320] sm:$0xf]
    %v5852 = vld [vmem:[%s5650 + $0x324] sm:$0xf]
    %v5853 = vld [vmem:[%s5650 + $0x328] sm:$0xf]
    %v5854 = vld [vmem:[%s5650 + $0x32c] sm:$0xf]
    %v5855 = vld [vmem:[%s5650 + $0x330] sm:$0xf]
    %v5856 = vld [vmem:[%s5650 + $0x334] sm:$0xf]
    %v5857 = vld [vmem:[%s5650 + $0x338] sm:$0xf]
    %v5858 = vld [vmem:[%s5650 + $0x33c] sm:$0xf]
    %v5859 = vld [vmem:[%s5650 + $0x340] sm:$0xf]
    %v5860 = vld [vmem:[%s5650 + $0x344] sm:$0xf]
    %v5861 = vld [vmem:[%s5650 + $0x348] sm:$0xf]
    %v5862 = vld [vmem:[%s5650 + $0x34c] sm:$0xf]
    %v5863 = vld [vmem:[%s5650 + $0x350] sm:$0xf]
    %v5864 = vld [vmem:[%s5650 + $0x354] sm:$0xf]
    %v5865 = vld [vmem:[%s5650 + $0x358] sm:$0xf]
    %v5866 = vld [vmem:[%s5650 + $0x35c] sm:$0xf]
    %v5867 = vld [vmem:[%s5650 + $0x360] sm:$0xf]
    %v5868 = vld [vmem:[%s5650 + $0x364] sm:$0xf]
    %v5869 = vld [vmem:[%s5650 + $0x368] sm:$0xf]
    %v5870 = vld [vmem:[%s5650 + $0x36c] sm:$0xf]
    %v5871 = vld [vmem:[%s5650 + $0x370] sm:$0xf]
    %v5872 = vld [vmem:[%s5650 + $0x374] sm:$0xf]
    %v5873 = vld [vmem:[%s5650 + $0x378] sm:$0xf]
    %v5874 = vld [vmem:[%s5650 + $0x37c] sm:$0xf]
    %v5875 = vld [vmem:[%s5650 + $0x380] sm:$0xf]
    %v5876 = vld [vmem:[%s5650 + $0x384] sm:$0xf]
    %v5877 = vld [vmem:[%s5650 + $0x388] sm:$0xf]
    %v5878 = vld [vmem:[%s5650 + $0x38c] sm:$0xf]
    %v5879 = vld [vmem:[%s5650 + $0x390] sm:$0xf]
    %v5880 = vld [vmem:[%s5650 + $0x394] sm:$0xf]
    %v5881 = vld [vmem:[%s5650 + $0x398] sm:$0xf]
    %v5882 = vld [vmem:[%s5650 + $0x39c] sm:$0xf]
    %v5883 = vld [vmem:[%s5650 + $0x3a0] sm:$0xf]
    %v5884 = vld [vmem:[%s5650 + $0x3a4] sm:$0xf]
    %v5885 = vld [vmem:[%s5650 + $0x3a8] sm:$0xf]
    %v5886 = vld [vmem:[%s5650 + $0x3ac] sm:$0xf]
    %v5887 = vld [vmem:[%s5650 + $0x3b0] sm:$0xf]
    %v5888 = vld [vmem:[%s5650 + $0x3b4] sm:$0xf]
    %v5889 = vld [vmem:[%s5650 + $0x3b8] sm:$0xf]
    %v5890 = vld [vmem:[%s5650 + $0x3bc] sm:$0xf]
    %v5891 = vld [vmem:[%s5650 + $0x3c0] sm:$0xf]
    %v5892 = vld [vmem:[%s5650 + $0x3c4] sm:$0xf]
    %v5893 = vld [vmem:[%s5650 + $0x3c8] sm:$0xf]
    %v5894 = vld [vmem:[%s5650 + $0x3cc] sm:$0xf]
    %v5895 = vld [vmem:[%s5650 + $0x3d0] sm:$0xf]
    %v5896 = vld [vmem:[%s5650 + $0x3d4] sm:$0xf]
    %v5897 = vld [vmem:[%s5650 + $0x3d8] sm:$0xf]
    %v5898 = vld [vmem:[%s5650 + $0x3dc] sm:$0xf]
    %v5899 = vld [vmem:[%s5650 + $0x3e0] sm:$0xf]
    %v5900 = vld [vmem:[%s5650 + $0x3e4] sm:$0xf]
    %v5901 = vld [vmem:[%s5650 + $0x3e8] sm:$0xf]
    %v5902 = vld [vmem:[%s5650 + $0x3ec] sm:$0xf]
    %v5903 = vld [vmem:[%s5650 + $0x3f0] sm:$0xf]
    %v5904 = vld [vmem:[%s5650 + $0x3f4] sm:$0xf]
    %v5905 = vld [vmem:[%s5650 + $0x3f8] sm:$0xf]
    %v5906 = vld [vmem:[%s5650 + $0x3fc] sm:$0xf]
    %v6163 = vunpack.c.l.b16 %v5651
    %v6164 = vunpack.c.l.b16 %v5652
    %v6165 = vunpack.c.l.b16 %v5653
    %v6166 = vunpack.c.l.b16 %v5654
    %v6167 = vunpack.c.l.b16 %v5655
    %v6168 = vunpack.c.l.b16 %v5656
    %v6169 = vunpack.c.l.b16 %v5657
    %v6170 = vunpack.c.l.b16 %v5658
    %v6171 = vunpack.c.l.b16 %v5659
    %v6172 = vunpack.c.l.b16 %v5660
    %v6173 = vunpack.c.l.b16 %v5661
    %v6174 = vunpack.c.l.b16 %v5662
    %v6175 = vunpack.c.l.b16 %v5663
    %v6176 = vunpack.c.l.b16 %v5664
    %v6177 = vunpack.c.l.b16 %v5665
    %v6178 = vunpack.c.l.b16 %v5666
    %v6179 = vunpack.c.l.b16 %v5667
    %v6180 = vunpack.c.l.b16 %v5668
    %v6181 = vunpack.c.l.b16 %v5669
    %v6182 = vunpack.c.l.b16 %v5670
    %v6183 = vunpack.c.l.b16 %v5671
    %v6184 = vunpack.c.l.b16 %v5672
    %v6185 = vunpack.c.l.b16 %v5673
    %v6186 = vunpack.c.l.b16 %v5674
    %v6187 = vunpack.c.l.b16 %v5675
    %v6188 = vunpack.c.l.b16 %v5676
    %v6189 = vunpack.c.l.b16 %v5677
    %v6190 = vunpack.c.l.b16 %v5678
    %v6191 = vunpack.c.l.b16 %v5679
    %v6192 = vunpack.c.l.b16 %v5680
    %v6193 = vunpack.c.l.b16 %v5681
    %v6194 = vunpack.c.l.b16 %v5682
    %v6195 = vunpack.c.l.b16 %v5683
    %v6196 = vunpack.c.l.b16 %v5684
    %v6197 = vunpack.c.l.b16 %v5685
    %v6198 = vunpack.c.l.b16 %v5686
    %v6199 = vunpack.c.l.b16 %v5687
    %v6200 = vunpack.c.l.b16 %v5688
    %v6201 = vunpack.c.l.b16 %v5689
    %v6202 = vunpack.c.l.b16 %v5690
    %v6203 = vunpack.c.l.b16 %v5691
    %v6204 = vunpack.c.l.b16 %v5692
    %v6205 = vunpack.c.l.b16 %v5693
    %v6206 = vunpack.c.l.b16 %v5694
    %v6207 = vunpack.c.l.b16 %v5695
    %v6208 = vunpack.c.l.b16 %v5696
    %v6209 = vunpack.c.l.b16 %v5697
    %v6210 = vunpack.c.l.b16 %v5698
    %v6211 = vunpack.c.l.b16 %v5699
    %v6212 = vunpack.c.l.b16 %v5700
    %v6213 = vunpack.c.l.b16 %v5701
    %v6214 = vunpack.c.l.b16 %v5702
    %v6215 = vunpack.c.l.b16 %v5703
    %v6216 = vunpack.c.l.b16 %v5704
    %v6217 = vunpack.c.l.b16 %v5705
    %v6218 = vunpack.c.l.b16 %v5706
    %v6219 = vunpack.c.l.b16 %v5707
    %v6220 = vunpack.c.l.b16 %v5708
    %v6221 = vunpack.c.l.b16 %v5709
    %v6222 = vunpack.c.l.b16 %v5710
    %v6223 = vunpack.c.l.b16 %v5711
    %v6224 = vunpack.c.l.b16 %v5712
    %v6225 = vunpack.c.l.b16 %v5713
    %v6226 = vunpack.c.l.b16 %v5714
    %v6227 = vunpack.c.l.b16 %v5715
    %v6228 = vunpack.c.l.b16 %v5716
    %v6229 = vunpack.c.l.b16 %v5717
    %v6230 = vunpack.c.l.b16 %v5718
    %v6231 = vunpack.c.l.b16 %v5719
    %v6232 = vunpack.c.l.b16 %v5720
    %v6233 = vunpack.c.l.b16 %v5721
    %v6234 = vunpack.c.l.b16 %v5722
    %v6235 = vunpack.c.l.b16 %v5723
    %v6236 = vunpack.c.l.b16 %v5724
    %v6237 = vunpack.c.l.b16 %v5725
    %v6238 = vunpack.c.l.b16 %v5726
    %v6239 = vunpack.c.l.b16 %v5727
    %v6240 = vunpack.c.l.b16 %v5728
    %v6241 = vunpack.c.l.b16 %v5729
    %v6242 = vunpack.c.l.b16 %v5730
    %v6243 = vunpack.c.l.b16 %v5731
    %v6244 = vunpack.c.l.b16 %v5732
    %v6245 = vunpack.c.l.b16 %v5733
    %v6246 = vunpack.c.l.b16 %v5734
    %v6247 = vunpack.c.l.b16 %v5735
    %v6248 = vunpack.c.l.b16 %v5736
    %v6249 = vunpack.c.l.b16 %v5737
    %v6250 = vunpack.c.l.b16 %v5738
    %v6251 = vunpack.c.l.b16 %v5739
    %v6252 = vunpack.c.l.b16 %v5740
    %v6253 = vunpack.c.l.b16 %v5741
    %v6254 = vunpack.c.l.b16 %v5742
    %v6255 = vunpack.c.l.b16 %v5743
    %v6256 = vunpack.c.l.b16 %v5744
    %v6257 = vunpack.c.l.b16 %v5745
    %v6258 = vunpack.c.l.b16 %v5746
    %v6259 = vunpack.c.l.b16 %v5747
    %v6260 = vunpack.c.l.b16 %v5748
    %v6261 = vunpack.c.l.b16 %v5749
    %v6262 = vunpack.c.l.b16 %v5750
    %v6263 = vunpack.c.l.b16 %v5751
    %v6264 = vunpack.c.l.b16 %v5752
    %v6265 = vunpack.c.l.b16 %v5753
    %v6266 = vunpack.c.l.b16 %v5754
    %v6267 = vunpack.c.l.b16 %v5755
    %v6268 = vunpack.c.l.b16 %v5756
    %v6269 = vunpack.c.l.b16 %v5757
    %v6270 = vunpack.c.l.b16 %v5758
    %v6271 = vunpack.c.l.b16 %v5759
    %v6272 = vunpack.c.l.b16 %v5760
    %v6273 = vunpack.c.l.b16 %v5761
    %v6274 = vunpack.c.l.b16 %v5762
    %v6275 = vunpack.c.l.b16 %v5763
    %v6276 = vunpack.c.l.b16 %v5764
    %v6277 = vunpack.c.l.b16 %v5765
    %v6278 = vunpack.c.l.b16 %v5766
    %v6279 = vunpack.c.l.b16 %v5767
    %v6280 = vunpack.c.l.b16 %v5768
    %v6281 = vunpack.c.l.b16 %v5769
    %v6282 = vunpack.c.l.b16 %v5770
    %v6283 = vunpack.c.l.b16 %v5771
    %v6284 = vunpack.c.l.b16 %v5772
    %v6285 = vunpack.c.l.b16 %v5773
    %v6286 = vunpack.c.l.b16 %v5774
    %v6287 = vunpack.c.l.b16 %v5775
    %v6288 = vunpack.c.l.b16 %v5776
    %v6289 = vunpack.c.l.b16 %v5777
    %v6290 = vunpack.c.l.b16 %v5778
    %v6291 = vunpack.c.l.b16 %v5779
    %v6292 = vunpack.c.l.b16 %v5780
    %v6293 = vunpack.c.l.b16 %v5781
    %v6294 = vunpack.c.l.b16 %v5782
    %v6295 = vunpack.c.l.b16 %v5783
    %v6296 = vunpack.c.l.b16 %v5784
    %v6297 = vunpack.c.l.b16 %v5785
    %v6298 = vunpack.c.l.b16 %v5786
    %v6299 = vunpack.c.l.b16 %v5787
    %v6300 = vunpack.c.l.b16 %v5788
    %v6301 = vunpack.c.l.b16 %v5789
    %v6302 = vunpack.c.l.b16 %v5790
    %v6303 = vunpack.c.l.b16 %v5791
    %v6304 = vunpack.c.l.b16 %v5792
    %v6305 = vunpack.c.l.b16 %v5793
    %v6306 = vunpack.c.l.b16 %v5794
    %v6307 = vunpack.c.l.b16 %v5795
    %v6308 = vunpack.c.l.b16 %v5796
    %v6309 = vunpack.c.l.b16 %v5797
    %v6310 = vunpack.c.l.b16 %v5798
    %v6311 = vunpack.c.l.b16 %v5799
    %v6312 = vunpack.c.l.b16 %v5800
    %v6313 = vunpack.c.l.b16 %v5801
    %v6314 = vunpack.c.l.b16 %v5802
    %v6315 = vunpack.c.l.b16 %v5803
    %v6316 = vunpack.c.l.b16 %v5804
    %v6317 = vunpack.c.l.b16 %v5805
    %v6318 = vunpack.c.l.b16 %v5806
    %v6319 = vunpack.c.l.b16 %v5807
    %v6320 = vunpack.c.l.b16 %v5808
    %v6321 = vunpack.c.l.b16 %v5809
    %v6322 = vunpack.c.l.b16 %v5810
    %v6323 = vunpack.c.l.b16 %v5811
    %v6324 = vunpack.c.l.b16 %v5812
    %v6325 = vunpack.c.l.b16 %v5813
    %v6326 = vunpack.c.l.b16 %v5814
    %v6327 = vunpack.c.l.b16 %v5815
    %v6328 = vunpack.c.l.b16 %v5816
    %v6329 = vunpack.c.l.b16 %v5817
    %v6330 = vunpack.c.l.b16 %v5818
    %v6331 = vunpack.c.l.b16 %v5819
    %v6332 = vunpack.c.l.b16 %v5820
    %v6333 = vunpack.c.l.b16 %v5821
    %v6334 = vunpack.c.l.b16 %v5822
    %v6335 = vunpack.c.l.b16 %v5823
    %v6336 = vunpack.c.l.b16 %v5824
    %v6337 = vunpack.c.l.b16 %v5825
    %v6338 = vunpack.c.l.b16 %v5826
    %v6339 = vunpack.c.l.b16 %v5827
    %v6340 = vunpack.c.l.b16 %v5828
    %v6341 = vunpack.c.l.b16 %v5829
    %v6342 = vunpack.c.l.b16 %v5830
    %v6343 = vunpack.c.l.b16 %v5831
    %v6344 = vunpack.c.l.b16 %v5832
    %v6345 = vunpack.c.l.b16 %v5833
    %v6346 = vunpack.c.l.b16 %v5834
    %v6347 = vunpack.c.l.b16 %v5835
    %v6348 = vunpack.c.l.b16 %v5836
    %v6349 = vunpack.c.l.b16 %v5837
    %v6350 = vunpack.c.l.b16 %v5838
    %v6351 = vunpack.c.l.b16 %v5839
    %v6352 = vunpack.c.l.b16 %v5840
    %v6353 = vunpack.c.l.b16 %v5841
    %v6354 = vunpack.c.l.b16 %v5842
    %v6355 = vunpack.c.l.b16 %v5843
    %v6356 = vunpack.c.l.b16 %v5844
    %v6357 = vunpack.c.l.b16 %v5845
    %v6358 = vunpack.c.l.b16 %v5846
    %v6359 = vunpack.c.l.b16 %v5847
    %v6360 = vunpack.c.l.b16 %v5848
    %v6361 = vunpack.c.l.b16 %v5849
    %v6362 = vunpack.c.l.b16 %v5850
    %v6363 = vunpack.c.l.b16 %v5851
    %v6364 = vunpack.c.l.b16 %v5852
    %v6365 = vunpack.c.l.b16 %v5853
    %v6366 = vunpack.c.l.b16 %v5854
    %v6367 = vunpack.c.l.b16 %v5855
    %v6368 = vunpack.c.l.b16 %v5856
    %v6369 = vunpack.c.l.b16 %v5857
    %v6370 = vunpack.c.l.b16 %v5858
    %v6371 = vunpack.c.l.b16 %v5859
    %v6372 = vunpack.c.l.b16 %v5860
    %v6373 = vunpack.c.l.b16 %v5861
    %v6374 = vunpack.c.l.b16 %v5862
    %v6375 = vunpack.c.l.b16 %v5863
    %v6376 = vunpack.c.l.b16 %v5864
    %v6377 = vunpack.c.l.b16 %v5865
    %v6378 = vunpack.c.l.b16 %v5866
    %v6379 = vunpack.c.l.b16 %v5867
    %v6380 = vunpack.c.l.b16 %v5868
    %v6381 = vunpack.c.l.b16 %v5869
    %v6382 = vunpack.c.l.b16 %v5870
    %v6383 = vunpack.c.l.b16 %v5871
    %v6384 = vunpack.c.l.b16 %v5872
    %v6385 = vunpack.c.l.b16 %v5873
    %v6386 = vunpack.c.l.b16 %v5874
    %v6387 = vunpack.c.l.b16 %v5875
    %v6388 = vunpack.c.l.b16 %v5876
    %v6389 = vunpack.c.l.b16 %v5877
    %v6390 = vunpack.c.l.b16 %v5878
    %v6391 = vunpack.c.l.b16 %v5879
    %v6392 = vunpack.c.l.b16 %v5880
    %v6393 = vunpack.c.l.b16 %v5881
    %v6394 = vunpack.c.l.b16 %v5882
    %v6395 = vunpack.c.l.b16 %v5883
    %v6396 = vunpack.c.l.b16 %v5884
    %v6397 = vunpack.c.l.b16 %v5885
    %v6398 = vunpack.c.l.b16 %v5886
    %v6399 = vunpack.c.l.b16 %v5887
    %v6400 = vunpack.c.l.b16 %v5888
    %v6401 = vunpack.c.l.b16 %v5889
    %v6402 = vunpack.c.l.b16 %v5890
    %v6403 = vunpack.c.l.b16 %v5891
    %v6404 = vunpack.c.l.b16 %v5892
    %v6405 = vunpack.c.l.b16 %v5893
    %v6406 = vunpack.c.l.b16 %v5894
    %v6407 = vunpack.c.l.b16 %v5895
    %v6408 = vunpack.c.l.b16 %v5896
    %v6409 = vunpack.c.l.b16 %v5897
    %v6410 = vunpack.c.l.b16 %v5898
    %v6411 = vunpack.c.l.b16 %v5899
    %v6412 = vunpack.c.l.b16 %v5900
    %v6413 = vunpack.c.l.b16 %v5901
    %v6414 = vunpack.c.l.b16 %v5902
    %v6415 = vunpack.c.l.b16 %v5903
    %v6416 = vunpack.c.l.b16 %v5904
    %v6417 = vunpack.c.l.b16 %v5905
    %v6418 = vunpack.c.l.b16 %v5906
    %v6419 = vpack.c.b16 %v6164, %v6163
    %v6420 = vpack.c.b16 %v6166, %v6165
    %v6421 = vpack.c.b16 %v6168, %v6167
    %v6422 = vpack.c.b16 %v6170, %v6169
    %v6423 = vpack.c.b16 %v6172, %v6171
    %v6424 = vpack.c.b16 %v6174, %v6173
    %v6425 = vpack.c.b16 %v6176, %v6175
    %v6426 = vpack.c.b16 %v6178, %v6177
    %v6427 = vpack.c.b16 %v6180, %v6179
    %v6428 = vpack.c.b16 %v6182, %v6181
    %v6429 = vpack.c.b16 %v6184, %v6183
    %v6430 = vpack.c.b16 %v6186, %v6185
    %v6431 = vpack.c.b16 %v6188, %v6187
    %v6432 = vpack.c.b16 %v6190, %v6189
    %v6433 = vpack.c.b16 %v6192, %v6191
    %v6434 = vpack.c.b16 %v6194, %v6193
    %v6435 = vpack.c.b16 %v6196, %v6195
    %v6436 = vpack.c.b16 %v6198, %v6197
    %v6437 = vpack.c.b16 %v6200, %v6199
    %v6438 = vpack.c.b16 %v6202, %v6201
    %v6439 = vpack.c.b16 %v6204, %v6203
    %v6440 = vpack.c.b16 %v6206, %v6205
    %v6441 = vpack.c.b16 %v6208, %v6207
    %v6442 = vpack.c.b16 %v6210, %v6209
    %v6443 = vpack.c.b16 %v6212, %v6211
    %v6444 = vpack.c.b16 %v6214, %v6213
    %v6445 = vpack.c.b16 %v6216, %v6215
    %v6446 = vpack.c.b16 %v6218, %v6217
    %v6447 = vpack.c.b16 %v6220, %v6219
    %v6448 = vpack.c.b16 %v6222, %v6221
    %v6449 = vpack.c.b16 %v6224, %v6223
    %v6450 = vpack.c.b16 %v6226, %v6225
    %v6451 = vpack.c.b16 %v6228, %v6227
    %v6452 = vpack.c.b16 %v6230, %v6229
    %v6453 = vpack.c.b16 %v6232, %v6231
    %v6454 = vpack.c.b16 %v6234, %v6233
    %v6455 = vpack.c.b16 %v6236, %v6235
    %v6456 = vpack.c.b16 %v6238, %v6237
    %v6457 = vpack.c.b16 %v6240, %v6239
    %v6458 = vpack.c.b16 %v6242, %v6241
    %v6459 = vpack.c.b16 %v6244, %v6243
    %v6460 = vpack.c.b16 %v6246, %v6245
    %v6461 = vpack.c.b16 %v6248, %v6247
    %v6462 = vpack.c.b16 %v6250, %v6249
    %v6463 = vpack.c.b16 %v6252, %v6251
    %v6464 = vpack.c.b16 %v6254, %v6253
    %v6465 = vpack.c.b16 %v6256, %v6255
    %v6466 = vpack.c.b16 %v6258, %v6257
    %v6467 = vpack.c.b16 %v6260, %v6259
    %v6468 = vpack.c.b16 %v6262, %v6261
    %v6469 = vpack.c.b16 %v6264, %v6263
    %v6470 = vpack.c.b16 %v6266, %v6265
    %v6471 = vpack.c.b16 %v6268, %v6267
    %v6472 = vpack.c.b16 %v6270, %v6269
    %v6473 = vpack.c.b16 %v6272, %v6271
    %v6474 = vpack.c.b16 %v6274, %v6273
    %v6475 = vpack.c.b16 %v6276, %v6275
    %v6476 = vpack.c.b16 %v6278, %v6277
    %v6477 = vpack.c.b16 %v6280, %v6279
    %v6478 = vpack.c.b16 %v6282, %v6281
    %v6479 = vpack.c.b16 %v6284, %v6283
    %v6480 = vpack.c.b16 %v6286, %v6285
    %v6481 = vpack.c.b16 %v6288, %v6287
    %v6482 = vpack.c.b16 %v6290, %v6289
    %v6483 = vpack.c.b16 %v6292, %v6291
    %v6484 = vpack.c.b16 %v6294, %v6293
    %v6485 = vpack.c.b16 %v6296, %v6295
    %v6486 = vpack.c.b16 %v6298, %v6297
    %v6487 = vpack.c.b16 %v6300, %v6299
    %v6488 = vpack.c.b16 %v6302, %v6301
    %v6489 = vpack.c.b16 %v6304, %v6303
    %v6490 = vpack.c.b16 %v6306, %v6305
    %v6491 = vpack.c.b16 %v6308, %v6307
    %v6492 = vpack.c.b16 %v6310, %v6309
    %v6493 = vpack.c.b16 %v6312, %v6311
    %v6494 = vpack.c.b16 %v6314, %v6313
    %v6495 = vpack.c.b16 %v6316, %v6315
    %v6496 = vpack.c.b16 %v6318, %v6317
    %v6497 = vpack.c.b16 %v6320, %v6319
    %v6498 = vpack.c.b16 %v6322, %v6321
    %v6499 = vpack.c.b16 %v6324, %v6323
    %v6500 = vpack.c.b16 %v6326, %v6325
    %v6501 = vpack.c.b16 %v6328, %v6327
    %v6502 = vpack.c.b16 %v6330, %v6329
    %v6503 = vpack.c.b16 %v6332, %v6331
    %v6504 = vpack.c.b16 %v6334, %v6333
    %v6505 = vpack.c.b16 %v6336, %v6335
    %v6506 = vpack.c.b16 %v6338, %v6337
    %v6507 = vpack.c.b16 %v6340, %v6339
    %v6508 = vpack.c.b16 %v6342, %v6341
    %v6509 = vpack.c.b16 %v6344, %v6343
    %v6510 = vpack.c.b16 %v6346, %v6345
    %v6511 = vpack.c.b16 %v6348, %v6347
    %v6512 = vpack.c.b16 %v6350, %v6349
    %v6513 = vpack.c.b16 %v6352, %v6351
    %v6514 = vpack.c.b16 %v6354, %v6353
    %v6515 = vpack.c.b16 %v6356, %v6355
    %v6516 = vpack.c.b16 %v6358, %v6357
    %v6517 = vpack.c.b16 %v6360, %v6359
    %v6518 = vpack.c.b16 %v6362, %v6361
    %v6519 = vpack.c.b16 %v6364, %v6363
    %v6520 = vpack.c.b16 %v6366, %v6365
    %v6521 = vpack.c.b16 %v6368, %v6367
    %v6522 = vpack.c.b16 %v6370, %v6369
    %v6523 = vpack.c.b16 %v6372, %v6371
    %v6524 = vpack.c.b16 %v6374, %v6373
    %v6525 = vpack.c.b16 %v6376, %v6375
    %v6526 = vpack.c.b16 %v6378, %v6377
    %v6527 = vpack.c.b16 %v6380, %v6379
    %v6528 = vpack.c.b16 %v6382, %v6381
    %v6529 = vpack.c.b16 %v6384, %v6383
    %v6530 = vpack.c.b16 %v6386, %v6385
    %v6531 = vpack.c.b16 %v6388, %v6387
    %v6532 = vpack.c.b16 %v6390, %v6389
    %v6533 = vpack.c.b16 %v6392, %v6391
    %v6534 = vpack.c.b16 %v6394, %v6393
    %v6535 = vpack.c.b16 %v6396, %v6395
    %v6536 = vpack.c.b16 %v6398, %v6397
    %v6537 = vpack.c.b16 %v6400, %v6399
    %v6538 = vpack.c.b16 %v6402, %v6401
    %v6539 = vpack.c.b16 %v6404, %v6403
    %v6540 = vpack.c.b16 %v6406, %v6405
    %v6541 = vpack.c.b16 %v6408, %v6407
    %v6542 = vpack.c.b16 %v6410, %v6409
    %v6543 = vpack.c.b16 %v6412, %v6411
    %v6544 = vpack.c.b16 %v6414, %v6413
    %v6545 = vpack.c.b16 %v6416, %v6415
    %v6546 = vpack.c.b16 %v6418, %v6417
    %v6676 = vrot.slane %v3985, 2
    %6678 = vmatprep.subr.bf16.mxu0 0
    %6679 = vmatpush1.bf16.msra.mxu0 %v6419
    %6680 = vmatprep.subr.bf16.mxu0 0
    %6681 = vmatpush1.bf16.msra.mxu0 %v6420
    %6682 = vmatprep.subr.bf16.mxu0 0
    %6683 = vmatpush1.bf16.msra.mxu0 %v6421
    %6684 = vmatprep.subr.bf16.mxu0 0
    %6685 = vmatpush1.bf16.msra.mxu0 %v6422
    %6686 = vmatprep.subr.bf16.mxu0 0
    %6687 = vmatpush1.bf16.msra.mxu0 %v6423
    %6688 = vmatprep.subr.bf16.mxu0 0
    %6689 = vmatpush1.bf16.msra.mxu0 %v6424
    %6690 = vmatprep.subr.bf16.mxu0 0
    %6691 = vmatpush1.bf16.msra.mxu0 %v6425
    %6692 = vmatprep.subr.bf16.mxu0 0
    %6693 = vmatpush1.bf16.msra.mxu0 %v6426
    %6694 = vmatprep.subr.bf16.mxu0 0
    %6695 = vmatpush1.bf16.msra.mxu0 %v6427
    %6696 = vmatprep.subr.bf16.mxu0 0
    %6697 = vmatpush1.bf16.msra.mxu0 %v6428
    %6698 = vmatprep.subr.bf16.mxu0 0
    %6699 = vmatpush1.bf16.msra.mxu0 %v6429
    %6700 = vmatprep.subr.bf16.mxu0 0
    %6701 = vmatpush1.bf16.msra.mxu0 %v6430
    %6702 = vmatprep.subr.bf16.mxu0 0
    %6703 = vmatpush1.bf16.msra.mxu0 %v6431
    %6704 = vmatprep.subr.bf16.mxu0 0
    %6705 = vmatpush1.bf16.msra.mxu0 %v6432
    %6706 = vmatprep.subr.bf16.mxu0 0
    %6707 = vmatpush1.bf16.msra.mxu0 %v6433
    %6708 = vmatprep.subr.bf16.mxu0 0
    %6709 = vmatpush1.bf16.msra.mxu0 %v6434
    %6710 = vmatprep.mubr.bf16.mxu0 %v5635
    %6711 = vmatmul.mubr.bf16.gmra.mrb[0].mxu0 %v5634
    %v6712 = vpop.f32.mrb[0].mxu0
    %v6713 = vadd.f32 %v6676, %v6712
    %v6714 = vpop.f32.mrb[0].mxu0
    %v6715 = vpop.f32.mrb[0].mxu0
    %v6716 = vpop.f32.mrb[0].mxu0
    %6717 = vdwg.mxu0
    %6718 = vmatprep.subr.bf16.mxu0 0
    %6719 = vmatpush1.bf16.msra.mxu0 %v6435
    %6720 = vmatprep.subr.bf16.mxu0 0
    %6721 = vmatpush1.bf16.msra.mxu0 %v6436
    %6722 = vmatprep.subr.bf16.mxu0 0
    %6723 = vmatpush1.bf16.msra.mxu0 %v6437
    %6724 = vmatprep.subr.bf16.mxu0 0
    %6725 = vmatpush1.bf16.msra.mxu0 %v6438
    %6726 = vmatprep.subr.bf16.mxu0 0
    %6727 = vmatpush1.bf16.msra.mxu0 %v6439
    %6728 = vmatprep.subr.bf16.mxu0 0
    %6729 = vmatpush1.bf16.msra.mxu0 %v6440
    %6730 = vmatprep.subr.bf16.mxu0 0
    %6731 = vmatpush1.bf16.msra.mxu0 %v6441
    %6732 = vmatprep.subr.bf16.mxu0 0
    %6733 = vmatpush1.bf16.msra.mxu0 %v6442
    %6734 = vmatprep.subr.bf16.mxu0 0
    %6735 = vmatpush1.bf16.msra.mxu0 %v6443
    %6736 = vmatprep.subr.bf16.mxu0 0
    %6737 = vmatpush1.bf16.msra.mxu0 %v6444
    %6738 = vmatprep.subr.bf16.mxu0 0
    %6739 = vmatpush1.bf16.msra.mxu0 %v6445
    %6740 = vmatprep.subr.bf16.mxu0 0
    %6741 = vmatpush1.bf16.msra.mxu0 %v6446
    %6742 = vmatprep.subr.bf16.mxu0 0
    %6743 = vmatpush1.bf16.msra.mxu0 %v6447
    %6744 = vmatprep.subr.bf16.mxu0 0
    %6745 = vmatpush1.bf16.msra.mxu0 %v6448
    %6746 = vmatprep.subr.bf16.mxu0 0
    %6747 = vmatpush1.bf16.msra.mxu0 %v6449
    %6748 = vmatprep.subr.bf16.mxu0 0
    %6749 = vmatpush1.bf16.msra.mxu0 %v6450
    %6750 = vmatprep.mubr.bf16.mxu0 %v5637
    %6751 = vmatmul.mubr.bf16.gmra.mrb[0].mxu0 %v5636
    %v6752 = vpop.f32.mrb[0].mxu0
    %v6753 = vadd.f32 %v6713, %v6752
    %v6754 = vpop.f32.mrb[0].mxu0
    %v6755 = vpop.f32.mrb[0].mxu0
    %v6756 = vpop.f32.mrb[0].mxu0
    %6757 = vdwg.mxu0
    %6758 = vmatprep.subr.bf16.mxu0 0
    %6759 = vmatpush1.bf16.msra.mxu0 %v6451
    %6760 = vmatprep.subr.bf16.mxu0 0
    %6761 = vmatpush1.bf16.msra.mxu0 %v6452
    %6762 = vmatprep.subr.bf16.mxu0 0
    %6763 = vmatpush1.bf16.msra.mxu0 %v6453
    %6764 = vmatprep.subr.bf16.mxu0 0
    %6765 = vmatpush1.bf16.msra.mxu0 %v6454
    %6766 = vmatprep.subr.bf16.mxu0 0
    %6767 = vmatpush1.bf16.msra.mxu0 %v6455
    %6768 = vmatprep.subr.bf16.mxu0 0
    %6769 = vmatpush1.bf16.msra.mxu0 %v6456
    %6770 = vmatprep.subr.bf16.mxu0 0
    %6771 = vmatpush1.bf16.msra.mxu0 %v6457
    %6772 = vmatprep.subr.bf16.mxu0 0
    %6773 = vmatpush1.bf16.msra.mxu0 %v6458
    %6774 = vmatprep.subr.bf16.mxu0 0
    %6775 = vmatpush1.bf16.msra.mxu0 %v6459
    %6776 = vmatprep.subr.bf16.mxu0 0
    %6777 = vmatpush1.bf16.msra.mxu0 %v6460
    %6778 = vmatprep.subr.bf16.mxu0 0
    %6779 = vmatpush1.bf16.msra.mxu0 %v6461
    %6780 = vmatprep.subr.bf16.mxu0 0
    %6781 = vmatpush1.bf16.msra.mxu0 %v6462
    %6782 = vmatprep.subr.bf16.mxu0 0
    %6783 = vmatpush1.bf16.msra.mxu0 %v6463
    %6784 = vmatprep.subr.bf16.mxu0 0
    %6785 = vmatpush1.bf16.msra.mxu0 %v6464
    %6786 = vmatprep.subr.bf16.mxu0 0
    %6787 = vmatpush1.bf16.msra.mxu0 %v6465
    %6788 = vmatprep.subr.bf16.mxu0 0
    %6789 = vmatpush1.bf16.msra.mxu0 %v6466
    %6790 = vmatprep.mubr.bf16.mxu0 %v5639
    %6791 = vmatmul.mubr.bf16.gmra.mrb[0].mxu0 %v5638
    %v6792 = vpop.f32.mrb[0].mxu0
    %v6793 = vadd.f32 %v6753, %v6792
    %v6794 = vpop.f32.mrb[0].mxu0
    %v6795 = vpop.f32.mrb[0].mxu0
    %v6796 = vpop.f32.mrb[0].mxu0
    %6797 = vdwg.mxu0
    %6798 = vmatprep.subr.bf16.mxu0 0
    %6799 = vmatpush1.bf16.msra.mxu0 %v6467
    %6800 = vmatprep.subr.bf16.mxu0 0
    %6801 = vmatpush1.bf16.msra.mxu0 %v6468
    %6802 = vmatprep.subr.bf16.mxu0 0
    %6803 = vmatpush1.bf16.msra.mxu0 %v6469
    %6804 = vmatprep.subr.bf16.mxu0 0
    %6805 = vmatpush1.bf16.msra.mxu0 %v6470
    %6806 = vmatprep.subr.bf16.mxu0 0
    %6807 = vmatpush1.bf16.msra.mxu0 %v6471
    %6808 = vmatprep.subr.bf16.mxu0 0
    %6809 = vmatpush1.bf16.msra.mxu0 %v6472
    %6810 = vmatprep.subr.bf16.mxu0 0
    %6811 = vmatpush1.bf16.msra.mxu0 %v6473
    %6812 = vmatprep.subr.bf16.mxu0 0
    %6813 = vmatpush1.bf16.msra.mxu0 %v6474
    %6814 = vmatprep.subr.bf16.mxu0 0
    %6815 = vmatpush1.bf16.msra.mxu0 %v6475
    %6816 = vmatprep.subr.bf16.mxu0 0
    %6817 = vmatpush1.bf16.msra.mxu0 %v6476
    %6818 = vmatprep.subr.bf16.mxu0 0
    %6819 = vmatpush1.bf16.msra.mxu0 %v6477
    %6820 = vmatprep.subr.bf16.mxu0 0
    %6821 = vmatpush1.bf16.msra.mxu0 %v6478
    %6822 = vmatprep.subr.bf16.mxu0 0
    %6823 = vmatpush1.bf16.msra.mxu0 %v6479
    %6824 = vmatprep.subr.bf16.mxu0 0
    %6825 = vmatpush1.bf16.msra.mxu0 %v6480
    %6826 = vmatprep.subr.bf16.mxu0 0
    %6827 = vmatpush1.bf16.msra.mxu0 %v6481
    %6828 = vmatprep.subr.bf16.mxu0 0
    %6829 = vmatpush1.bf16.msra.mxu0 %v6482
    %6830 = vmatprep.mubr.bf16.mxu0 %v5641
    %6831 = vmatmul.mubr.bf16.gmra.mrb[0].mxu0 %v5640
    %v6832 = vpop.f32.mrb[0].mxu0
    %v6833 = vadd.f32 %v6793, %v6832
    %v6834 = vpop.f32.mrb[0].mxu0
    %v6835 = vpop.f32.mrb[0].mxu0
    %v6836 = vpop.f32.mrb[0].mxu0
    %6837 = vdwg.mxu0
    %6838 = vmatprep.subr.bf16.mxu0 0
    %6839 = vmatpush1.bf16.msra.mxu0 %v6483
    %6840 = vmatprep.subr.bf16.mxu0 0
    %6841 = vmatpush1.bf16.msra.mxu0 %v6484
    %6842 = vmatprep.subr.bf16.mxu0 0
    %6843 = vmatpush1.bf16.msra.mxu0 %v6485
    %6844 = vmatprep.subr.bf16.mxu0 0
    %6845 = vmatpush1.bf16.msra.mxu0 %v6486
    %6846 = vmatprep.subr.bf16.mxu0 0
    %6847 = vmatpush1.bf16.msra.mxu0 %v6487
    %6848 = vmatprep.subr.bf16.mxu0 0
    %6849 = vmatpush1.bf16.msra.mxu0 %v6488
    %6850 = vmatprep.subr.bf16.mxu0 0
    %6851 = vmatpush1.bf16.msra.mxu0 %v6489
    %6852 = vmatprep.subr.bf16.mxu0 0
    %6853 = vmatpush1.bf16.msra.mxu0 %v6490
    %6854 = vmatprep.subr.bf16.mxu0 0
    %6855 = vmatpush1.bf16.msra.mxu0 %v6491
    %6856 = vmatprep.subr.bf16.mxu0 0
    %6857 = vmatpush1.bf16.msra.mxu0 %v6492
    %6858 = vmatprep.subr.bf16.mxu0 0
    %6859 = vmatpush1.bf16.msra.mxu0 %v6493
    %6860 = vmatprep.subr.bf16.mxu0 0
    %6861 = vmatpush1.bf16.msra.mxu0 %v6494
    %6862 = vmatprep.subr.bf16.mxu0 0
    %6863 = vmatpush1.bf16.msra.mxu0 %v6495
    %6864 = vmatprep.subr.bf16.mxu0 0
    %6865 = vmatpush1.bf16.msra.mxu0 %v6496
    %6866 = vmatprep.subr.bf16.mxu0 0
    %6867 = vmatpush1.bf16.msra.mxu0 %v6497
    %6868 = vmatprep.subr.bf16.mxu0 0
    %6869 = vmatpush1.bf16.msra.mxu0 %v6498
    %6870 = vmatprep.mubr.bf16.mxu0 %v5643
    %6871 = vmatmul.mubr.bf16.gmra.mrb[0].mxu0 %v5642
    %v6872 = vpop.f32.mrb[0].mxu0
    %v6873 = vadd.f32 %v6833, %v6872
    %v6874 = vpop.f32.mrb[0].mxu0
    %v6875 = vpop.f32.mrb[0].mxu0
    %v6876 = vpop.f32.mrb[0].mxu0
    %6877 = vdwg.mxu0
    %6878 = vmatprep.subr.bf16.mxu0 0
    %6879 = vmatpush1.bf16.msra.mxu0 %v6499
    %6880 = vmatprep.subr.bf16.mxu0 0
    %6881 = vmatpush1.bf16.msra.mxu0 %v6500
    %6882 = vmatprep.subr.bf16.mxu0 0
    %6883 = vmatpush1.bf16.msra.mxu0 %v6501
    %6884 = vmatprep.subr.bf16.mxu0 0
    %6885 = vmatpush1.bf16.msra.mxu0 %v6502
    %6886 = vmatprep.subr.bf16.mxu0 0
    %6887 = vmatpush1.bf16.msra.mxu0 %v6503
    %6888 = vmatprep.subr.bf16.mxu0 0
    %6889 = vmatpush1.bf16.msra.mxu0 %v6504
    %6890 = vmatprep.subr.bf16.mxu0 0
    %6891 = vmatpush1.bf16.msra.mxu0 %v6505
    %6892 = vmatprep.subr.bf16.mxu0 0
    %6893 = vmatpush1.bf16.msra.mxu0 %v6506
    %6894 = vmatprep.subr.bf16.mxu0 0
    %6895 = vmatpush1.bf16.msra.mxu0 %v6507
    %6896 = vmatprep.subr.bf16.mxu0 0
    %6897 = vmatpush1.bf16.msra.mxu0 %v6508
    %6898 = vmatprep.subr.bf16.mxu0 0
    %6899 = vmatpush1.bf16.msra.mxu0 %v6509
    %6900 = vmatprep.subr.bf16.mxu0 0
    %6901 = vmatpush1.bf16.msra.mxu0 %v6510
    %6902 = vmatprep.subr.bf16.mxu0 0
    %6903 = vmatpush1.bf16.msra.mxu0 %v6511
    %6904 = vmatprep.subr.bf16.mxu0 0
    %6905 = vmatpush1.bf16.msra.mxu0 %v6512
    %6906 = vmatprep.subr.bf16.mxu0 0
    %6907 = vmatpush1.bf16.msra.mxu0 %v6513
    %6908 = vmatprep.subr.bf16.mxu0 0
    %6909 = vmatpush1.bf16.msra.mxu0 %v6514
    %6910 = vmatprep.mubr.bf16.mxu0 %v5645
    %6911 = vmatmul.mubr.bf16.gmra.mrb[0].mxu0 %v5644
    %v6912 = vpop.f32.mrb[0].mxu0
    %v6913 = vadd.f32 %v6873, %v6912
    %v6914 = vpop.f32.mrb[0].mxu0
    %v6915 = vpop.f32.mrb[0].mxu0
    %v6916 = vpop.f32.mrb[0].mxu0
    %6917 = vdwg.mxu0
    %6918 = vmatprep.subr.bf16.mxu0 0
    %6919 = vmatpush1.bf16.msra.mxu0 %v6515
    %6920 = vmatprep.subr.bf16.mxu0 0
    %6921 = vmatpush1.bf16.msra.mxu0 %v6516
    %6922 = vmatprep.subr.bf16.mxu0 0
    %6923 = vmatpush1.bf16.msra.mxu0 %v6517
    %6924 = vmatprep.subr.bf16.mxu0 0
    %6925 = vmatpush1.bf16.msra.mxu0 %v6518
    %6926 = vmatprep.subr.bf16.mxu0 0
    %6927 = vmatpush1.bf16.msra.mxu0 %v6519
    %6928 = vmatprep.subr.bf16.mxu0 0
    %6929 = vmatpush1.bf16.msra.mxu0 %v6520
    %6930 = vmatprep.subr.bf16.mxu0 0
    %6931 = vmatpush1.bf16.msra.mxu0 %v6521
    %6932 = vmatprep.subr.bf16.mxu0 0
    %6933 = vmatpush1.bf16.msra.mxu0 %v6522
    %6934 = vmatprep.subr.bf16.mxu0 0
    %6935 = vmatpush1.bf16.msra.mxu0 %v6523
    %6936 = vmatprep.subr.bf16.mxu0 0
    %6937 = vmatpush1.bf16.msra.mxu0 %v6524
    %6938 = vmatprep.subr.bf16.mxu0 0
    %6939 = vmatpush1.bf16.msra.mxu0 %v6525
    %6940 = vmatprep.subr.bf16.mxu0 0
    %6941 = vmatpush1.bf16.msra.mxu0 %v6526
    %6942 = vmatprep.subr.bf16.mxu0 0
    %6943 = vmatpush1.bf16.msra.mxu0 %v6527
    %6944 = vmatprep.subr.bf16.mxu0 0
    %6945 = vmatpush1.bf16.msra.mxu0 %v6528
    %6946 = vmatprep.subr.bf16.mxu0 0
    %6947 = vmatpush1.bf16.msra.mxu0 %v6529
    %6948 = vmatprep.subr.bf16.mxu0 0
    %6949 = vmatpush1.bf16.msra.mxu0 %v6530
    %6950 = vmatprep.mubr.bf16.mxu0 %v5647
    %6951 = vmatmul.mubr.bf16.gmra.mrb[0].mxu0 %v5646
    %v6952 = vpop.f32.mrb[0].mxu0
    %v6953 = vadd.f32 %v6913, %v6952
    %v6954 = vpop.f32.mrb[0].mxu0
    %v6955 = vpop.f32.mrb[0].mxu0
    %v6956 = vpop.f32.mrb[0].mxu0
    %6957 = vdwg.mxu0
    %6958 = vmatprep.subr.bf16.mxu0 0
    %6959 = vmatpush1.bf16.msra.mxu0 %v6531
    %6960 = vmatprep.subr.bf16.mxu0 0
    %6961 = vmatpush1.bf16.msra.mxu0 %v6532
    %6962 = vmatprep.subr.bf16.mxu0 0
    %6963 = vmatpush1.bf16.msra.mxu0 %v6533
    %6964 = vmatprep.subr.bf16.mxu0 0
    %6965 = vmatpush1.bf16.msra.mxu0 %v6534
    %6966 = vmatprep.subr.bf16.mxu0 0
    %6967 = vmatpush1.bf16.msra.mxu0 %v6535
    %6968 = vmatprep.subr.bf16.mxu0 0
    %6969 = vmatpush1.bf16.msra.mxu0 %v6536
    %6970 = vmatprep.subr.bf16.mxu0 0
    %6971 = vmatpush1.bf16.msra.mxu0 %v6537
    %6972 = vmatprep.subr.bf16.mxu0 0
    %6973 = vmatpush1.bf16.msra.mxu0 %v6538
    %6974 = vmatprep.subr.bf16.mxu0 0
    %6975 = vmatpush1.bf16.msra.mxu0 %v6539
    %6976 = vmatprep.subr.bf16.mxu0 0
    %6977 = vmatpush1.bf16.msra.mxu0 %v6540
    %6978 = vmatprep.subr.bf16.mxu0 0
    %6979 = vmatpush1.bf16.msra.mxu0 %v6541
    %6980 = vmatprep.subr.bf16.mxu0 0
    %6981 = vmatpush1.bf16.msra.mxu0 %v6542
    %6982 = vmatprep.subr.bf16.mxu0 0
    %6983 = vmatpush1.bf16.msra.mxu0 %v6543
    %6984 = vmatprep.subr.bf16.mxu0 0
    %6985 = vmatpush1.bf16.msra.mxu0 %v6544
    %6986 = vmatprep.subr.bf16.mxu0 0
    %6987 = vmatpush1.bf16.msra.mxu0 %v6545
    %6988 = vmatprep.subr.bf16.mxu0 0
    %6989 = vmatpush1.bf16.msra.mxu0 %v6546
    %6990 = vmatprep.mubr.bf16.mxu0 %v5649
    %6991 = vmatmul.mubr.bf16.gmra.mrb[0].mxu0 %v5648
    %v6992 = vpop.f32.mrb[0].mxu0
    %v6993 = vadd.f32 %v6953, %v6992
    %v6994 = vpop.f32.mrb[0].mxu0
    %v6995 = vpop.f32.mrb[0].mxu0
    %v6996 = vpop.f32.mrb[0].mxu0
    %6997 = vdwg.mxu0
    %v6999 = vrot.slane %v6993, 4
    %v7001 = vsel %vm5358, %v3979, %v6999
    %vm7002 = vcmask 1044480
    %v7003 = vsel %vm7002, %v7001, 0.0
    %7004 = vst [vmem:[#allocation12] sm:$0xff] %v7003
    // Predicated region
    $region42: #{tpu_custom_call.1} parent=1 // pred_check
      _
    $region43: #{tpu_custom_call.1} parent=1 // pred_check_branch
      %7006 = sbr.rel (0) target = $region45
    $region44: #{tpu_custom_call.1} parent=1 // pred_region
      %s7008 = ssub.s32 128, 128
      %7009 = vsyncadd [#allocation4], %s7008
      %s7011 = sshll.u32 [#allocation12], 4
      %s7012 = int_to_ptr.vmem [resolvable:$true] %s7011
      %7014 = dma.vmem_to_hbm [thread:$0]  %s7012, 128, %s5, [#allocation4]
    $region45: #{tpu_custom_call.1} parent=1 // pred_fallthru
      _
    // Predicated region
    $region46: #{tpu_custom_call.1} parent=1 // pred_check
      _
    $region47: #{tpu_custom_call.1} parent=1 // pred_check_branch
      %7016 = sbr.rel (0) target = $region49
    $region48: #{tpu_custom_call.1} parent=1 // pred_region
      %7017 = dma.done [#allocation4], 128
    $region49: #{tpu_custom_call.1} parent=1 // pred_fallthru
      _
    %7018 = vsyncpa [#allocation3], 1
    %7019 = vsyncpa [#allocation7], 1
    %7020 = vsyncpa [#allocation10], 1
    %7021 = vsyncpa [#allocation4], 1
    %7022 = vsyncpa [#allocation5], 1

</llo_original>
